<compile_context>
chip_gen: v7x
topology: tpu7x:2x2x1
jax: 0.10.0
libtpu: 0.0.40
codegen_flags: <defaults>
</compile_context>

<pallas_src>
import jax
import jax.numpy as jnp
from jax.experimental import pallas as pl
from jax.experimental.pallas import tpu as pltpu


# (Cin, Cout, kh, kw) for each ConvTranspose2d layer (kernel_size == stride, padding 0).
_LAYER_CFG = (
    (64, 32, 2, 2),
    (32, 32, 5, 5),
    (32, 32, 2, 2),
    (32, 3, 2, 3),
)


# ------------------------------ fused kernel --------------------------------

def _make_decoder_kernel(p0, cfg):
    """Builds the fused kernel body.

    Per grid step (one batch element), everything is laid out transposed:
      x_ref   : (1, Cin0, p0)            f32   pixel cols = (h0, w0)
      w_ref_l : (khl*kwl*Coutl, Cinl)    bf16  rows = (i_l, j_l, co)
      b_ref_l : (khl*kwl*Coutl, 1)       f32
      out_ref : (1, khL*kwL*CoutL, pL)   f32   cols = (i_{L-2}, j_{L-2}, ..., i0, j0, h0, w0)
      act_l   : (Coutl, p_{l+1})         f32   scratch, cols = (i_l, j_l, <previous cols>)
    """
    n_layers = len(cfg)

    def kernel(*refs):
        x_ref = refs[0]
        w_refs = [refs[1 + 2 * l] for l in range(n_layers)]
        b_refs = [refs[2 + 2 * l] for l in range(n_layers)]
        out_ref = refs[1 + 2 * n_layers]
        act_refs = refs[2 + 2 * n_layers:]

        a = x_ref[0].astype(jnp.bfloat16)                    # (Cin0, p0)
        p = p0
        for l, (_cin, cout, kh, kw) in enumerate(cfg):
            # (kh*kw*cout, cin) @ (cin, p) -> (kh*kw*cout, p); bf16 MXU, f32 accumulate.
            y = jnp.dot(w_refs[l][...], a, preferred_element_type=jnp.float32)
            y = jnp.maximum(y + b_refs[l][...], 0.0)         # bias + ReLU in f32 (VPU)
            if l < n_layers - 1:
                nxt = act_refs[l]
                # Pixel shuffle: row-block (i, j) of y -> column-block (i, j) of act_{l+1}.
                for k in range(kh * kw):
                    nxt[:, k * p:(k + 1) * p] = y[k * cout:(k + 1) * cout, :]
                a = nxt[...].astype(jnp.bfloat16)
                p = p * kh * kw
            else:
                out_ref[0] = y                               # lane-dense (18, 1600) store

    return kernel


# ------------------------------ host wrappers --------------------------------

def _prep_params(params, cfg):
    """PyTorch ConvTranspose2d weights -> transposed matmul operands."""
    wts, bts = [], []
    for (w, b), (cin, cout, kh, kw) in zip(params, cfg):
        # (Cin, Cout, kh, kw) -> rows (i, j, co), cols ci.
        wt = jnp.transpose(w, (2, 3, 1, 0)).reshape(kh * kw * cout, cin)
        bt = jnp.broadcast_to(b[None, None, :], (kh, kw, cout)).reshape(kh * kw * cout, 1)
        wts.append(wt.astype(jnp.bfloat16))
        bts.append(bt.astype(jnp.float32))
    return wts, bts


def _unscramble(out, n, h0, w0, cfg):
    """Phase-major kernel output (N, khL*kwL*CoutL, pL) -> (N, CoutL, H_out, W_out).

    Flat index order of `out` is (N, i3, j3, c, i2, j2, i1, j1, i0, j0, h0, w0).
    Merge phases into spatial coords innermost-first with tiny rank<=6 transposes.
    """
    total = out.size
    y = out
    hc, wc = h0, w0
    for (_, _, kh, kw) in cfg[:-1]:
        lead = total // (kh * kw * hc * wc)
        y = y.reshape(lead, kh, kw, hc, wc)
        y = jnp.transpose(y, (0, 3, 1, 4, 2))                # (lead, H, i, W, j)
        hc *= kh
        wc *= kw
    cout, kh_l, kw_l = cfg[-1][1], cfg[-1][2], cfg[-1][3]
    y = y.reshape(n, kh_l, kw_l, cout, hc, wc)
    y = jnp.transpose(y, (0, 3, 4, 1, 5, 2))                 # (N, C, H, i, W, j)
    return y.reshape(n, cout, hc * kh_l, wc * kw_l)


@jax.jit
def decoder_forward(x, params):
    cfg = _LAYER_CFG
    n, cin0, h0, w0 = x.shape
    assert cin0 == cfg[0][0]
    p0 = h0 * w0

    # Pixels (per batch element) at the input of every layer.
    p_in = [p0]
    for (_, _, kh, kw) in cfg[:-1]:
        p_in.append(p_in[-1] * kh * kw)
    k_last = cfg[-1][1] * cfg[-1][2] * cfg[-1][3]            # rows of the last matmul
    p_last = p_in[-1]                                        # lane width of kernel output

    wts, bts = _prep_params(params, cfg)
    x_t = x.reshape(n, cin0, p0)                             # (N, Cin0, h0*w0)

    in_specs = [pl.BlockSpec((1, cin0, p0), lambda g: (g, 0, 0))]
    operands = [x_t]
    for wt, bt in zip(wts, bts):
        in_specs.append(pl.BlockSpec(wt.shape, lambda g: (0, 0)))   # weights stay resident
        in_specs.append(pl.BlockSpec(bt.shape, lambda g: (0, 0)))
        operands.extend([wt, bt])

    scratch_shapes = [
        pltpu.VMEM((cfg[l][1], p_in[l + 1]), jnp.float32) for l in range(len(cfg) - 1)
    ]

    out = pl.pallas_call(
        _make_decoder_kernel(p0, cfg),
        out_shape=jax.ShapeDtypeStruct((n, k_last, p_last), jnp.float32),
        grid=(n,),
        in_specs=in_specs,
        out_specs=pl.BlockSpec((1, k_last, p_last), lambda g: (g, 0, 0)),
        scratch_shapes=scratch_shapes,
        compiler_params=pltpu.CompilerParams(
            dimension_semantics=("parallel",)),
    )(*operands)

    return _unscramble(out, n, h0, w0, cfg)


# ----------------------------- init & reference ------------------------------

def init_decoder_params(key):
    """PyTorch-style default init: U(-1/sqrt(fan_in), 1/sqrt(fan_in))."""
    params = []
    for li, (cin, cout, kh, kw) in enumerate(_LAYER_CFG):
        wkey, bkey = jax.random.split(jax.random.fold_in(key, li))
        bound = 1.0 / ((cin * kh * kw) ** 0.5)
        w = jax.random.uniform(wkey, (cin, cout, kh, kw), jnp.float32, -bound, bound)
        b = jax.random.uniform(bkey, (cout,), jnp.float32, -bound, bound)
        params.append((w, b))
    return tuple(params)


def decoder_reference(x, params):
    """Pure-JAX f32 reference (ConvTranspose2d with kernel == stride, padding 0)."""
    y = x
    for (w, b), (_cin, cout, kh, kw) in zip(params, _LAYER_CFG):
        nb, _c, hh, ww = y.shape
        t = jnp.einsum('nchw,cdij->ndhiwj', y, w)
        t = t + b[None, :, None, None, None, None]
        t = jnp.maximum(t, 0.0)
        y = t.reshape(nb, cout, hh * kh, ww * kw)
    return y


# ----------------------------------- main ------------------------------------

if __name__ == "__main__":
    key = jax.random.PRNGKey(0)
    pkey, xkey = jax.random.split(key)

    params = init_decoder_params(pkey)
    x = jax.random.normal(xkey, (2, 64, 2, 2), jnp.float32)

    y = decoder_forward(x, params)
    y = jax.block_until_ready(y)

    # Total upsampling: H: 2*5*2*2 = 40x, W: 2*5*2*3 = 60x, Cout = 3.
    assert y.shape == (2, 3, 2 * 40, 2 * 60), y.shape
    assert bool(jnp.all(y >= 0.0))          # final ReLU

    # Cross-check against a pure-JAX f32 reference (bf16 MXU inputs -> loose tolerance).
    y_ref = decoder_reference(x, params)
    max_err = float(jnp.max(jnp.abs(y - y_ref)))
    assert max_err < 1e-2, max_err

    print("KERNEL_OK")
</pallas_src>

<mosaic_0001>
module attributes {stable_mosaic.version = 11 : i64} {
  func.func @kernel(%arg0: i32, %arg1: memref<1x64x4xf32, #tpu.memory_space<vmem>>, %arg2: memref<128x64xbf16, #tpu.memory_space<vmem>>, %arg3: memref<128x1xf32, #tpu.memory_space<vmem>>, %arg4: memref<800x32xbf16, #tpu.memory_space<vmem>>, %arg5: memref<800x1xf32, #tpu.memory_space<vmem>>, %arg6: memref<128x32xbf16, #tpu.memory_space<vmem>>, %arg7: memref<128x1xf32, #tpu.memory_space<vmem>>, %arg8: memref<18x32xbf16, #tpu.memory_space<vmem>>, %arg9: memref<18x1xf32, #tpu.memory_space<vmem>>, %arg10: memref<1x18x1600xf32, #tpu.memory_space<vmem>>, %arg11: memref<32x16xf32, #tpu.memory_space<vmem>>, %arg12: memref<32x400xf32, #tpu.memory_space<vmem>>, %arg13: memref<32x1600xf32, #tpu.memory_space<vmem>>) attributes {dimension_semantics = [#tpu.dimension_semantics<parallel>], iteration_bounds = array<i64: 2>, scalar_prefetch = 0 : i64, scratch_operands = 3 : i64, tpu.core_type = #tpu.core_type<tc>, window_params = [{transform_indices = @transform_0, window_bounds = array<i64: 1, 64, 4>}, {pipeline_mode = #tpu.pipeline_mode<synchronous>, transform_indices = @transform_1, window_bounds = array<i64: 128, 64>}, {pipeline_mode = #tpu.pipeline_mode<synchronous>, transform_indices = @transform_2, window_bounds = array<i64: 128, 1>}, {pipeline_mode = #tpu.pipeline_mode<synchronous>, transform_indices = @transform_3, window_bounds = array<i64: 800, 32>}, {pipeline_mode = #tpu.pipeline_mode<synchronous>, transform_indices = @transform_4, window_bounds = array<i64: 800, 1>}, {pipeline_mode = #tpu.pipeline_mode<synchronous>, transform_indices = @transform_5, window_bounds = array<i64: 128, 32>}, {pipeline_mode = #tpu.pipeline_mode<synchronous>, transform_indices = @transform_6, window_bounds = array<i64: 128, 1>}, {pipeline_mode = #tpu.pipeline_mode<synchronous>, transform_indices = @transform_7, window_bounds = array<i64: 18, 32>}, {pipeline_mode = #tpu.pipeline_mode<synchronous>, transform_indices = @transform_8, window_bounds = array<i64: 18, 1>}, {transform_indices = @transform_9, window_bounds = array<i64: 1, 18, 1600>}]} {
    %c0 = arith.constant 0 : index
    %c0_0 = arith.constant 0 : index
    %c0_1 = arith.constant 0 : index
    %0 = vector.load %arg1[%c0, %c0_0, %c0_1] : memref<1x64x4xf32, #tpu.memory_space<vmem>>, vector<1x64x4xf32>
    %1 = vector.shape_cast %0 : vector<1x64x4xf32> to vector<64x4xf32>
    %2 = arith.truncf %1 : vector<64x4xf32> to vector<64x4xbf16>
    %c0_2 = arith.constant 0 : index
    %c0_3 = arith.constant 0 : index
    %3 = vector.load %arg2[%c0_2, %c0_3] : memref<128x64xbf16, #tpu.memory_space<vmem>>, vector<128x64xbf16>
    %cst = arith.constant dense<0.000000e+00> : vector<128x4xf32>
    %4 = tpu.matmul %3, %2, %cst {dimension_numbers = #tpu.dot_dimension_numbers<[1], [0], [0], [1], [0, 0, 1, 1], [], []>} : vector<128x64xbf16>, vector<64x4xbf16>, vector<128x4xf32> -> vector<128x4xf32>
    %c0_4 = arith.constant 0 : index
    %c0_5 = arith.constant 0 : index
    %5 = vector.load %arg3[%c0_4, %c0_5] : memref<128x1xf32, #tpu.memory_space<vmem>>, vector<128x1xf32>
    %6 = vector.broadcast %5 : vector<128x1xf32> to vector<128x4xf32>
    %7 = arith.addf %4, %6 : vector<128x4xf32>
    %cst_6 = arith.constant 0.000000e+00 : f32
    %8 = vector.broadcast %cst_6 : f32 to vector<128x4xf32>
    %9 = arith.maximumf %7, %8 : vector<128x4xf32>
    %10 = vector.extract_strided_slice %9 {offsets = [0, 0], sizes = [32, 4], strides = [1, 1]} : vector<128x4xf32> to vector<32x4xf32>
    %c0_7 = arith.constant 0 : index
    %c0_8 = arith.constant 0 : index
    %11 = vector.load %arg11[%c0_7, %c0_8] : memref<32x16xf32, #tpu.memory_space<vmem>>, vector<32x4xf32>
    tpu.vector_store %arg11[%c0_7, %c0_8], %10 {strides = array<i32>} : memref<32x16xf32, #tpu.memory_space<vmem>>, vector<32x4xf32>,
    %12 = vector.extract_strided_slice %9 {offsets = [32, 0], sizes = [32, 4], strides = [1, 1]} : vector<128x4xf32> to vector<32x4xf32>
    %c0_9 = arith.constant 0 : index
    %c4 = arith.constant 4 : index
    %13 = vector.load %arg11[%c0_9, %c4] : memref<32x16xf32, #tpu.memory_space<vmem>>, vector<32x4xf32>
    tpu.vector_store %arg11[%c0_9, %c4], %12 {strides = array<i32>} : memref<32x16xf32, #tpu.memory_space<vmem>>, vector<32x4xf32>,
    %14 = vector.extract_strided_slice %9 {offsets = [64, 0], sizes = [32, 4], strides = [1, 1]} : vector<128x4xf32> to vector<32x4xf32>
    %c0_10 = arith.constant 0 : index
    %c8 = arith.constant 8 : index
    %15 = vector.load %arg11[%c0_10, %c8] : memref<32x16xf32, #tpu.memory_space<vmem>>, vector<32x4xf32>
    tpu.vector_store %arg11[%c0_10, %c8], %14 {strides = array<i32>} : memref<32x16xf32, #tpu.memory_space<vmem>>, vector<32x4xf32>,
    %16 = vector.extract_strided_slice %9 {offsets = [96, 0], sizes = [32, 4], strides = [1, 1]} : vector<128x4xf32> to vector<32x4xf32>
    %c0_11 = arith.constant 0 : index
    %c12 = arith.constant 12 : index
    %17 = vector.load %arg11[%c0_11, %c12] : memref<32x16xf32, #tpu.memory_space<vmem>>, vector<32x4xf32>
    tpu.vector_store %arg11[%c0_11, %c12], %16 {strides = array<i32>} : memref<32x16xf32, #tpu.memory_space<vmem>>, vector<32x4xf32>,
    %c0_12 = arith.constant 0 : index
    %c0_13 = arith.constant 0 : index
    %18 = vector.load %arg11[%c0_12, %c0_13] : memref<32x16xf32, #tpu.memory_space<vmem>>, vector<32x16xf32>
    %19 = arith.truncf %18 : vector<32x16xf32> to vector<32x16xbf16>
    %c0_14 = arith.constant 0 : index
    %c0_15 = arith.constant 0 : index
    %20 = vector.load %arg4[%c0_14, %c0_15] : memref<800x32xbf16, #tpu.memory_space<vmem>>, vector<800x32xbf16>
    %cst_16 = arith.constant dense<0.000000e+00> : vector<800x16xf32>
    %21 = tpu.matmul %20, %19, %cst_16 {dimension_numbers = #tpu.dot_dimension_numbers<[1], [0], [0], [1], [0, 0, 1, 1], [], []>} : vector<800x32xbf16>, vector<32x16xbf16>, vector<800x16xf32> -> vector<800x16xf32>
    %c0_17 = arith.constant 0 : index
    %c0_18 = arith.constant 0 : index
    %22 = vector.load %arg5[%c0_17, %c0_18] : memref<800x1xf32, #tpu.memory_space<vmem>>, vector<800x1xf32>
    %23 = vector.broadcast %22 : vector<800x1xf32> to vector<800x16xf32>
    %24 = arith.addf %21, %23 : vector<800x16xf32>
    %cst_19 = arith.constant 0.000000e+00 : f32
    %25 = vector.broadcast %cst_19 : f32 to vector<800x16xf32>
    %26 = arith.maximumf %24, %25 : vector<800x16xf32>
    %27 = vector.extract_strided_slice %26 {offsets = [0, 0], sizes = [32, 16], strides = [1, 1]} : vector<800x16xf32> to vector<32x16xf32>
    %c0_20 = arith.constant 0 : index
    %c0_21 = arith.constant 0 : index
    %28 = vector.load %arg12[%c0_20, %c0_21] : memref<32x400xf32, #tpu.memory_space<vmem>>, vector<32x16xf32>
    tpu.vector_store %arg12[%c0_20, %c0_21], %27 {strides = array<i32>} : memref<32x400xf32, #tpu.memory_space<vmem>>, vector<32x16xf32>,
    %29 = vector.extract_strided_slice %26 {offsets = [32, 0], sizes = [32, 16], strides = [1, 1]} : vector<800x16xf32> to vector<32x16xf32>
    %c0_22 = arith.constant 0 : index
    %c16 = arith.constant 16 : index
    %30 = vector.load %arg12[%c0_22, %c16] : memref<32x400xf32, #tpu.memory_space<vmem>>, vector<32x16xf32>
    tpu.vector_store %arg12[%c0_22, %c16], %29 {strides = array<i32>} : memref<32x400xf32, #tpu.memory_space<vmem>>, vector<32x16xf32>,
    %31 = vector.extract_strided_slice %26 {offsets = [64, 0], sizes = [32, 16], strides = [1, 1]} : vector<800x16xf32> to vector<32x16xf32>
    %c0_23 = arith.constant 0 : index
    %c32 = arith.constant 32 : index
    %32 = vector.load %arg12[%c0_23, %c32] : memref<32x400xf32, #tpu.memory_space<vmem>>, vector<32x16xf32>
    tpu.vector_store %arg12[%c0_23, %c32], %31 {strides = array<i32>} : memref<32x400xf32, #tpu.memory_space<vmem>>, vector<32x16xf32>,
    %33 = vector.extract_strided_slice %26 {offsets = [96, 0], sizes = [32, 16], strides = [1, 1]} : vector<800x16xf32> to vector<32x16xf32>
    %c0_24 = arith.constant 0 : index
    %c48 = arith.constant 48 : index
    %34 = vector.load %arg12[%c0_24, %c48] : memref<32x400xf32, #tpu.memory_space<vmem>>, vector<32x16xf32>
    tpu.vector_store %arg12[%c0_24, %c48], %33 {strides = array<i32>} : memref<32x400xf32, #tpu.memory_space<vmem>>, vector<32x16xf32>,
    %35 = vector.extract_strided_slice %26 {offsets = [128, 0], sizes = [32, 16], strides = [1, 1]} : vector<800x16xf32> to vector<32x16xf32>
    %c0_25 = arith.constant 0 : index
    %c64 = arith.constant 64 : index
    %36 = vector.load %arg12[%c0_25, %c64] : memref<32x400xf32, #tpu.memory_space<vmem>>, vector<32x16xf32>
    tpu.vector_store %arg12[%c0_25, %c64], %35 {strides = array<i32>} : memref<32x400xf32, #tpu.memory_space<vmem>>, vector<32x16xf32>,
    %37 = vector.extract_strided_slice %26 {offsets = [160, 0], sizes = [32, 16], strides = [1, 1]} : vector<800x16xf32> to vector<32x16xf32>
    %c0_26 = arith.constant 0 : index
    %c80 = arith.constant 80 : index
    %38 = vector.load %arg12[%c0_26, %c80] : memref<32x400xf32, #tpu.memory_space<vmem>>, vector<32x16xf32>
    tpu.vector_store %arg12[%c0_26, %c80], %37 {strides = array<i32>} : memref<32x400xf32, #tpu.memory_space<vmem>>, vector<32x16xf32>,
    %39 = vector.extract_strided_slice %26 {offsets = [192, 0], sizes = [32, 16], strides = [1, 1]} : vector<800x16xf32> to vector<32x16xf32>
    %c0_27 = arith.constant 0 : index
    %c96 = arith.constant 96 : index
    %40 = vector.load %arg12[%c0_27, %c96] : memref<32x400xf32, #tpu.memory_space<vmem>>, vector<32x16xf32>
    tpu.vector_store %arg12[%c0_27, %c96], %39 {strides = array<i32>} : memref<32x400xf32, #tpu.memory_space<vmem>>, vector<32x16xf32>,
    %41 = vector.extract_strided_slice %26 {offsets = [224, 0], sizes = [32, 16], strides = [1, 1]} : vector<800x16xf32> to vector<32x16xf32>
    %c0_28 = arith.constant 0 : index
    %c112 = arith.constant 112 : index
    %42 = vector.load %arg12[%c0_28, %c112] : memref<32x400xf32, #tpu.memory_space<vmem>>, vector<32x16xf32>
    tpu.vector_store %arg12[%c0_28, %c112], %41 {strides = array<i32>} : memref<32x400xf32, #tpu.memory_space<vmem>>, vector<32x16xf32>,
    %43 = vector.extract_strided_slice %26 {offsets = [256, 0], sizes = [32, 16], strides = [1, 1]} : vector<800x16xf32> to vector<32x16xf32>
    %c0_29 = arith.constant 0 : index
    %c128 = arith.constant 128 : index
    %44 = vector.load %arg12[%c0_29, %c128] : memref<32x400xf32, #tpu.memory_space<vmem>>, vector<32x16xf32>
    tpu.vector_store %arg12[%c0_29, %c128], %43 {strides = array<i32>} : memref<32x400xf32, #tpu.memory_space<vmem>>, vector<32x16xf32>,
    %45 = vector.extract_strided_slice %26 {offsets = [288, 0], sizes = [32, 16], strides = [1, 1]} : vector<800x16xf32> to vector<32x16xf32>
    %c0_30 = arith.constant 0 : index
    %c144 = arith.constant 144 : index
    %46 = vector.load %arg12[%c0_30, %c144] : memref<32x400xf32, #tpu.memory_space<vmem>>, vector<32x16xf32>
    tpu.vector_store %arg12[%c0_30, %c144], %45 {strides = array<i32>} : memref<32x400xf32, #tpu.memory_space<vmem>>, vector<32x16xf32>,
    %47 = vector.extract_strided_slice %26 {offsets = [320, 0], sizes = [32, 16], strides = [1, 1]} : vector<800x16xf32> to vector<32x16xf32>
    %c0_31 = arith.constant 0 : index
    %c160 = arith.constant 160 : index
    %48 = vector.load %arg12[%c0_31, %c160] : memref<32x400xf32, #tpu.memory_space<vmem>>, vector<32x16xf32>
    tpu.vector_store %arg12[%c0_31, %c160], %47 {strides = array<i32>} : memref<32x400xf32, #tpu.memory_space<vmem>>, vector<32x16xf32>,
    %49 = vector.extract_strided_slice %26 {offsets = [352, 0], sizes = [32, 16], strides = [1, 1]} : vector<800x16xf32> to vector<32x16xf32>
    %c0_32 = arith.constant 0 : index
    %c176 = arith.constant 176 : index
    %50 = vector.load %arg12[%c0_32, %c176] : memref<32x400xf32, #tpu.memory_space<vmem>>, vector<32x16xf32>
    tpu.vector_store %arg12[%c0_32, %c176], %49 {strides = array<i32>} : memref<32x400xf32, #tpu.memory_space<vmem>>, vector<32x16xf32>,
    %51 = vector.extract_strided_slice %26 {offsets = [384, 0], sizes = [32, 16], strides = [1, 1]} : vector<800x16xf32> to vector<32x16xf32>
    %c0_33 = arith.constant 0 : index
    %c192 = arith.constant 192 : index
    %52 = vector.load %arg12[%c0_33, %c192] : memref<32x400xf32, #tpu.memory_space<vmem>>, vector<32x16xf32>
    tpu.vector_store %arg12[%c0_33, %c192], %51 {strides = array<i32>} : memref<32x400xf32, #tpu.memory_space<vmem>>, vector<32x16xf32>,
    %53 = vector.extract_strided_slice %26 {offsets = [416, 0], sizes = [32, 16], strides = [1, 1]} : vector<800x16xf32> to vector<32x16xf32>
    %c0_34 = arith.constant 0 : index
    %c208 = arith.constant 208 : index
    %54 = vector.load %arg12[%c0_34, %c208] : memref<32x400xf32, #tpu.memory_space<vmem>>, vector<32x16xf32>
    tpu.vector_store %arg12[%c0_34, %c208], %53 {strides = array<i32>} : memref<32x400xf32, #tpu.memory_space<vmem>>, vector<32x16xf32>,
    %55 = vector.extract_strided_slice %26 {offsets = [448, 0], sizes = [32, 16], strides = [1, 1]} : vector<800x16xf32> to vector<32x16xf32>
    %c0_35 = arith.constant 0 : index
    %c224 = arith.constant 224 : index
    %56 = vector.load %arg12[%c0_35, %c224] : memref<32x400xf32, #tpu.memory_space<vmem>>, vector<32x16xf32>
    tpu.vector_store %arg12[%c0_35, %c224], %55 {strides = array<i32>} : memref<32x400xf32, #tpu.memory_space<vmem>>, vector<32x16xf32>,
    %57 = vector.extract_strided_slice %26 {offsets = [480, 0], sizes = [32, 16], strides = [1, 1]} : vector<800x16xf32> to vector<32x16xf32>
    %c0_36 = arith.constant 0 : index
    %c240 = arith.constant 240 : index
    %58 = vector.load %arg12[%c0_36, %c240] : memref<32x400xf32, #tpu.memory_space<vmem>>, vector<32x16xf32>
    tpu.vector_store %arg12[%c0_36, %c240], %57 {strides = array<i32>} : memref<32x400xf32, #tpu.memory_space<vmem>>, vector<32x16xf32>,
    %59 = vector.extract_strided_slice %26 {offsets = [512, 0], sizes = [32, 16], strides = [1, 1]} : vector<800x16xf32> to vector<32x16xf32>
    %c0_37 = arith.constant 0 : index
    %c256 = arith.constant 256 : index
    %60 = vector.load %arg12[%c0_37, %c256] : memref<32x400xf32, #tpu.memory_space<vmem>>, vector<32x16xf32>
    tpu.vector_store %arg12[%c0_37, %c256], %59 {strides = array<i32>} : memref<32x400xf32, #tpu.memory_space<vmem>>, vector<32x16xf32>,
    %61 = vector.extract_strided_slice %26 {offsets = [544, 0], sizes = [32, 16], strides = [1, 1]} : vector<800x16xf32> to vector<32x16xf32>
    %c0_38 = arith.constant 0 : index
    %c272 = arith.constant 272 : index
    %62 = vector.load %arg12[%c0_38, %c272] : memref<32x400xf32, #tpu.memory_space<vmem>>, vector<32x16xf32>
    tpu.vector_store %arg12[%c0_38, %c272], %61 {strides = array<i32>} : memref<32x400xf32, #tpu.memory_space<vmem>>, vector<32x16xf32>,
    %63 = vector.extract_strided_slice %26 {offsets = [576, 0], sizes = [32, 16], strides = [1, 1]} : vector<800x16xf32> to vector<32x16xf32>
    %c0_39 = arith.constant 0 : index
    %c288 = arith.constant 288 : index
    %64 = vector.load %arg12[%c0_39, %c288] : memref<32x400xf32, #tpu.memory_space<vmem>>, vector<32x16xf32>
    tpu.vector_store %arg12[%c0_39, %c288], %63 {strides = array<i32>} : memref<32x400xf32, #tpu.memory_space<vmem>>, vector<32x16xf32>,
    %65 = vector.extract_strided_slice %26 {offsets = [608, 0], sizes = [32, 16], strides = [1, 1]} : vector<800x16xf32> to vector<32x16xf32>
    %c0_40 = arith.constant 0 : index
    %c304 = arith.constant 304 : index
    %66 = vector.load %arg12[%c0_40, %c304] : memref<32x400xf32, #tpu.memory_space<vmem>>, vector<32x16xf32>
    tpu.vector_store %arg12[%c0_40, %c304], %65 {strides = array<i32>} : memref<32x400xf32, #tpu.memory_space<vmem>>, vector<32x16xf32>,
    %67 = vector.extract_strided_slice %26 {offsets = [640, 0], sizes = [32, 16], strides = [1, 1]} : vector<800x16xf32> to vector<32x16xf32>
    %c0_41 = arith.constant 0 : index
    %c320 = arith.constant 320 : index
    %68 = vector.load %arg12[%c0_41, %c320] : memref<32x400xf32, #tpu.memory_space<vmem>>, vector<32x16xf32>
    tpu.vector_store %arg12[%c0_41, %c320], %67 {strides = array<i32>} : memref<32x400xf32, #tpu.memory_space<vmem>>, vector<32x16xf32>,
    %69 = vector.extract_strided_slice %26 {offsets = [672, 0], sizes = [32, 16], strides = [1, 1]} : vector<800x16xf32> to vector<32x16xf32>
    %c0_42 = arith.constant 0 : index
    %c336 = arith.constant 336 : index
    %70 = vector.load %arg12[%c0_42, %c336] : memref<32x400xf32, #tpu.memory_space<vmem>>, vector<32x16xf32>
    tpu.vector_store %arg12[%c0_42, %c336], %69 {strides = array<i32>} : memref<32x400xf32, #tpu.memory_space<vmem>>, vector<32x16xf32>,
    %71 = vector.extract_strided_slice %26 {offsets = [704, 0], sizes = [32, 16], strides = [1, 1]} : vector<800x16xf32> to vector<32x16xf32>
    %c0_43 = arith.constant 0 : index
    %c352 = arith.constant 352 : index
    %72 = vector.load %arg12[%c0_43, %c352] : memref<32x400xf32, #tpu.memory_space<vmem>>, vector<32x16xf32>
    tpu.vector_store %arg12[%c0_43, %c352], %71 {strides = array<i32>} : memref<32x400xf32, #tpu.memory_space<vmem>>, vector<32x16xf32>,
    %73 = vector.extract_strided_slice %26 {offsets = [736, 0], sizes = [32, 16], strides = [1, 1]} : vector<800x16xf32> to vector<32x16xf32>
    %c0_44 = arith.constant 0 : index
    %c368 = arith.constant 368 : index
    %74 = vector.load %arg12[%c0_44, %c368] : memref<32x400xf32, #tpu.memory_space<vmem>>, vector<32x16xf32>
    tpu.vector_store %arg12[%c0_44, %c368], %73 {strides = array<i32>} : memref<32x400xf32, #tpu.memory_space<vmem>>, vector<32x16xf32>,
    %75 = vector.extract_strided_slice %26 {offsets = [768, 0], sizes = [32, 16], strides = [1, 1]} : vector<800x16xf32> to vector<32x16xf32>
    %c0_45 = arith.constant 0 : index
    %c384 = arith.constant 384 : index
    %76 = vector.load %arg12[%c0_45, %c384] : memref<32x400xf32, #tpu.memory_space<vmem>>, vector<32x16xf32>
    tpu.vector_store %arg12[%c0_45, %c384], %75 {strides = array<i32>} : memref<32x400xf32, #tpu.memory_space<vmem>>, vector<32x16xf32>,
    %c0_46 = arith.constant 0 : index
    %c0_47 = arith.constant 0 : index
    %77 = vector.load %arg12[%c0_46, %c0_47] : memref<32x400xf32, #tpu.memory_space<vmem>>, vector<32x400xf32>
    %78 = arith.truncf %77 : vector<32x400xf32> to vector<32x400xbf16>
    %c0_48 = arith.constant 0 : index
    %c0_49 = arith.constant 0 : index
    %79 = vector.load %arg6[%c0_48, %c0_49] : memref<128x32xbf16, #tpu.memory_space<vmem>>, vector<128x32xbf16>
    %cst_50 = arith.constant dense<0.000000e+00> : vector<128x400xf32>
    %80 = tpu.matmul %79, %78, %cst_50 {dimension_numbers = #tpu.dot_dimension_numbers<[1], [0], [0], [1], [0, 0, 1, 1], [], []>} : vector<128x32xbf16>, vector<32x400xbf16>, vector<128x400xf32> -> vector<128x400xf32>
    %c0_51 = arith.constant 0 : index
    %c0_52 = arith.constant 0 : index
    %81 = vector.load %arg7[%c0_51, %c0_52] : memref<128x1xf32, #tpu.memory_space<vmem>>, vector<128x1xf32>
    %82 = vector.broadcast %81 : vector<128x1xf32> to vector<128x400xf32>
    %83 = arith.addf %80, %82 : vector<128x400xf32>
    %cst_53 = arith.constant 0.000000e+00 : f32
    %84 = vector.broadcast %cst_53 : f32 to vector<128x400xf32>
    %85 = arith.maximumf %83, %84 : vector<128x400xf32>
    %86 = vector.extract_strided_slice %85 {offsets = [0, 0], sizes = [32, 400], strides = [1, 1]} : vector<128x400xf32> to vector<32x400xf32>
    %c0_54 = arith.constant 0 : index
    %c0_55 = arith.constant 0 : index
    %87 = vector.load %arg13[%c0_54, %c0_55] : memref<32x1600xf32, #tpu.memory_space<vmem>>, vector<32x400xf32>
    tpu.vector_store %arg13[%c0_54, %c0_55], %86 {strides = array<i32>} : memref<32x1600xf32, #tpu.memory_space<vmem>>, vector<32x400xf32>,
    %88 = vector.extract_strided_slice %85 {offsets = [32, 0], sizes = [32, 400], strides = [1, 1]} : vector<128x400xf32> to vector<32x400xf32>
    %c0_56 = arith.constant 0 : index
    %c400 = arith.constant 400 : index
    %89 = vector.load %arg13[%c0_56, %c400] : memref<32x1600xf32, #tpu.memory_space<vmem>>, vector<32x400xf32>
    tpu.vector_store %arg13[%c0_56, %c400], %88 {strides = array<i32>} : memref<32x1600xf32, #tpu.memory_space<vmem>>, vector<32x400xf32>,
    %90 = vector.extract_strided_slice %85 {offsets = [64, 0], sizes = [32, 400], strides = [1, 1]} : vector<128x400xf32> to vector<32x400xf32>
    %c0_57 = arith.constant 0 : index
    %c800 = arith.constant 800 : index
    %91 = vector.load %arg13[%c0_57, %c800] : memref<32x1600xf32, #tpu.memory_space<vmem>>, vector<32x400xf32>
    tpu.vector_store %arg13[%c0_57, %c800], %90 {strides = array<i32>} : memref<32x1600xf32, #tpu.memory_space<vmem>>, vector<32x400xf32>,
    %92 = vector.extract_strided_slice %85 {offsets = [96, 0], sizes = [32, 400], strides = [1, 1]} : vector<128x400xf32> to vector<32x400xf32>
    %c0_58 = arith.constant 0 : index
    %c1200 = arith.constant 1200 : index
    %93 = vector.load %arg13[%c0_58, %c1200] : memref<32x1600xf32, #tpu.memory_space<vmem>>, vector<32x400xf32>
    tpu.vector_store %arg13[%c0_58, %c1200], %92 {strides = array<i32>} : memref<32x1600xf32, #tpu.memory_space<vmem>>, vector<32x400xf32>,
    %c0_59 = arith.constant 0 : index
    %c0_60 = arith.constant 0 : index
    %94 = vector.load %arg13[%c0_59, %c0_60] : memref<32x1600xf32, #tpu.memory_space<vmem>>, vector<32x1600xf32>
    %95 = arith.truncf %94 : vector<32x1600xf32> to vector<32x1600xbf16>
    %c0_61 = arith.constant 0 : index
    %c0_62 = arith.constant 0 : index
    %96 = vector.load %arg8[%c0_61, %c0_62] : memref<18x32xbf16, #tpu.memory_space<vmem>>, vector<18x32xbf16>
    %cst_63 = arith.constant dense<0.000000e+00> : vector<18x1600xf32>
    %97 = tpu.matmul %96, %95, %cst_63 {dimension_numbers = #tpu.dot_dimension_numbers<[1], [0], [0], [1], [0, 0, 1, 1], [], []>} : vector<18x32xbf16>, vector<32x1600xbf16>, vector<18x1600xf32> -> vector<18x1600xf32>
    %c0_64 = arith.constant 0 : index
    %c0_65 = arith.constant 0 : index
    %98 = vector.load %arg9[%c0_64, %c0_65] : memref<18x1xf32, #tpu.memory_space<vmem>>, vector<18x1xf32>
    %99 = vector.broadcast %98 : vector<18x1xf32> to vector<18x1600xf32>
    %100 = arith.addf %97, %99 : vector<18x1600xf32>
    %cst_66 = arith.constant 0.000000e+00 : f32
    %101 = vector.broadcast %cst_66 : f32 to vector<18x1600xf32>
    %102 = arith.maximumf %100, %101 : vector<18x1600xf32>
    %c0_67 = arith.constant 0 : index
    %c0_68 = arith.constant 0 : index
    %c0_69 = arith.constant 0 : index
    %103 = vector.load %arg10[%c0_67, %c0_68, %c0_69] : memref<1x18x1600xf32, #tpu.memory_space<vmem>>, vector<1x18x1600xf32>
    %104 = vector.shape_cast %103 : vector<1x18x1600xf32> to vector<18x1600xf32>
    %105 = vector.shape_cast %102 : vector<18x1600xf32> to vector<1x18x1600xf32>
    tpu.vector_store %arg10[%c0_67, %c0_68, %c0_69], %105 {strides = array<i32>} : memref<1x18x1600xf32, #tpu.memory_space<vmem>>, vector<1x18x1600xf32>,
    return
  }
  func.func @transform_0(%arg0: i32) -> (i32, i32, i32) {
    %c0_i32 = arith.constant 0 : i32
    %c0_i32_0 = arith.constant 0 : i32
    %c0_i32_1 = arith.constant 0 : i32
    return %arg0, %c0_i32, %c0_i32_0 : i32, i32, i32
  }
  func.func @transform_1(%arg0: i32) -> (i32, i32) {
    %c0_i32 = arith.constant 0 : i32
    %c0_i32_0 = arith.constant 0 : i32
    %c0_i32_1 = arith.constant 0 : i32
    return %c0_i32, %c0_i32_0 : i32, i32
  }
  func.func @transform_2(%arg0: i32) -> (i32, i32) {
    %c0_i32 = arith.constant 0 : i32
    %c0_i32_0 = arith.constant 0 : i32
    %c0_i32_1 = arith.constant 0 : i32
    return %c0_i32, %c0_i32_0 : i32, i32
  }
  func.func @transform_3(%arg0: i32) -> (i32, i32) {
    %c0_i32 = arith.constant 0 : i32
    %c0_i32_0 = arith.constant 0 : i32
    %c0_i32_1 = arith.constant 0 : i32
    return %c0_i32, %c0_i32_0 : i32, i32
  }
  func.func @transform_4(%arg0: i32) -> (i32, i32) {
    %c0_i32 = arith.constant 0 : i32
    %c0_i32_0 = arith.constant 0 : i32
    %c0_i32_1 = arith.constant 0 : i32
    return %c0_i32, %c0_i32_0 : i32, i32
  }
  func.func @transform_5(%arg0: i32) -> (i32, i32) {
    %c0_i32 = arith.constant 0 : i32
    %c0_i32_0 = arith.constant 0 : i32
    %c0_i32_1 = arith.constant 0 : i32
    return %c0_i32, %c0_i32_0 : i32, i32
  }
  func.func @transform_6(%arg0: i32) -> (i32, i32) {
    %c0_i32 = arith.constant 0 : i32
    %c0_i32_0 = arith.constant 0 : i32
    %c0_i32_1 = arith.constant 0 : i32
    return %c0_i32, %c0_i32_0 : i32, i32
  }
  func.func @transform_7(%arg0: i32) -> (i32, i32) {
    %c0_i32 = arith.constant 0 : i32
    %c0_i32_0 = arith.constant 0 : i32
    %c0_i32_1 = arith.constant 0 : i32
    return %c0_i32, %c0_i32_0 : i32, i32
  }
  func.func @transform_8(%arg0: i32) -> (i32, i32) {
    %c0_i32 = arith.constant 0 : i32
    %c0_i32_0 = arith.constant 0 : i32
    %c0_i32_1 = arith.constant 0 : i32
    return %c0_i32, %c0_i32_0 : i32, i32
  }
  func.func @transform_9(%arg0: i32) -> (i32, i32, i32) {
    %c0_i32 = arith.constant 0 : i32
    %c0_i32_0 = arith.constant 0 : i32
    %c0_i32_1 = arith.constant 0 : i32
    return %arg0, %c0_i32, %c0_i32_0 : i32, i32, i32
  }
}

</mosaic_0001>

<llo_original>
// kernel: decoder_forward.1
$region0: #{decoder_forward.1}
  #allocation0 [shape = 'u32[]', space=smem, size = 0x4, offset = 0x4, fixed_abs, tag = 'smem constant byte address 0x4 - core index']
  #allocation1 [shape = 'u32[144,128]{1,0:T(1,128)}', space=vmem, size = 0x12000, scoped, tag = 'internal scratch']
  #allocation2 [shape = 'f32[32,16]{1,0:T(8,128)}', space=vmem, size = 0x4000, scoped, tag = 'scratch operand']
  #allocation3 [shape = 'f32[32,400]{1,0:T(8,128)}', space=vmem, size = 0x10000, scoped, tag = 'scratch operand']
  #allocation4 [shape = 'f32[32,1600]{1,0:T(8,128)}', space=vmem, size = 0x34000, scoped, tag = 'scratch operand']
  %s0 = inlined_call_operand.vmem [shape: f32[2,64,4], index: 0, kind: input, shape index: {}]
  %s1 = inlined_call_operand.vmem [shape: bf16[128,64], index: 1, kind: input, shape index: {}]
  %s2 = inlined_call_operand.vmem [shape: f32[128,1], index: 2, kind: input, shape index: {}]
  %s3 = inlined_call_operand.vmem [shape: bf16[800,32], index: 3, kind: input, shape index: {}]
  %s4 = inlined_call_operand.vmem [shape: f32[800,1], index: 4, kind: input, shape index: {}]
  %s5 = inlined_call_operand.vmem [shape: bf16[128,32], index: 5, kind: input, shape index: {}]
  %s6 = inlined_call_operand.vmem [shape: f32[128,1], index: 6, kind: input, shape index: {}]
  %s7 = inlined_call_operand.vmem [shape: bf16[18,32], index: 7, kind: input, shape index: {}]
  %s8 = inlined_call_operand.vmem [shape: f32[18,1], index: 8, kind: input, shape index: {}]
  %s9 = inlined_call_operand.vmem [shape: f32[2,18,1600], index: 9, kind: output, shape index: {}]
  %s10 = sld [smem:[#allocation0]]
  $region69: #{decoder_forward.1} parent=0
    _
  %s12 = ssub.s32 1, %s10
  %s13 = scalar_select 0, %s12, %s10
  loop: start=0, step=1, limit=4
  $region2: #{decoder_forward.1} parent=0 // loop_pre_header
    _
  $region3: #{decoder_forward.1} parent=0 // loop_header
    %s15 = sphi 0, %s19
    %p16 = scmp.ge.s32.totalorder %s15, 4
    %s25 = sphi 0, %s27
    %s28 = sphi 0, %s25
    %s29 = sphi 0, %s28
    %s45 = sphi 0, %s29
    %s49 = sphi 0, %s49
    %s51 = sphi 0, %s49
    %s52 = sphi 0, %s51
    %s66 = sphi 0, %s52
    %s70 = sphi 0, %s70
    %s72 = sphi 0, %s70
    %s73 = sphi 0, %s72
    %s87 = sphi 0, %s73
    %s91 = sphi 0, %s91
    %s93 = sphi 0, %s91
    %s94 = sphi 0, %s93
    %s108 = sphi 0, %s94
    %s112 = sphi 0, %s112
    %s114 = sphi 0, %s112
    %s115 = sphi 0, %s114
    %s129 = sphi 0, %s115
    %s133 = sphi 0, %s133
    %s135 = sphi 0, %s133
    %s136 = sphi 0, %s135
    %s150 = sphi 0, %s136
    %s154 = sphi 0, %s154
    %s156 = sphi 0, %s154
    %s157 = sphi 0, %s156
    %s171 = sphi 0, %s157
    %s175 = sphi 0, %s175
    %s177 = sphi 0, %s175
    %s178 = sphi 0, %s177
    %s192 = sphi 0, %s178
    %s196 = sphi 0, %s196
    %s198 = sphi 0, %s196
    %s199 = sphi 0, %s198
    %s213 = sphi 0, %s199
    %s219 = sphi 0, %s221
    %s222 = sphi 0, %s219
    %s223 = sphi 0, %s222
    %s239 = sphi 0, %s223
  $region4: #{decoder_forward.1} parent=0 // loop_header_branch
    %18 = sbr.rel (%p16) target = $region8
  $region5: #{decoder_forward.1} parent=0 // loop_body
    %s20 = ssub.s32 %s15, 1
    %s21 = ssub.s32 %s15, 2
    %s22 = sadd.s32 %s15, 1
    %s23 = ssub.s32 %s15, %s22
    %p24 = scmp.eq.s32.totalorder %s23, 0
    %s26 = sadd.s32 %s25, 1
    %s27 = scalar_select %p24, %s25, %s26
    %p30 = pneg %p24
    %p31 = scmp.eq.s32.totalorder %s15, 1
    %p32 = por %p30, %p31
    %p33 = scmp.ne.s32.totalorder %s25, %s28
    %p34 = scmp.eq.s32.totalorder %s15, 0
    %p35 = por %p33, %p34
    %p36 = scmp.ne.s32.totalorder %s25, %s28
    %p37 = scmp.eq.s32.totalorder %s20, 1
    %p38 = por %p36, %p37
    %p39 = scmp.ne.s32.totalorder %s28, %s29
    %p40 = scmp.eq.s32.totalorder %s20, 0
    %p41 = por %p39, %p40
    %p42 = scmp.ne.s32.totalorder %s28, %s29
    %p43 = scmp.eq.s32.totalorder %s21, 1
    %p44 = por %p42, %p43
    %p46 = scmp.ne.s32.totalorder %s29, %s45
    %p47 = scmp.eq.s32.totalorder %s21, 0
    %p48 = por %p46, %p47
    %s50 = sadd.s32 %s49, 1
    %p53 = scmp.eq.s32.totalorder %s15, 1
    %p54 = scmp.ne.s32.totalorder %s49, %s51
    %p55 = scmp.eq.s32.totalorder %s15, 0
    %p56 = por %p54, %p55
    %p57 = scmp.ne.s32.totalorder %s49, %s51
    %p58 = scmp.eq.s32.totalorder %s20, 1
    %p59 = por %p57, %p58
    %p60 = scmp.ne.s32.totalorder %s51, %s52
    %p61 = scmp.eq.s32.totalorder %s20, 0
    %p62 = por %p60, %p61
    %p63 = scmp.ne.s32.totalorder %s51, %s52
    %p64 = scmp.eq.s32.totalorder %s21, 1
    %p65 = por %p63, %p64
    %p67 = scmp.ne.s32.totalorder %s52, %s66
    %p68 = scmp.eq.s32.totalorder %s21, 0
    %p69 = por %p67, %p68
    %s71 = sadd.s32 %s70, 1
    %p74 = scmp.eq.s32.totalorder %s15, 1
    %p75 = scmp.ne.s32.totalorder %s70, %s72
    %p76 = scmp.eq.s32.totalorder %s15, 0
    %p77 = por %p75, %p76
    %p78 = scmp.ne.s32.totalorder %s70, %s72
    %p79 = scmp.eq.s32.totalorder %s20, 1
    %p80 = por %p78, %p79
    %p81 = scmp.ne.s32.totalorder %s72, %s73
    %p82 = scmp.eq.s32.totalorder %s20, 0
    %p83 = por %p81, %p82
    %p84 = scmp.ne.s32.totalorder %s72, %s73
    %p85 = scmp.eq.s32.totalorder %s21, 1
    %p86 = por %p84, %p85
    %p88 = scmp.ne.s32.totalorder %s73, %s87
    %p89 = scmp.eq.s32.totalorder %s21, 0
    %p90 = por %p88, %p89
    %s92 = sadd.s32 %s91, 1
    %p95 = scmp.eq.s32.totalorder %s15, 1
    %p96 = scmp.ne.s32.totalorder %s91, %s93
    %p97 = scmp.eq.s32.totalorder %s15, 0
    %p98 = por %p96, %p97
    %p99 = scmp.ne.s32.totalorder %s91, %s93
    %p100 = scmp.eq.s32.totalorder %s20, 1
    %p101 = por %p99, %p100
    %p102 = scmp.ne.s32.totalorder %s93, %s94
    %p103 = scmp.eq.s32.totalorder %s20, 0
    %p104 = por %p102, %p103
    %p105 = scmp.ne.s32.totalorder %s93, %s94
    %p106 = scmp.eq.s32.totalorder %s21, 1
    %p107 = por %p105, %p106
    %p109 = scmp.ne.s32.totalorder %s94, %s108
    %p110 = scmp.eq.s32.totalorder %s21, 0
    %p111 = por %p109, %p110
    %s113 = sadd.s32 %s112, 1
    %p116 = scmp.eq.s32.totalorder %s15, 1
    %p117 = scmp.ne.s32.totalorder %s112, %s114
    %p118 = scmp.eq.s32.totalorder %s15, 0
    %p119 = por %p117, %p118
    %p120 = scmp.ne.s32.totalorder %s112, %s114
    %p121 = scmp.eq.s32.totalorder %s20, 1
    %p122 = por %p120, %p121
    %p123 = scmp.ne.s32.totalorder %s114, %s115
    %p124 = scmp.eq.s32.totalorder %s20, 0
    %p125 = por %p123, %p124
    %p126 = scmp.ne.s32.totalorder %s114, %s115
    %p127 = scmp.eq.s32.totalorder %s21, 1
    %p128 = por %p126, %p127
    %p130 = scmp.ne.s32.totalorder %s115, %s129
    %p131 = scmp.eq.s32.totalorder %s21, 0
    %p132 = por %p130, %p131
    %s134 = sadd.s32 %s133, 1
    %p137 = scmp.eq.s32.totalorder %s15, 1
    %p138 = scmp.ne.s32.totalorder %s133, %s135
    %p139 = scmp.eq.s32.totalorder %s15, 0
    %p140 = por %p138, %p139
    %p141 = scmp.ne.s32.totalorder %s133, %s135
    %p142 = scmp.eq.s32.totalorder %s20, 1
    %p143 = por %p141, %p142
    %p144 = scmp.ne.s32.totalorder %s135, %s136
    %p145 = scmp.eq.s32.totalorder %s20, 0
    %p146 = por %p144, %p145
    %p147 = scmp.ne.s32.totalorder %s135, %s136
    %p148 = scmp.eq.s32.totalorder %s21, 1
    %p149 = por %p147, %p148
    %p151 = scmp.ne.s32.totalorder %s136, %s150
    %p152 = scmp.eq.s32.totalorder %s21, 0
    %p153 = por %p151, %p152
    %s155 = sadd.s32 %s154, 1
    %p158 = scmp.eq.s32.totalorder %s15, 1
    %p159 = scmp.ne.s32.totalorder %s154, %s156
    %p160 = scmp.eq.s32.totalorder %s15, 0
    %p161 = por %p159, %p160
    %p162 = scmp.ne.s32.totalorder %s154, %s156
    %p163 = scmp.eq.s32.totalorder %s20, 1
    %p164 = por %p162, %p163
    %p165 = scmp.ne.s32.totalorder %s156, %s157
    %p166 = scmp.eq.s32.totalorder %s20, 0
    %p167 = por %p165, %p166
    %p168 = scmp.ne.s32.totalorder %s156, %s157
    %p169 = scmp.eq.s32.totalorder %s21, 1
    %p170 = por %p168, %p169
    %p172 = scmp.ne.s32.totalorder %s157, %s171
    %p173 = scmp.eq.s32.totalorder %s21, 0
    %p174 = por %p172, %p173
    %s176 = sadd.s32 %s175, 1
    %p179 = scmp.eq.s32.totalorder %s15, 1
    %p180 = scmp.ne.s32.totalorder %s175, %s177
    %p181 = scmp.eq.s32.totalorder %s15, 0
    %p182 = por %p180, %p181
    %p183 = scmp.ne.s32.totalorder %s175, %s177
    %p184 = scmp.eq.s32.totalorder %s20, 1
    %p185 = por %p183, %p184
    %p186 = scmp.ne.s32.totalorder %s177, %s178
    %p187 = scmp.eq.s32.totalorder %s20, 0
    %p188 = por %p186, %p187
    %p189 = scmp.ne.s32.totalorder %s177, %s178
    %p190 = scmp.eq.s32.totalorder %s21, 1
    %p191 = por %p189, %p190
    %p193 = scmp.ne.s32.totalorder %s178, %s192
    %p194 = scmp.eq.s32.totalorder %s21, 0
    %p195 = por %p193, %p194
    %s197 = sadd.s32 %s196, 1
    %p200 = scmp.eq.s32.totalorder %s15, 1
    %p201 = scmp.ne.s32.totalorder %s196, %s198
    %p202 = scmp.eq.s32.totalorder %s15, 0
    %p203 = por %p201, %p202
    %p204 = scmp.ne.s32.totalorder %s196, %s198
    %p205 = scmp.eq.s32.totalorder %s20, 1
    %p206 = por %p204, %p205
    %p207 = scmp.ne.s32.totalorder %s198, %s199
    %p208 = scmp.eq.s32.totalorder %s20, 0
    %p209 = por %p207, %p208
    %p210 = scmp.ne.s32.totalorder %s198, %s199
    %p211 = scmp.eq.s32.totalorder %s21, 1
    %p212 = por %p210, %p211
    %p214 = scmp.ne.s32.totalorder %s199, %s213
    %p215 = scmp.eq.s32.totalorder %s21, 0
    %p216 = por %p214, %p215
    %s217 = ssub.s32 %s15, %s22
    %p218 = scmp.eq.s32.totalorder %s217, 0
    %s220 = sadd.s32 %s219, 1
    %s221 = scalar_select %p218, %s219, %s220
    %p224 = pneg %p218
    %p225 = scmp.eq.s32.totalorder %s15, 1
    %p226 = por %p224, %p225
    %p227 = scmp.ne.s32.totalorder %s219, %s222
    %p228 = scmp.eq.s32.totalorder %s15, 0
    %p229 = por %p227, %p228
    %p230 = scmp.ne.s32.totalorder %s219, %s222
    %p231 = scmp.eq.s32.totalorder %s20, 1
    %p232 = por %p230, %p231
    %p233 = scmp.ne.s32.totalorder %s222, %s223
    %p234 = scmp.eq.s32.totalorder %s20, 0
    %p235 = por %p233, %p234
    %p236 = scmp.ne.s32.totalorder %s222, %s223
    %p237 = scmp.eq.s32.totalorder %s21, 1
    %p238 = por %p236, %p237
    %p240 = scmp.ne.s32.totalorder %s223, %s239
    %p241 = scmp.eq.s32.totalorder %s21, 0
    %p242 = por %p240, %p241
    %p243 = scmp.le.s32.totalorder 1, %s15
    %p244 = scmp.lt.s32.totalorder %s15, 3
    %p245 = pnand %p243, %p244
    %p246 = pneg %p245
    // Predicated region
    $region9: #{decoder_forward.1} parent=5 // pred_check
      _
    $region10: #{decoder_forward.1} parent=5 // pred_check_branch
      %248 = sbr.rel (%p245) target = $region12
    $region11: #{decoder_forward.1} parent=5 // pred_region
      %s249 = ssub.s32 %s15, 1
      // Predicated region
      $region13: #{decoder_forward.1} parent=11 // pred_check
        %p250 = pneg %p62
      $region14: #{decoder_forward.1} parent=11 // pred_check_branch
        %252 = sbr.rel (%p250) target = $region16
      $region15: #{decoder_forward.1} parent=11 // pred_region
        _
      $region16: #{decoder_forward.1} parent=11 // pred_fallthru
        _
      // Predicated region
      $region17: #{decoder_forward.1} parent=11 // pred_check
        %p253 = pneg %p83
      $region18: #{decoder_forward.1} parent=11 // pred_check_branch
        %255 = sbr.rel (%p253) target = $region20
      $region19: #{decoder_forward.1} parent=11 // pred_region
        _
      $region20: #{decoder_forward.1} parent=11 // pred_fallthru
        _
      // Predicated region
      $region21: #{decoder_forward.1} parent=11 // pred_check
        %p256 = pneg %p104
      $region22: #{decoder_forward.1} parent=11 // pred_check_branch
        %258 = sbr.rel (%p256) target = $region24
      $region23: #{decoder_forward.1} parent=11 // pred_region
        _
      $region24: #{decoder_forward.1} parent=11 // pred_fallthru
        _
      // Predicated region
      $region25: #{decoder_forward.1} parent=11 // pred_check
        %p259 = pneg %p125
      $region26: #{decoder_forward.1} parent=11 // pred_check_branch
        %261 = sbr.rel (%p259) target = $region28
      $region27: #{decoder_forward.1} parent=11 // pred_region
        _
      $region28: #{decoder_forward.1} parent=11 // pred_fallthru
        _
      // Predicated region
      $region29: #{decoder_forward.1} parent=11 // pred_check
        %p262 = pneg %p146
      $region30: #{decoder_forward.1} parent=11 // pred_check_branch
        %264 = sbr.rel (%p262) target = $region32
      $region31: #{decoder_forward.1} parent=11 // pred_region
        _
      $region32: #{decoder_forward.1} parent=11 // pred_fallthru
        _
      // Predicated region
      $region33: #{decoder_forward.1} parent=11 // pred_check
        %p265 = pneg %p167
      $region34: #{decoder_forward.1} parent=11 // pred_check_branch
        %267 = sbr.rel (%p265) target = $region36
      $region35: #{decoder_forward.1} parent=11 // pred_region
        _
      $region36: #{decoder_forward.1} parent=11 // pred_fallthru
        _
      // Predicated region
      $region37: #{decoder_forward.1} parent=11 // pred_check
        %p268 = pneg %p188
      $region38: #{decoder_forward.1} parent=11 // pred_check_branch
        %270 = sbr.rel (%p268) target = $region40
      $region39: #{decoder_forward.1} parent=11 // pred_region
        _
      $region40: #{decoder_forward.1} parent=11 // pred_fallthru
        _
      // Predicated region
      $region41: #{decoder_forward.1} parent=11 // pred_check
        %p271 = pneg %p209
      $region42: #{decoder_forward.1} parent=11 // pred_check_branch
        %273 = sbr.rel (%p271) target = $region44
      $region43: #{decoder_forward.1} parent=11 // pred_region
        _
      $region44: #{decoder_forward.1} parent=11 // pred_fallthru
        _
    $region12: #{decoder_forward.1} parent=5 // pred_fallthru
      _
    %p274 = scmp.lt.s32.totalorder %s15, 2
    // Predicated region
    $region45: #{decoder_forward.1} parent=5 // pred_check
      %p275 = pneg %p274
    $region46: #{decoder_forward.1} parent=5 // pred_check_branch
      %277 = sbr.rel (%p275) target = $region48
    $region47: #{decoder_forward.1} parent=5 // pred_region
      // Predicated region
      $region49: #{decoder_forward.1} parent=47 // pred_check
        %p278 = pneg %p35
      $region50: #{decoder_forward.1} parent=47 // pred_check_branch
        %280 = sbr.rel (%p278) target = $region52
      $region51: #{decoder_forward.1} parent=47 // pred_region
        %p281 = scmp.lt.s32.totalorder %s15, 1
        %s282 = scalar_select %p281, %s15, 1
        %s283 = smul.addr %s282, 8
        %s284 = smul.addr %s283, 8
        %s285 = scalar_lea.vmem %s0, %s284
      $region52: #{decoder_forward.1} parent=47 // pred_fallthru
        _
    $region48: #{decoder_forward.1} parent=5 // pred_fallthru
      _
    %p286 = scmp.le.s32.totalorder 1, %s15
    %p287 = scmp.lt.s32.totalorder %s15, 3
    %p288 = pnand %p286, %p287
    %p289 = pneg %p288
    // Predicated region
    $region53: #{decoder_forward.1} parent=5 // pred_check
      _
    $region54: #{decoder_forward.1} parent=5 // pred_check_branch
      %291 = sbr.rel (%p288) target = $region56
    $region55: #{decoder_forward.1} parent=5 // pred_region
      %s292 = ssub.s32 %s15, 1
      %p293 = scmp.lt.s32.totalorder %s20, 1
      %s294 = scalar_select %p293, %s20, 1
      %s295 = smul.addr %s294, 8
      %s296 = smul.addr %s295, 8
      %s297 = scalar_lea.vmem %s0, %s296
      %p298 = pneg %p41
      %p299 = pneg %p38
      %p300 = pneg %p62
      %p301 = pneg %p59
      %p302 = pneg %p83
      %p303 = pneg %p80
      %p304 = pneg %p104
      %p305 = pneg %p101
      %p306 = pneg %p125
      %p307 = pneg %p122
      %p308 = pneg %p146
      %p309 = pneg %p143
      %p310 = pneg %p167
      %p311 = pneg %p164
      %p312 = pneg %p188
      %p313 = pneg %p185
      %p314 = pneg %p209
      %p315 = pneg %p206
      %p316 = pneg %p235
      %p317 = pneg %p232
      %p318 = scmp.lt.s32.totalorder %s20, 1
      %s319 = scalar_select %p318, %s20, 1
      %s320 = smul.addr %s319, 39
      %s321 = smul.addr %s320, 8
      %s322 = scalar_lea.vmem %s9, %s321
      %p323 = scmp.lt.s32.totalorder %s20, 1
      %s324 = scalar_select %p323, %s20, 1
      %s325 = smul.addr %s324, 8
      %s326 = smul.addr %s325, 8
      %s327 = scalar_lea.vmem %s0, %s326
      %p328 = scmp.lt.s32.totalorder %s20, 1
      %s329 = scalar_select %p328, %s20, 1
      %s330 = smul.addr %s329, 39
      %s331 = smul.addr %s330, 8
      %s332 = scalar_lea.vmem %s9, %s331
      %v334 = vld [vmem:[%s327] sm:$0xff]
      %v335 = vld [vmem:[%s327 + $0x8] sm:$0xff]
      %v336 = vld [vmem:[%s327 + $0x10] sm:$0xff]
      %v337 = vld [vmem:[%s327 + $0x18] sm:$0xff]
      %v338 = vld [vmem:[%s327 + $0x20] sm:$0xff]
      %v339 = vld [vmem:[%s327 + $0x28] sm:$0xff]
      %v340 = vld [vmem:[%s327 + $0x30] sm:$0xff]
      %v341 = vld [vmem:[%s327 + $0x38] sm:$0xff]
      %v342 = vpack.c.bf16 %v335, %v334
      %v343 = vpack.c.bf16 %v337, %v336
      %v344 = vpack.c.bf16 %v339, %v338
      %v345 = vpack.c.bf16 %v341, %v340
      %v346 = vld [vmem:[%s1] sm:$0xf]
      %v347 = vld [vmem:[%s1 + $0x4] sm:$0xf]
      %v348 = vld [vmem:[%s1 + $0x8] sm:$0xf]
      %v349 = vld [vmem:[%s1 + $0xc] sm:$0xf]
      %v350 = vld [vmem:[%s1 + $0x10] sm:$0xf]
      %v351 = vld [vmem:[%s1 + $0x14] sm:$0xf]
      %v352 = vld [vmem:[%s1 + $0x18] sm:$0xf]
      %v353 = vld [vmem:[%s1 + $0x1c] sm:$0xf]
      %v354 = vld [vmem:[%s1 + $0x20] sm:$0xf]
      %v355 = vld [vmem:[%s1 + $0x24] sm:$0xf]
      %v356 = vld [vmem:[%s1 + $0x28] sm:$0xf]
      %v357 = vld [vmem:[%s1 + $0x2c] sm:$0xf]
      %v358 = vld [vmem:[%s1 + $0x30] sm:$0xf]
      %v359 = vld [vmem:[%s1 + $0x34] sm:$0xf]
      %v360 = vld [vmem:[%s1 + $0x38] sm:$0xf]
      %v361 = vld [vmem:[%s1 + $0x3c] sm:$0xf]
      %v362 = vld [vmem:[%s2] sm:$0xff]
      %v363 = vld [vmem:[%s2 + $0x8] sm:$0xff]
      %v364 = vld [vmem:[%s2 + $0x10] sm:$0xff]
      %v365 = vld [vmem:[%s2 + $0x18] sm:$0xff]
      %v366 = vld [vmem:[%s2 + $0x20] sm:$0xff]
      %v367 = vld [vmem:[%s2 + $0x28] sm:$0xff]
      %v368 = vld [vmem:[%s2 + $0x30] sm:$0xff]
      %v369 = vld [vmem:[%s2 + $0x38] sm:$0xff]
      %v370 = vld [vmem:[%s2 + $0x40] sm:$0xff]
      %v371 = vld [vmem:[%s2 + $0x48] sm:$0xff]
      %v372 = vld [vmem:[%s2 + $0x50] sm:$0xff]
      %v373 = vld [vmem:[%s2 + $0x58] sm:$0xff]
      %v374 = vld [vmem:[%s2 + $0x60] sm:$0xff]
      %v375 = vld [vmem:[%s2 + $0x68] sm:$0xff]
      %v376 = vld [vmem:[%s2 + $0x70] sm:$0xff]
      %v377 = vld [vmem:[%s2 + $0x78] sm:$0xff]
      %379 = vset.pattern.permute.xlu0 0
      %380 = vperm.xlu0 %379, %v362
      %v381 = vpop.permute.xlu0 %380
      %384 = vset.pattern.permute.xlu0 0
      %385 = vperm.xlu0 %384, %v363
      %v386 = vpop.permute.xlu0 %385
      %389 = vset.pattern.permute.xlu0 0
      %390 = vperm.xlu0 %389, %v364
      %v391 = vpop.permute.xlu0 %390
      %394 = vset.pattern.permute.xlu0 0
      %395 = vperm.xlu0 %394, %v365
      %v396 = vpop.permute.xlu0 %395
      %399 = vset.pattern.permute.xlu0 0
      %400 = vperm.xlu0 %399, %v366
      %v401 = vpop.permute.xlu0 %400
      %404 = vset.pattern.permute.xlu0 0
      %405 = vperm.xlu0 %404, %v367
      %v406 = vpop.permute.xlu0 %405
      %409 = vset.pattern.permute.xlu0 0
      %410 = vperm.xlu0 %409, %v368
      %v411 = vpop.permute.xlu0 %410
      %414 = vset.pattern.permute.xlu0 0
      %415 = vperm.xlu0 %414, %v369
      %v416 = vpop.permute.xlu0 %415
      %419 = vset.pattern.permute.xlu0 0
      %420 = vperm.xlu0 %419, %v370
      %v421 = vpop.permute.xlu0 %420
      %424 = vset.pattern.permute.xlu0 0
      %425 = vperm.xlu0 %424, %v371
      %v426 = vpop.permute.xlu0 %425
      %429 = vset.pattern.permute.xlu0 0
      %430 = vperm.xlu0 %429, %v372
      %v431 = vpop.permute.xlu0 %430
      %434 = vset.pattern.permute.xlu0 0
      %435 = vperm.xlu0 %434, %v373
      %v436 = vpop.permute.xlu0 %435
      %439 = vset.pattern.permute.xlu0 0
      %440 = vperm.xlu0 %439, %v374
      %v441 = vpop.permute.xlu0 %440
      %444 = vset.pattern.permute.xlu0 0
      %445 = vperm.xlu0 %444, %v375
      %v446 = vpop.permute.xlu0 %445
      %449 = vset.pattern.permute.xlu0 0
      %450 = vperm.xlu0 %449, %v376
      %v451 = vpop.permute.xlu0 %450
      %454 = vset.pattern.permute.xlu0 0
      %455 = vperm.xlu0 %454, %v377
      %v456 = vpop.permute.xlu0 %455
      %v474 = vunpack.c.l.b16 %v346
      %v475 = vunpack.c.l.b16 %v347
      %v476 = vunpack.c.l.b16 %v348
      %v477 = vunpack.c.l.b16 %v349
      %v478 = vunpack.c.l.b16 %v350
      %v479 = vunpack.c.l.b16 %v351
      %v480 = vunpack.c.l.b16 %v352
      %v481 = vunpack.c.l.b16 %v353
      %v482 = vunpack.c.l.b16 %v354
      %v483 = vunpack.c.l.b16 %v355
      %v484 = vunpack.c.l.b16 %v356
      %v485 = vunpack.c.l.b16 %v357
      %v486 = vunpack.c.l.b16 %v358
      %v487 = vunpack.c.l.b16 %v359
      %v488 = vunpack.c.l.b16 %v360
      %v489 = vunpack.c.l.b16 %v361
      %v490 = vpack.c.b16 %v475, %v474
      %v491 = vpack.c.b16 %v477, %v476
      %v492 = vpack.c.b16 %v479, %v478
      %v493 = vpack.c.b16 %v481, %v480
      %v494 = vpack.c.b16 %v483, %v482
      %v495 = vpack.c.b16 %v485, %v484
      %v496 = vpack.c.b16 %v487, %v486
      %v497 = vpack.c.b16 %v489, %v488
      %vm498 = vcmask 523264
      %v500 = vsel %vm498, %v490, 0
      %v503 = vsel %vm498, %v491, 0
      %v506 = vsel %vm498, %v492, 0
      %v509 = vsel %vm498, %v493, 0
      %v512 = vsel %vm498, %v494, 0
      %v515 = vsel %vm498, %v495, 0
      %v518 = vsel %vm498, %v496, 0
      %v521 = vsel %vm498, %v497, 0
      %523 = vmatprep.subr.bf16.mxu0 0
      %524 = vmatpush1.bf16.msra.mxu0 %v342
      %525 = vmatprep.subr.bf16.mxu0 0
      %526 = vmatpush1.bf16.msra.mxu0 %v343
      %527 = vmatprep.subr.bf16.mxu0 0
      %528 = vmatpush1.bf16.msra.mxu0 %v344
      %529 = vmatprep.subr.bf16.mxu0 0
      %530 = vmatpush1.bf16.msra.mxu0 %v345
      %531 = vmatprep.subr.bf16.mxu0 0
      %532 = vmatpush1.bf16.msra.mxu0 0
      %533 = vmatprep.subr.bf16.mxu0 0
      %534 = vmatpush1.bf16.msra.mxu0 0
      %535 = vmatprep.subr.bf16.mxu0 0
      %536 = vmatpush1.bf16.msra.mxu0 0
      %537 = vmatprep.subr.bf16.mxu0 0
      %538 = vmatpush1.bf16.msra.mxu0 0
      %539 = vmatprep.subr.bf16.mxu0 0
      %540 = vmatpush1.bf16.msra.mxu0 0
      %541 = vmatprep.subr.bf16.mxu0 0
      %542 = vmatpush1.bf16.msra.mxu0 0
      %543 = vmatprep.subr.bf16.mxu0 0
      %544 = vmatpush1.bf16.msra.mxu0 0
      %545 = vmatprep.subr.bf16.mxu0 0
      %546 = vmatpush1.bf16.msra.mxu0 0
      %547 = vmatprep.subr.bf16.mxu0 0
      %548 = vmatpush1.bf16.msra.mxu0 0
      %549 = vmatprep.subr.bf16.mxu0 0
      %550 = vmatpush1.bf16.msra.mxu0 0
      %551 = vmatprep.subr.bf16.mxu0 0
      %552 = vmatpush1.bf16.msra.mxu0 0
      %553 = vmatprep.subr.bf16.mxu0 0
      %554 = vmatpush1.bf16.msra.mxu0 0
      %555 = vmatprep.mubr.bf16.mxu0 0
      %556 = vmatmul.mubr.bf16.gmra.mrb[0].mxu0 %v500
      %v557 = vpop.f32.mrb[0].mxu0
      %v558 = vadd.f32 %v381, %v557
      %v559 = vpop.f32.mrb[0].mxu0
      %v560 = vpop.f32.mrb[0].mxu0
      %v561 = vadd.f32 %v386, %v560
      %v562 = vpop.f32.mrb[0].mxu0
      %563 = vmatprep.mubr.bf16.mxu0 0
      %564 = vmatmul.mubr.bf16.gmra.mrb[0].mxu0 %v503
      %v565 = vpop.f32.mrb[0].mxu0
      %v566 = vadd.f32 %v391, %v565
      %v567 = vpop.f32.mrb[0].mxu0
      %v568 = vpop.f32.mrb[0].mxu0
      %v569 = vadd.f32 %v396, %v568
      %v570 = vpop.f32.mrb[0].mxu0
      %571 = vmatprep.mubr.bf16.mxu0 0
      %572 = vmatmul.mubr.bf16.gmra.mrb[0].mxu0 %v506
      %v573 = vpop.f32.mrb[0].mxu0
      %v574 = vadd.f32 %v401, %v573
      %v575 = vpop.f32.mrb[0].mxu0
      %v576 = vpop.f32.mrb[0].mxu0
      %v577 = vadd.f32 %v406, %v576
      %v578 = vpop.f32.mrb[0].mxu0
      %579 = vmatprep.mubr.bf16.mxu0 0
      %580 = vmatmul.mubr.bf16.gmra.mrb[0].mxu0 %v509
      %v581 = vpop.f32.mrb[0].mxu0
      %v582 = vadd.f32 %v411, %v581
      %v583 = vpop.f32.mrb[0].mxu0
      %v584 = vpop.f32.mrb[0].mxu0
      %v585 = vadd.f32 %v416, %v584
      %v586 = vpop.f32.mrb[0].mxu0
      %587 = vmatprep.mubr.bf16.mxu0 0
      %588 = vmatmul.mubr.bf16.gmra.mrb[0].mxu0 %v512
      %v589 = vpop.f32.mrb[0].mxu0
      %v590 = vadd.f32 %v421, %v589
      %v591 = vpop.f32.mrb[0].mxu0
      %v592 = vpop.f32.mrb[0].mxu0
      %v593 = vadd.f32 %v426, %v592
      %v594 = vpop.f32.mrb[0].mxu0
      %595 = vmatprep.mubr.bf16.mxu0 0
      %596 = vmatmul.mubr.bf16.gmra.mrb[0].mxu0 %v515
      %v597 = vpop.f32.mrb[0].mxu0
      %v598 = vadd.f32 %v431, %v597
      %v599 = vpop.f32.mrb[0].mxu0
      %v600 = vpop.f32.mrb[0].mxu0
      %v601 = vadd.f32 %v436, %v600
      %v602 = vpop.f32.mrb[0].mxu0
      %603 = vmatprep.mubr.bf16.mxu0 0
      %604 = vmatmul.mubr.bf16.gmra.mrb[0].mxu0 %v518
      %v605 = vpop.f32.mrb[0].mxu0
      %v606 = vadd.f32 %v441, %v605
      %v607 = vpop.f32.mrb[0].mxu0
      %v608 = vpop.f32.mrb[0].mxu0
      %v609 = vadd.f32 %v446, %v608
      %v610 = vpop.f32.mrb[0].mxu0
      %611 = vmatprep.mubr.bf16.mxu0 0
      %612 = vmatmul.mubr.bf16.gmra.mrb[0].mxu0 %v521
      %v613 = vpop.f32.mrb[0].mxu0
      %v614 = vadd.f32 %v451, %v613
      %v615 = vpop.f32.mrb[0].mxu0
      %v616 = vpop.f32.mrb[0].mxu0
      %v617 = vadd.f32 %v456, %v616
      %v618 = vpop.f32.mrb[0].mxu0
      %619 = vdwg.mxu0
      %v620 = vmax.f32 %v558, 0.0
      %v621 = vmax.f32 %v561, 0.0
      %v622 = vmax.f32 %v566, 0.0
      %v623 = vmax.f32 %v569, 0.0
      %v624 = vmax.f32 %v574, 0.0
      %v625 = vmax.f32 %v577, 0.0
      %v626 = vmax.f32 %v582, 0.0
      %v627 = vmax.f32 %v585, 0.0
      %v628 = vmax.f32 %v590, 0.0
      %v629 = vmax.f32 %v593, 0.0
      %v630 = vmax.f32 %v598, 0.0
      %v631 = vmax.f32 %v601, 0.0
      %v632 = vmax.f32 %v606, 0.0
      %v633 = vmax.f32 %v609, 0.0
      %v634 = vmax.f32 %v614, 0.0
      %v635 = vmax.f32 %v617, 0.0
      %vm636 = vcmask 31744
      %637 = vst.msk [vmem:[#allocation2] sm:$0xff] %vm636, %v620
      %638 = vst.msk [vmem:[#allocation2 + $0x8] sm:$0xff] %vm636, %v621
      %639 = vst.msk [vmem:[#allocation2 + $0x10] sm:$0xff] %vm636, %v622
      %640 = vst.msk [vmem:[#allocation2 + $0x18] sm:$0xff] %vm636, %v623
      %645 = vrot.lane.b32.xlu0 %v624, 4
      %v646 = vpop.permute.xlu0 %645
      %647 = vrot.lane.b32.xlu0 %v625, 4
      %v648 = vpop.permute.xlu0 %647
      %649 = vrot.lane.b32.xlu0 %v626, 4
      %v650 = vpop.permute.xlu0 %649
      %651 = vrot.lane.b32.xlu0 %v627, 4
      %v652 = vpop.permute.xlu0 %651
      %vm657 = vcmask 64544
      %658 = vst.msk [vmem:[#allocation2] sm:$0xff] %vm657, %v646
      %659 = vst.msk [vmem:[#allocation2 + $0x8] sm:$0xff] %vm657, %v648
      %660 = vst.msk [vmem:[#allocation2 + $0x10] sm:$0xff] %vm657, %v650
      %661 = vst.msk [vmem:[#allocation2 + $0x18] sm:$0xff] %vm657, %v652
      %666 = vrot.lane.b32.xlu0 %v628, 8
      %v667 = vpop.permute.xlu0 %666
      %668 = vrot.lane.b32.xlu0 %v629, 8
      %v669 = vpop.permute.xlu0 %668
      %670 = vrot.lane.b32.xlu0 %v630, 8
      %v671 = vpop.permute.xlu0 %670
      %672 = vrot.lane.b32.xlu0 %v631, 8
      %v673 = vpop.permute.xlu0 %672
      %vm678 = vcmask 97344
      %679 = vst.msk [vmem:[#allocation2] sm:$0xff] %vm678, %v667
      %680 = vst.msk [vmem:[#allocation2 + $0x8] sm:$0xff] %vm678, %v669
      %681 = vst.msk [vmem:[#allocation2 + $0x10] sm:$0xff] %vm678, %v671
      %682 = vst.msk [vmem:[#allocation2 + $0x18] sm:$0xff] %vm678, %v673
      %687 = vrot.lane.b32.xlu0 %v632, 12
      %v688 = vpop.permute.xlu0 %687
      %689 = vrot.lane.b32.xlu0 %v633, 12
      %v690 = vpop.permute.xlu0 %689
      %691 = vrot.lane.b32.xlu0 %v634, 12
      %v692 = vpop.permute.xlu0 %691
      %693 = vrot.lane.b32.xlu0 %v635, 12
      %v694 = vpop.permute.xlu0 %693
      %vm699 = vcmask 130144
      %700 = vst.msk [vmem:[#allocation2] sm:$0xff] %vm699, %v688
      %701 = vst.msk [vmem:[#allocation2 + $0x8] sm:$0xff] %vm699, %v690
      %702 = vst.msk [vmem:[#allocation2 + $0x10] sm:$0xff] %vm699, %v692
      %703 = vst.msk [vmem:[#allocation2 + $0x18] sm:$0xff] %vm699, %v694
      %v704 = vld [vmem:[#allocation2] sm:$0xff]
      %v705 = vld [vmem:[#allocation2 + $0x8] sm:$0xff]
      %v706 = vld [vmem:[#allocation2 + $0x10] sm:$0xff]
      %v707 = vld [vmem:[#allocation2 + $0x18] sm:$0xff]
      %v708 = vpack.c.bf16 %v705, %v704
      %v709 = vpack.c.bf16 %v707, %v706
      %v710 = vld [vmem:[%s3] sm:$0xf]
      %v711 = vld [vmem:[%s3 + $0x4] sm:$0xf]
      %v712 = vld [vmem:[%s3 + $0x8] sm:$0xf]
      %v713 = vld [vmem:[%s3 + $0xc] sm:$0xf]
      %v714 = vld [vmem:[%s3 + $0x10] sm:$0xf]
      %v715 = vld [vmem:[%s3 + $0x14] sm:$0xf]
      %v716 = vld [vmem:[%s3 + $0x18] sm:$0xf]
      %v717 = vld [vmem:[%s3 + $0x1c] sm:$0xf]
      %v718 = vld [vmem:[%s3 + $0x20] sm:$0xf]
      %v719 = vld [vmem:[%s3 + $0x24] sm:$0xf]
      %v720 = vld [vmem:[%s3 + $0x28] sm:$0xf]
      %v721 = vld [vmem:[%s3 + $0x2c] sm:$0xf]
      %v722 = vld [vmem:[%s3 + $0x30] sm:$0xf]
      %v723 = vld [vmem:[%s3 + $0x34] sm:$0xf]
      %v724 = vld [vmem:[%s3 + $0x38] sm:$0xf]
      %v725 = vld [vmem:[%s3 + $0x3c] sm:$0xf]
      %v726 = vld [vmem:[%s3 + $0x40] sm:$0xf]
      %v727 = vld [vmem:[%s3 + $0x44] sm:$0xf]
      %v728 = vld [vmem:[%s3 + $0x48] sm:$0xf]
      %v729 = vld [vmem:[%s3 + $0x4c] sm:$0xf]
      %v730 = vld [vmem:[%s3 + $0x50] sm:$0xf]
      %v731 = vld [vmem:[%s3 + $0x54] sm:$0xf]
      %v732 = vld [vmem:[%s3 + $0x58] sm:$0xf]
      %v733 = vld [vmem:[%s3 + $0x5c] sm:$0xf]
      %v734 = vld [vmem:[%s3 + $0x60] sm:$0xf]
      %v735 = vld [vmem:[%s3 + $0x64] sm:$0xf]
      %v736 = vld [vmem:[%s3 + $0x68] sm:$0xf]
      %v737 = vld [vmem:[%s3 + $0x6c] sm:$0xf]
      %v738 = vld [vmem:[%s3 + $0x70] sm:$0xf]
      %v739 = vld [vmem:[%s3 + $0x74] sm:$0xf]
      %v740 = vld [vmem:[%s3 + $0x78] sm:$0xf]
      %v741 = vld [vmem:[%s3 + $0x7c] sm:$0xf]
      %v742 = vld [vmem:[%s3 + $0x80] sm:$0xf]
      %v743 = vld [vmem:[%s3 + $0x84] sm:$0xf]
      %v744 = vld [vmem:[%s3 + $0x88] sm:$0xf]
      %v745 = vld [vmem:[%s3 + $0x8c] sm:$0xf]
      %v746 = vld [vmem:[%s3 + $0x90] sm:$0xf]
      %v747 = vld [vmem:[%s3 + $0x94] sm:$0xf]
      %v748 = vld [vmem:[%s3 + $0x98] sm:$0xf]
      %v749 = vld [vmem:[%s3 + $0x9c] sm:$0xf]
      %v750 = vld [vmem:[%s3 + $0xa0] sm:$0xf]
      %v751 = vld [vmem:[%s3 + $0xa4] sm:$0xf]
      %v752 = vld [vmem:[%s3 + $0xa8] sm:$0xf]
      %v753 = vld [vmem:[%s3 + $0xac] sm:$0xf]
      %v754 = vld [vmem:[%s3 + $0xb0] sm:$0xf]
      %v755 = vld [vmem:[%s3 + $0xb4] sm:$0xf]
      %v756 = vld [vmem:[%s3 + $0xb8] sm:$0xf]
      %v757 = vld [vmem:[%s3 + $0xbc] sm:$0xf]
      %v758 = vld [vmem:[%s3 + $0xc0] sm:$0xf]
      %v759 = vld [vmem:[%s3 + $0xc4] sm:$0xf]
      %v760 = vld [vmem:[%s3 + $0xc8] sm:$0xf]
      %v761 = vld [vmem:[%s3 + $0xcc] sm:$0xf]
      %v762 = vld [vmem:[%s3 + $0xd0] sm:$0xf]
      %v763 = vld [vmem:[%s3 + $0xd4] sm:$0xf]
      %v764 = vld [vmem:[%s3 + $0xd8] sm:$0xf]
      %v765 = vld [vmem:[%s3 + $0xdc] sm:$0xf]
      %v766 = vld [vmem:[%s3 + $0xe0] sm:$0xf]
      %v767 = vld [vmem:[%s3 + $0xe4] sm:$0xf]
      %v768 = vld [vmem:[%s3 + $0xe8] sm:$0xf]
      %v769 = vld [vmem:[%s3 + $0xec] sm:$0xf]
      %v770 = vld [vmem:[%s3 + $0xf0] sm:$0xf]
      %v771 = vld [vmem:[%s3 + $0xf4] sm:$0xf]
      %v772 = vld [vmem:[%s3 + $0xf8] sm:$0xf]
      %v773 = vld [vmem:[%s3 + $0xfc] sm:$0xf]
      %v774 = vld [vmem:[%s3 + $0x100] sm:$0xf]
      %v775 = vld [vmem:[%s3 + $0x104] sm:$0xf]
      %v776 = vld [vmem:[%s3 + $0x108] sm:$0xf]
      %v777 = vld [vmem:[%s3 + $0x10c] sm:$0xf]
      %v778 = vld [vmem:[%s3 + $0x110] sm:$0xf]
      %v779 = vld [vmem:[%s3 + $0x114] sm:$0xf]
      %v780 = vld [vmem:[%s3 + $0x118] sm:$0xf]
      %v781 = vld [vmem:[%s3 + $0x11c] sm:$0xf]
      %v782 = vld [vmem:[%s3 + $0x120] sm:$0xf]
      %v783 = vld [vmem:[%s3 + $0x124] sm:$0xf]
      %v784 = vld [vmem:[%s3 + $0x128] sm:$0xf]
      %v785 = vld [vmem:[%s3 + $0x12c] sm:$0xf]
      %v786 = vld [vmem:[%s3 + $0x130] sm:$0xf]
      %v787 = vld [vmem:[%s3 + $0x134] sm:$0xf]
      %v788 = vld [vmem:[%s3 + $0x138] sm:$0xf]
      %v789 = vld [vmem:[%s3 + $0x13c] sm:$0xf]
      %v790 = vld [vmem:[%s3 + $0x140] sm:$0xf]
      %v791 = vld [vmem:[%s3 + $0x144] sm:$0xf]
      %v792 = vld [vmem:[%s3 + $0x148] sm:$0xf]
      %v793 = vld [vmem:[%s3 + $0x14c] sm:$0xf]
      %v794 = vld [vmem:[%s3 + $0x150] sm:$0xf]
      %v795 = vld [vmem:[%s3 + $0x154] sm:$0xf]
      %v796 = vld [vmem:[%s3 + $0x158] sm:$0xf]
      %v797 = vld [vmem:[%s3 + $0x15c] sm:$0xf]
      %v798 = vld [vmem:[%s3 + $0x160] sm:$0xf]
      %v799 = vld [vmem:[%s3 + $0x164] sm:$0xf]
      %v800 = vld [vmem:[%s3 + $0x168] sm:$0xf]
      %v801 = vld [vmem:[%s3 + $0x16c] sm:$0xf]
      %v802 = vld [vmem:[%s3 + $0x170] sm:$0xf]
      %v803 = vld [vmem:[%s3 + $0x174] sm:$0xf]
      %v804 = vld [vmem:[%s3 + $0x178] sm:$0xf]
      %v805 = vld [vmem:[%s3 + $0x17c] sm:$0xf]
      %v806 = vld [vmem:[%s3 + $0x180] sm:$0xf]
      %v807 = vld [vmem:[%s3 + $0x184] sm:$0xf]
      %v808 = vld [vmem:[%s3 + $0x188] sm:$0xf]
      %v809 = vld [vmem:[%s3 + $0x18c] sm:$0xf]
      %v810 = vld [vmem:[%s4] sm:$0xff]
      %v811 = vld [vmem:[%s4 + $0x8] sm:$0xff]
      %v812 = vld [vmem:[%s4 + $0x10] sm:$0xff]
      %v813 = vld [vmem:[%s4 + $0x18] sm:$0xff]
      %v814 = vld [vmem:[%s4 + $0x20] sm:$0xff]
      %v815 = vld [vmem:[%s4 + $0x28] sm:$0xff]
      %v816 = vld [vmem:[%s4 + $0x30] sm:$0xff]
      %v817 = vld [vmem:[%s4 + $0x38] sm:$0xff]
      %v818 = vld [vmem:[%s4 + $0x40] sm:$0xff]
      %v819 = vld [vmem:[%s4 + $0x48] sm:$0xff]
      %v820 = vld [vmem:[%s4 + $0x50] sm:$0xff]
      %v821 = vld [vmem:[%s4 + $0x58] sm:$0xff]
      %v822 = vld [vmem:[%s4 + $0x60] sm:$0xff]
      %v823 = vld [vmem:[%s4 + $0x68] sm:$0xff]
      %v824 = vld [vmem:[%s4 + $0x70] sm:$0xff]
      %v825 = vld [vmem:[%s4 + $0x78] sm:$0xff]
      %v826 = vld [vmem:[%s4 + $0x80] sm:$0xff]
      %v827 = vld [vmem:[%s4 + $0x88] sm:$0xff]
      %v828 = vld [vmem:[%s4 + $0x90] sm:$0xff]
      %v829 = vld [vmem:[%s4 + $0x98] sm:$0xff]
      %v830 = vld [vmem:[%s4 + $0xa0] sm:$0xff]
      %v831 = vld [vmem:[%s4 + $0xa8] sm:$0xff]
      %v832 = vld [vmem:[%s4 + $0xb0] sm:$0xff]
      %v833 = vld [vmem:[%s4 + $0xb8] sm:$0xff]
      %v834 = vld [vmem:[%s4 + $0xc0] sm:$0xff]
      %v835 = vld [vmem:[%s4 + $0xc8] sm:$0xff]
      %v836 = vld [vmem:[%s4 + $0xd0] sm:$0xff]
      %v837 = vld [vmem:[%s4 + $0xd8] sm:$0xff]
      %v838 = vld [vmem:[%s4 + $0xe0] sm:$0xff]
      %v839 = vld [vmem:[%s4 + $0xe8] sm:$0xff]
      %v840 = vld [vmem:[%s4 + $0xf0] sm:$0xff]
      %v841 = vld [vmem:[%s4 + $0xf8] sm:$0xff]
      %v842 = vld [vmem:[%s4 + $0x100] sm:$0xff]
      %v843 = vld [vmem:[%s4 + $0x108] sm:$0xff]
      %v844 = vld [vmem:[%s4 + $0x110] sm:$0xff]
      %v845 = vld [vmem:[%s4 + $0x118] sm:$0xff]
      %v846 = vld [vmem:[%s4 + $0x120] sm:$0xff]
      %v847 = vld [vmem:[%s4 + $0x128] sm:$0xff]
      %v848 = vld [vmem:[%s4 + $0x130] sm:$0xff]
      %v849 = vld [vmem:[%s4 + $0x138] sm:$0xff]
      %v850 = vld [vmem:[%s4 + $0x140] sm:$0xff]
      %v851 = vld [vmem:[%s4 + $0x148] sm:$0xff]
      %v852 = vld [vmem:[%s4 + $0x150] sm:$0xff]
      %v853 = vld [vmem:[%s4 + $0x158] sm:$0xff]
      %v854 = vld [vmem:[%s4 + $0x160] sm:$0xff]
      %v855 = vld [vmem:[%s4 + $0x168] sm:$0xff]
      %v856 = vld [vmem:[%s4 + $0x170] sm:$0xff]
      %v857 = vld [vmem:[%s4 + $0x178] sm:$0xff]
      %v858 = vld [vmem:[%s4 + $0x180] sm:$0xff]
      %v859 = vld [vmem:[%s4 + $0x188] sm:$0xff]
      %v860 = vld [vmem:[%s4 + $0x190] sm:$0xff]
      %v861 = vld [vmem:[%s4 + $0x198] sm:$0xff]
      %v862 = vld [vmem:[%s4 + $0x1a0] sm:$0xff]
      %v863 = vld [vmem:[%s4 + $0x1a8] sm:$0xff]
      %v864 = vld [vmem:[%s4 + $0x1b0] sm:$0xff]
      %v865 = vld [vmem:[%s4 + $0x1b8] sm:$0xff]
      %v866 = vld [vmem:[%s4 + $0x1c0] sm:$0xff]
      %v867 = vld [vmem:[%s4 + $0x1c8] sm:$0xff]
      %v868 = vld [vmem:[%s4 + $0x1d0] sm:$0xff]
      %v869 = vld [vmem:[%s4 + $0x1d8] sm:$0xff]
      %v870 = vld [vmem:[%s4 + $0x1e0] sm:$0xff]
      %v871 = vld [vmem:[%s4 + $0x1e8] sm:$0xff]
      %v872 = vld [vmem:[%s4 + $0x1f0] sm:$0xff]
      %v873 = vld [vmem:[%s4 + $0x1f8] sm:$0xff]
      %v874 = vld [vmem:[%s4 + $0x200] sm:$0xff]
      %v875 = vld [vmem:[%s4 + $0x208] sm:$0xff]
      %v876 = vld [vmem:[%s4 + $0x210] sm:$0xff]
      %v877 = vld [vmem:[%s4 + $0x218] sm:$0xff]
      %v878 = vld [vmem:[%s4 + $0x220] sm:$0xff]
      %v879 = vld [vmem:[%s4 + $0x228] sm:$0xff]
      %v880 = vld [vmem:[%s4 + $0x230] sm:$0xff]
      %v881 = vld [vmem:[%s4 + $0x238] sm:$0xff]
      %v882 = vld [vmem:[%s4 + $0x240] sm:$0xff]
      %v883 = vld [vmem:[%s4 + $0x248] sm:$0xff]
      %v884 = vld [vmem:[%s4 + $0x250] sm:$0xff]
      %v885 = vld [vmem:[%s4 + $0x258] sm:$0xff]
      %v886 = vld [vmem:[%s4 + $0x260] sm:$0xff]
      %v887 = vld [vmem:[%s4 + $0x268] sm:$0xff]
      %v888 = vld [vmem:[%s4 + $0x270] sm:$0xff]
      %v889 = vld [vmem:[%s4 + $0x278] sm:$0xff]
      %v890 = vld [vmem:[%s4 + $0x280] sm:$0xff]
      %v891 = vld [vmem:[%s4 + $0x288] sm:$0xff]
      %v892 = vld [vmem:[%s4 + $0x290] sm:$0xff]
      %v893 = vld [vmem:[%s4 + $0x298] sm:$0xff]
      %v894 = vld [vmem:[%s4 + $0x2a0] sm:$0xff]
      %v895 = vld [vmem:[%s4 + $0x2a8] sm:$0xff]
      %v896 = vld [vmem:[%s4 + $0x2b0] sm:$0xff]
      %v897 = vld [vmem:[%s4 + $0x2b8] sm:$0xff]
      %v898 = vld [vmem:[%s4 + $0x2c0] sm:$0xff]
      %v899 = vld [vmem:[%s4 + $0x2c8] sm:$0xff]
      %v900 = vld [vmem:[%s4 + $0x2d0] sm:$0xff]
      %v901 = vld [vmem:[%s4 + $0x2d8] sm:$0xff]
      %v902 = vld [vmem:[%s4 + $0x2e0] sm:$0xff]
      %v903 = vld [vmem:[%s4 + $0x2e8] sm:$0xff]
      %v904 = vld [vmem:[%s4 + $0x2f0] sm:$0xff]
      %v905 = vld [vmem:[%s4 + $0x2f8] sm:$0xff]
      %v906 = vld [vmem:[%s4 + $0x300] sm:$0xff]
      %v907 = vld [vmem:[%s4 + $0x308] sm:$0xff]
      %v908 = vld [vmem:[%s4 + $0x310] sm:$0xff]
      %v909 = vld [vmem:[%s4 + $0x318] sm:$0xff]
      %911 = vset.pattern.permute.xlu0 0
      %912 = vperm.xlu0 %911, %v810
      %v913 = vpop.permute.xlu0 %912
      %916 = vset.pattern.permute.xlu0 0
      %917 = vperm.xlu0 %916, %v811
      %v918 = vpop.permute.xlu0 %917
      %921 = vset.pattern.permute.xlu0 0
      %922 = vperm.xlu0 %921, %v812
      %v923 = vpop.permute.xlu0 %922
      %926 = vset.pattern.permute.xlu0 0
      %927 = vperm.xlu0 %926, %v813
      %v928 = vpop.permute.xlu0 %927
      %931 = vset.pattern.permute.xlu0 0
      %932 = vperm.xlu0 %931, %v814
      %v933 = vpop.permute.xlu0 %932
      %936 = vset.pattern.permute.xlu0 0
      %937 = vperm.xlu0 %936, %v815
      %v938 = vpop.permute.xlu0 %937
      %941 = vset.pattern.permute.xlu0 0
      %942 = vperm.xlu0 %941, %v816
      %v943 = vpop.permute.xlu0 %942
      %946 = vset.pattern.permute.xlu0 0
      %947 = vperm.xlu0 %946, %v817
      %v948 = vpop.permute.xlu0 %947
      %951 = vset.pattern.permute.xlu0 0
      %952 = vperm.xlu0 %951, %v818
      %v953 = vpop.permute.xlu0 %952
      %956 = vset.pattern.permute.xlu0 0
      %957 = vperm.xlu0 %956, %v819
      %v958 = vpop.permute.xlu0 %957
      %961 = vset.pattern.permute.xlu0 0
      %962 = vperm.xlu0 %961, %v820
      %v963 = vpop.permute.xlu0 %962
      %966 = vset.pattern.permute.xlu0 0
      %967 = vperm.xlu0 %966, %v821
      %v968 = vpop.permute.xlu0 %967
      %971 = vset.pattern.permute.xlu0 0
      %972 = vperm.xlu0 %971, %v822
      %v973 = vpop.permute.xlu0 %972
      %976 = vset.pattern.permute.xlu0 0
      %977 = vperm.xlu0 %976, %v823
      %v978 = vpop.permute.xlu0 %977
      %981 = vset.pattern.permute.xlu0 0
      %982 = vperm.xlu0 %981, %v824
      %v983 = vpop.permute.xlu0 %982
      %986 = vset.pattern.permute.xlu0 0
      %987 = vperm.xlu0 %986, %v825
      %v988 = vpop.permute.xlu0 %987
      %991 = vset.pattern.permute.xlu0 0
      %992 = vperm.xlu0 %991, %v826
      %v993 = vpop.permute.xlu0 %992
      %996 = vset.pattern.permute.xlu0 0
      %997 = vperm.xlu0 %996, %v827
      %v998 = vpop.permute.xlu0 %997
      %1001 = vset.pattern.permute.xlu0 0
      %1002 = vperm.xlu0 %1001, %v828
      %v1003 = vpop.permute.xlu0 %1002
      %1006 = vset.pattern.permute.xlu0 0
      %1007 = vperm.xlu0 %1006, %v829
      %v1008 = vpop.permute.xlu0 %1007
      %1011 = vset.pattern.permute.xlu0 0
      %1012 = vperm.xlu0 %1011, %v830
      %v1013 = vpop.permute.xlu0 %1012
      %1016 = vset.pattern.permute.xlu0 0
      %1017 = vperm.xlu0 %1016, %v831
      %v1018 = vpop.permute.xlu0 %1017
      %1021 = vset.pattern.permute.xlu0 0
      %1022 = vperm.xlu0 %1021, %v832
      %v1023 = vpop.permute.xlu0 %1022
      %1026 = vset.pattern.permute.xlu0 0
      %1027 = vperm.xlu0 %1026, %v833
      %v1028 = vpop.permute.xlu0 %1027
      %1031 = vset.pattern.permute.xlu0 0
      %1032 = vperm.xlu0 %1031, %v834
      %v1033 = vpop.permute.xlu0 %1032
      %1036 = vset.pattern.permute.xlu0 0
      %1037 = vperm.xlu0 %1036, %v835
      %v1038 = vpop.permute.xlu0 %1037
      %1041 = vset.pattern.permute.xlu0 0
      %1042 = vperm.xlu0 %1041, %v836
      %v1043 = vpop.permute.xlu0 %1042
      %1046 = vset.pattern.permute.xlu0 0
      %1047 = vperm.xlu0 %1046, %v837
      %v1048 = vpop.permute.xlu0 %1047
      %1051 = vset.pattern.permute.xlu0 0
      %1052 = vperm.xlu0 %1051, %v838
      %v1053 = vpop.permute.xlu0 %1052
      %1056 = vset.pattern.permute.xlu0 0
      %1057 = vperm.xlu0 %1056, %v839
      %v1058 = vpop.permute.xlu0 %1057
      %1061 = vset.pattern.permute.xlu0 0
      %1062 = vperm.xlu0 %1061, %v840
      %v1063 = vpop.permute.xlu0 %1062
      %1066 = vset.pattern.permute.xlu0 0
      %1067 = vperm.xlu0 %1066, %v841
      %v1068 = vpop.permute.xlu0 %1067
      %1071 = vset.pattern.permute.xlu0 0
      %1072 = vperm.xlu0 %1071, %v842
      %v1073 = vpop.permute.xlu0 %1072
      %1076 = vset.pattern.permute.xlu0 0
      %1077 = vperm.xlu0 %1076, %v843
      %v1078 = vpop.permute.xlu0 %1077
      %1081 = vset.pattern.permute.xlu0 0
      %1082 = vperm.xlu0 %1081, %v844
      %v1083 = vpop.permute.xlu0 %1082
      %1086 = vset.pattern.permute.xlu0 0
      %1087 = vperm.xlu0 %1086, %v845
      %v1088 = vpop.permute.xlu0 %1087
      %1091 = vset.pattern.permute.xlu0 0
      %1092 = vperm.xlu0 %1091, %v846
      %v1093 = vpop.permute.xlu0 %1092
      %1096 = vset.pattern.permute.xlu0 0
      %1097 = vperm.xlu0 %1096, %v847
      %v1098 = vpop.permute.xlu0 %1097
      %1101 = vset.pattern.permute.xlu0 0
      %1102 = vperm.xlu0 %1101, %v848
      %v1103 = vpop.permute.xlu0 %1102
      %1106 = vset.pattern.permute.xlu0 0
      %1107 = vperm.xlu0 %1106, %v849
      %v1108 = vpop.permute.xlu0 %1107
      %1111 = vset.pattern.permute.xlu0 0
      %1112 = vperm.xlu0 %1111, %v850
      %v1113 = vpop.permute.xlu0 %1112
      %1116 = vset.pattern.permute.xlu0 0
      %1117 = vperm.xlu0 %1116, %v851
      %v1118 = vpop.permute.xlu0 %1117
      %1121 = vset.pattern.permute.xlu0 0
      %1122 = vperm.xlu0 %1121, %v852
      %v1123 = vpop.permute.xlu0 %1122
      %1126 = vset.pattern.permute.xlu0 0
      %1127 = vperm.xlu0 %1126, %v853
      %v1128 = vpop.permute.xlu0 %1127
      %1131 = vset.pattern.permute.xlu0 0
      %1132 = vperm.xlu0 %1131, %v854
      %v1133 = vpop.permute.xlu0 %1132
      %1136 = vset.pattern.permute.xlu0 0
      %1137 = vperm.xlu0 %1136, %v855
      %v1138 = vpop.permute.xlu0 %1137
      %1141 = vset.pattern.permute.xlu0 0
      %1142 = vperm.xlu0 %1141, %v856
      %v1143 = vpop.permute.xlu0 %1142
      %1146 = vset.pattern.permute.xlu0 0
      %1147 = vperm.xlu0 %1146, %v857
      %v1148 = vpop.permute.xlu0 %1147
      %1151 = vset.pattern.permute.xlu0 0
      %1152 = vperm.xlu0 %1151, %v858
      %v1153 = vpop.permute.xlu0 %1152
      %1156 = vset.pattern.permute.xlu0 0
      %1157 = vperm.xlu0 %1156, %v859
      %v1158 = vpop.permute.xlu0 %1157
      %1161 = vset.pattern.permute.xlu0 0
      %1162 = vperm.xlu0 %1161, %v860
      %v1163 = vpop.permute.xlu0 %1162
      %1166 = vset.pattern.permute.xlu0 0
      %1167 = vperm.xlu0 %1166, %v861
      %v1168 = vpop.permute.xlu0 %1167
      %1171 = vset.pattern.permute.xlu0 0
      %1172 = vperm.xlu0 %1171, %v862
      %v1173 = vpop.permute.xlu0 %1172
      %1176 = vset.pattern.permute.xlu0 0
      %1177 = vperm.xlu0 %1176, %v863
      %v1178 = vpop.permute.xlu0 %1177
      %1181 = vset.pattern.permute.xlu0 0
      %1182 = vperm.xlu0 %1181, %v864
      %v1183 = vpop.permute.xlu0 %1182
      %1186 = vset.pattern.permute.xlu0 0
      %1187 = vperm.xlu0 %1186, %v865
      %v1188 = vpop.permute.xlu0 %1187
      %1191 = vset.pattern.permute.xlu0 0
      %1192 = vperm.xlu0 %1191, %v866
      %v1193 = vpop.permute.xlu0 %1192
      %1196 = vset.pattern.permute.xlu0 0
      %1197 = vperm.xlu0 %1196, %v867
      %v1198 = vpop.permute.xlu0 %1197
      %1201 = vset.pattern.permute.xlu0 0
      %1202 = vperm.xlu0 %1201, %v868
      %v1203 = vpop.permute.xlu0 %1202
      %1206 = vset.pattern.permute.xlu0 0
      %1207 = vperm.xlu0 %1206, %v869
      %v1208 = vpop.permute.xlu0 %1207
      %1211 = vset.pattern.permute.xlu0 0
      %1212 = vperm.xlu0 %1211, %v870
      %v1213 = vpop.permute.xlu0 %1212
      %1216 = vset.pattern.permute.xlu0 0
      %1217 = vperm.xlu0 %1216, %v871
      %v1218 = vpop.permute.xlu0 %1217
      %1221 = vset.pattern.permute.xlu0 0
      %1222 = vperm.xlu0 %1221, %v872
      %v1223 = vpop.permute.xlu0 %1222
      %1226 = vset.pattern.permute.xlu0 0
      %1227 = vperm.xlu0 %1226, %v873
      %v1228 = vpop.permute.xlu0 %1227
      %1231 = vset.pattern.permute.xlu0 0
      %1232 = vperm.xlu0 %1231, %v874
      %v1233 = vpop.permute.xlu0 %1232
      %1236 = vset.pattern.permute.xlu0 0
      %1237 = vperm.xlu0 %1236, %v875
      %v1238 = vpop.permute.xlu0 %1237
      %1241 = vset.pattern.permute.xlu0 0
      %1242 = vperm.xlu0 %1241, %v876
      %v1243 = vpop.permute.xlu0 %1242
      %1246 = vset.pattern.permute.xlu0 0
      %1247 = vperm.xlu0 %1246, %v877
      %v1248 = vpop.permute.xlu0 %1247
      %1251 = vset.pattern.permute.xlu0 0
      %1252 = vperm.xlu0 %1251, %v878
      %v1253 = vpop.permute.xlu0 %1252
      %1256 = vset.pattern.permute.xlu0 0
      %1257 = vperm.xlu0 %1256, %v879
      %v1258 = vpop.permute.xlu0 %1257
      %1261 = vset.pattern.permute.xlu0 0
      %1262 = vperm.xlu0 %1261, %v880
      %v1263 = vpop.permute.xlu0 %1262
      %1266 = vset.pattern.permute.xlu0 0
      %1267 = vperm.xlu0 %1266, %v881
      %v1268 = vpop.permute.xlu0 %1267
      %1271 = vset.pattern.permute.xlu0 0
      %1272 = vperm.xlu0 %1271, %v882
      %v1273 = vpop.permute.xlu0 %1272
      %1276 = vset.pattern.permute.xlu0 0
      %1277 = vperm.xlu0 %1276, %v883
      %v1278 = vpop.permute.xlu0 %1277
      %1281 = vset.pattern.permute.xlu0 0
      %1282 = vperm.xlu0 %1281, %v884
      %v1283 = vpop.permute.xlu0 %1282
      %1286 = vset.pattern.permute.xlu0 0
      %1287 = vperm.xlu0 %1286, %v885
      %v1288 = vpop.permute.xlu0 %1287
      %1291 = vset.pattern.permute.xlu0 0
      %1292 = vperm.xlu0 %1291, %v886
      %v1293 = vpop.permute.xlu0 %1292
      %1296 = vset.pattern.permute.xlu0 0
      %1297 = vperm.xlu0 %1296, %v887
      %v1298 = vpop.permute.xlu0 %1297
      %1301 = vset.pattern.permute.xlu0 0
      %1302 = vperm.xlu0 %1301, %v888
      %v1303 = vpop.permute.xlu0 %1302
      %1306 = vset.pattern.permute.xlu0 0
      %1307 = vperm.xlu0 %1306, %v889
      %v1308 = vpop.permute.xlu0 %1307
      %1311 = vset.pattern.permute.xlu0 0
      %1312 = vperm.xlu0 %1311, %v890
      %v1313 = vpop.permute.xlu0 %1312
      %1316 = vset.pattern.permute.xlu0 0
      %1317 = vperm.xlu0 %1316, %v891
      %v1318 = vpop.permute.xlu0 %1317
      %1321 = vset.pattern.permute.xlu0 0
      %1322 = vperm.xlu0 %1321, %v892
      %v1323 = vpop.permute.xlu0 %1322
      %1326 = vset.pattern.permute.xlu0 0
      %1327 = vperm.xlu0 %1326, %v893
      %v1328 = vpop.permute.xlu0 %1327
      %1331 = vset.pattern.permute.xlu0 0
      %1332 = vperm.xlu0 %1331, %v894
      %v1333 = vpop.permute.xlu0 %1332
      %1336 = vset.pattern.permute.xlu0 0
      %1337 = vperm.xlu0 %1336, %v895
      %v1338 = vpop.permute.xlu0 %1337
      %1341 = vset.pattern.permute.xlu0 0
      %1342 = vperm.xlu0 %1341, %v896
      %v1343 = vpop.permute.xlu0 %1342
      %1346 = vset.pattern.permute.xlu0 0
      %1347 = vperm.xlu0 %1346, %v897
      %v1348 = vpop.permute.xlu0 %1347
      %1351 = vset.pattern.permute.xlu0 0
      %1352 = vperm.xlu0 %1351, %v898
      %v1353 = vpop.permute.xlu0 %1352
      %1356 = vset.pattern.permute.xlu0 0
      %1357 = vperm.xlu0 %1356, %v899
      %v1358 = vpop.permute.xlu0 %1357
      %1361 = vset.pattern.permute.xlu0 0
      %1362 = vperm.xlu0 %1361, %v900
      %v1363 = vpop.permute.xlu0 %1362
      %1366 = vset.pattern.permute.xlu0 0
      %1367 = vperm.xlu0 %1366, %v901
      %v1368 = vpop.permute.xlu0 %1367
      %1371 = vset.pattern.permute.xlu0 0
      %1372 = vperm.xlu0 %1371, %v902
      %v1373 = vpop.permute.xlu0 %1372
      %1376 = vset.pattern.permute.xlu0 0
      %1377 = vperm.xlu0 %1376, %v903
      %v1378 = vpop.permute.xlu0 %1377
      %1381 = vset.pattern.permute.xlu0 0
      %1382 = vperm.xlu0 %1381, %v904
      %v1383 = vpop.permute.xlu0 %1382
      %1386 = vset.pattern.permute.xlu0 0
      %1387 = vperm.xlu0 %1386, %v905
      %v1388 = vpop.permute.xlu0 %1387
      %1391 = vset.pattern.permute.xlu0 0
      %1392 = vperm.xlu0 %1391, %v906
      %v1393 = vpop.permute.xlu0 %1392
      %1396 = vset.pattern.permute.xlu0 0
      %1397 = vperm.xlu0 %1396, %v907
      %v1398 = vpop.permute.xlu0 %1397
      %1401 = vset.pattern.permute.xlu0 0
      %1402 = vperm.xlu0 %1401, %v908
      %v1403 = vpop.permute.xlu0 %1402
      %1406 = vset.pattern.permute.xlu0 0
      %1407 = vperm.xlu0 %1406, %v909
      %v1408 = vpop.permute.xlu0 %1407
      %v1510 = vunpack.c.l.b16 %v710
      %v1511 = vunpack.c.l.b16 %v711
      %v1512 = vunpack.c.l.b16 %v712
      %v1513 = vunpack.c.l.b16 %v713
      %v1514 = vunpack.c.l.b16 %v714
      %v1515 = vunpack.c.l.b16 %v715
      %v1516 = vunpack.c.l.b16 %v716
      %v1517 = vunpack.c.l.b16 %v717
      %v1518 = vunpack.c.l.b16 %v718
      %v1519 = vunpack.c.l.b16 %v719
      %v1520 = vunpack.c.l.b16 %v720
      %v1521 = vunpack.c.l.b16 %v721
      %v1522 = vunpack.c.l.b16 %v722
      %v1523 = vunpack.c.l.b16 %v723
      %v1524 = vunpack.c.l.b16 %v724
      %v1525 = vunpack.c.l.b16 %v725
      %v1526 = vunpack.c.l.b16 %v726
      %v1527 = vunpack.c.l.b16 %v727
      %v1528 = vunpack.c.l.b16 %v728
      %v1529 = vunpack.c.l.b16 %v729
      %v1530 = vunpack.c.l.b16 %v730
      %v1531 = vunpack.c.l.b16 %v731
      %v1532 = vunpack.c.l.b16 %v732
      %v1533 = vunpack.c.l.b16 %v733
      %v1534 = vunpack.c.l.b16 %v734
      %v1535 = vunpack.c.l.b16 %v735
      %v1536 = vunpack.c.l.b16 %v736
      %v1537 = vunpack.c.l.b16 %v737
      %v1538 = vunpack.c.l.b16 %v738
      %v1539 = vunpack.c.l.b16 %v739
      %v1540 = vunpack.c.l.b16 %v740
      %v1541 = vunpack.c.l.b16 %v741
      %v1542 = vunpack.c.l.b16 %v742
      %v1543 = vunpack.c.l.b16 %v743
      %v1544 = vunpack.c.l.b16 %v744
      %v1545 = vunpack.c.l.b16 %v745
      %v1546 = vunpack.c.l.b16 %v746
      %v1547 = vunpack.c.l.b16 %v747
      %v1548 = vunpack.c.l.b16 %v748
      %v1549 = vunpack.c.l.b16 %v749
      %v1550 = vunpack.c.l.b16 %v750
      %v1551 = vunpack.c.l.b16 %v751
      %v1552 = vunpack.c.l.b16 %v752
      %v1553 = vunpack.c.l.b16 %v753
      %v1554 = vunpack.c.l.b16 %v754
      %v1555 = vunpack.c.l.b16 %v755
      %v1556 = vunpack.c.l.b16 %v756
      %v1557 = vunpack.c.l.b16 %v757
      %v1558 = vunpack.c.l.b16 %v758
      %v1559 = vunpack.c.l.b16 %v759
      %v1560 = vunpack.c.l.b16 %v760
      %v1561 = vunpack.c.l.b16 %v761
      %v1562 = vunpack.c.l.b16 %v762
      %v1563 = vunpack.c.l.b16 %v763
      %v1564 = vunpack.c.l.b16 %v764
      %v1565 = vunpack.c.l.b16 %v765
      %v1566 = vunpack.c.l.b16 %v766
      %v1567 = vunpack.c.l.b16 %v767
      %v1568 = vunpack.c.l.b16 %v768
      %v1569 = vunpack.c.l.b16 %v769
      %v1570 = vunpack.c.l.b16 %v770
      %v1571 = vunpack.c.l.b16 %v771
      %v1572 = vunpack.c.l.b16 %v772
      %v1573 = vunpack.c.l.b16 %v773
      %v1574 = vunpack.c.l.b16 %v774
      %v1575 = vunpack.c.l.b16 %v775
      %v1576 = vunpack.c.l.b16 %v776
      %v1577 = vunpack.c.l.b16 %v777
      %v1578 = vunpack.c.l.b16 %v778
      %v1579 = vunpack.c.l.b16 %v779
      %v1580 = vunpack.c.l.b16 %v780
      %v1581 = vunpack.c.l.b16 %v781
      %v1582 = vunpack.c.l.b16 %v782
      %v1583 = vunpack.c.l.b16 %v783
      %v1584 = vunpack.c.l.b16 %v784
      %v1585 = vunpack.c.l.b16 %v785
      %v1586 = vunpack.c.l.b16 %v786
      %v1587 = vunpack.c.l.b16 %v787
      %v1588 = vunpack.c.l.b16 %v788
      %v1589 = vunpack.c.l.b16 %v789
      %v1590 = vunpack.c.l.b16 %v790
      %v1591 = vunpack.c.l.b16 %v791
      %v1592 = vunpack.c.l.b16 %v792
      %v1593 = vunpack.c.l.b16 %v793
      %v1594 = vunpack.c.l.b16 %v794
      %v1595 = vunpack.c.l.b16 %v795
      %v1596 = vunpack.c.l.b16 %v796
      %v1597 = vunpack.c.l.b16 %v797
      %v1598 = vunpack.c.l.b16 %v798
      %v1599 = vunpack.c.l.b16 %v799
      %v1600 = vunpack.c.l.b16 %v800
      %v1601 = vunpack.c.l.b16 %v801
      %v1602 = vunpack.c.l.b16 %v802
      %v1603 = vunpack.c.l.b16 %v803
      %v1604 = vunpack.c.l.b16 %v804
      %v1605 = vunpack.c.l.b16 %v805
      %v1606 = vunpack.c.l.b16 %v806
      %v1607 = vunpack.c.l.b16 %v807
      %v1608 = vunpack.c.l.b16 %v808
      %v1609 = vunpack.c.l.b16 %v809
      %v1610 = vpack.c.b16 %v1511, %v1510
      %v1611 = vpack.c.b16 %v1513, %v1512
      %v1612 = vpack.c.b16 %v1515, %v1514
      %v1613 = vpack.c.b16 %v1517, %v1516
      %v1614 = vpack.c.b16 %v1519, %v1518
      %v1615 = vpack.c.b16 %v1521, %v1520
      %v1616 = vpack.c.b16 %v1523, %v1522
      %v1617 = vpack.c.b16 %v1525, %v1524
      %v1618 = vpack.c.b16 %v1527, %v1526
      %v1619 = vpack.c.b16 %v1529, %v1528
      %v1620 = vpack.c.b16 %v1531, %v1530
      %v1621 = vpack.c.b16 %v1533, %v1532
      %v1622 = vpack.c.b16 %v1535, %v1534
      %v1623 = vpack.c.b16 %v1537, %v1536
      %v1624 = vpack.c.b16 %v1539, %v1538
      %v1625 = vpack.c.b16 %v1541, %v1540
      %v1626 = vpack.c.b16 %v1543, %v1542
      %v1627 = vpack.c.b16 %v1545, %v1544
      %v1628 = vpack.c.b16 %v1547, %v1546
      %v1629 = vpack.c.b16 %v1549, %v1548
      %v1630 = vpack.c.b16 %v1551, %v1550
      %v1631 = vpack.c.b16 %v1553, %v1552
      %v1632 = vpack.c.b16 %v1555, %v1554
      %v1633 = vpack.c.b16 %v1557, %v1556
      %v1634 = vpack.c.b16 %v1559, %v1558
      %v1635 = vpack.c.b16 %v1561, %v1560
      %v1636 = vpack.c.b16 %v1563, %v1562
      %v1637 = vpack.c.b16 %v1565, %v1564
      %v1638 = vpack.c.b16 %v1567, %v1566
      %v1639 = vpack.c.b16 %v1569, %v1568
      %v1640 = vpack.c.b16 %v1571, %v1570
      %v1641 = vpack.c.b16 %v1573, %v1572
      %v1642 = vpack.c.b16 %v1575, %v1574
      %v1643 = vpack.c.b16 %v1577, %v1576
      %v1644 = vpack.c.b16 %v1579, %v1578
      %v1645 = vpack.c.b16 %v1581, %v1580
      %v1646 = vpack.c.b16 %v1583, %v1582
      %v1647 = vpack.c.b16 %v1585, %v1584
      %v1648 = vpack.c.b16 %v1587, %v1586
      %v1649 = vpack.c.b16 %v1589, %v1588
      %v1650 = vpack.c.b16 %v1591, %v1590
      %v1651 = vpack.c.b16 %v1593, %v1592
      %v1652 = vpack.c.b16 %v1595, %v1594
      %v1653 = vpack.c.b16 %v1597, %v1596
      %v1654 = vpack.c.b16 %v1599, %v1598
      %v1655 = vpack.c.b16 %v1601, %v1600
      %v1656 = vpack.c.b16 %v1603, %v1602
      %v1657 = vpack.c.b16 %v1605, %v1604
      %v1658 = vpack.c.b16 %v1607, %v1606
      %v1659 = vpack.c.b16 %v1609, %v1608
      %vm1660 = vcmask 261120
      %v1662 = vsel %vm1660, %v1610, 0
      %v1665 = vsel %vm1660, %v1611, 0
      %v1668 = vsel %vm1660, %v1612, 0
      %v1671 = vsel %vm1660, %v1613, 0
      %v1674 = vsel %vm1660, %v1614, 0
      %v1677 = vsel %vm1660, %v1615, 0
      %v1680 = vsel %vm1660, %v1616, 0
      %v1683 = vsel %vm1660, %v1617, 0
      %v1686 = vsel %vm1660, %v1618, 0
      %v1689 = vsel %vm1660, %v1619, 0
      %v1692 = vsel %vm1660, %v1620, 0
      %v1695 = vsel %vm1660, %v1621, 0
      %v1698 = vsel %vm1660, %v1622, 0
      %v1701 = vsel %vm1660, %v1623, 0
      %v1704 = vsel %vm1660, %v1624, 0
      %v1707 = vsel %vm1660, %v1625, 0
      %v1710 = vsel %vm1660, %v1626, 0
      %v1713 = vsel %vm1660, %v1627, 0
      %v1716 = vsel %vm1660, %v1628, 0
      %v1719 = vsel %vm1660, %v1629, 0
      %v1722 = vsel %vm1660, %v1630, 0
      %v1725 = vsel %vm1660, %v1631, 0
      %v1728 = vsel %vm1660, %v1632, 0
      %v1731 = vsel %vm1660, %v1633, 0
      %v1734 = vsel %vm1660, %v1634, 0
      %v1737 = vsel %vm1660, %v1635, 0
      %v1740 = vsel %vm1660, %v1636, 0
      %v1743 = vsel %vm1660, %v1637, 0
      %v1746 = vsel %vm1660, %v1638, 0
      %v1749 = vsel %vm1660, %v1639, 0
      %v1752 = vsel %vm1660, %v1640, 0
      %v1755 = vsel %vm1660, %v1641, 0
      %v1758 = vsel %vm1660, %v1642, 0
      %v1761 = vsel %vm1660, %v1643, 0
      %v1764 = vsel %vm1660, %v1644, 0
      %v1767 = vsel %vm1660, %v1645, 0
      %v1770 = vsel %vm1660, %v1646, 0
      %v1773 = vsel %vm1660, %v1647, 0
      %v1776 = vsel %vm1660, %v1648, 0
      %v1779 = vsel %vm1660, %v1649, 0
      %v1782 = vsel %vm1660, %v1650, 0
      %v1785 = vsel %vm1660, %v1651, 0
      %v1788 = vsel %vm1660, %v1652, 0
      %v1791 = vsel %vm1660, %v1653, 0
      %v1794 = vsel %vm1660, %v1654, 0
      %v1797 = vsel %vm1660, %v1655, 0
      %v1800 = vsel %vm1660, %v1656, 0
      %v1803 = vsel %vm1660, %v1657, 0
      %v1806 = vsel %vm1660, %v1658, 0
      %v1809 = vsel %vm1660, %v1659, 0
      %1811 = vmatprep.subr.bf16.mxu0 0
      %1812 = vmatpush1.bf16.msra.mxu0 %v708
      %1813 = vmatprep.subr.bf16.mxu0 0
      %1814 = vmatpush1.bf16.msra.mxu0 %v709
      %1815 = vmatprep.subr.bf16.mxu0 0
      %1816 = vmatpush1.bf16.msra.mxu0 0
      %1817 = vmatprep.subr.bf16.mxu0 0
      %1818 = vmatpush1.bf16.msra.mxu0 0
      %1819 = vmatprep.subr.bf16.mxu0 0
      %1820 = vmatpush1.bf16.msra.mxu0 0
      %1821 = vmatprep.subr.bf16.mxu0 0
      %1822 = vmatpush1.bf16.msra.mxu0 0
      %1823 = vmatprep.subr.bf16.mxu0 0
      %1824 = vmatpush1.bf16.msra.mxu0 0
      %1825 = vmatprep.subr.bf16.mxu0 0
      %1826 = vmatpush1.bf16.msra.mxu0 0
      %1827 = vmatprep.subr.bf16.mxu0 0
      %1828 = vmatpush1.bf16.msra.mxu0 0
      %1829 = vmatprep.subr.bf16.mxu0 0
      %1830 = vmatpush1.bf16.msra.mxu0 0
      %1831 = vmatprep.subr.bf16.mxu0 0
      %1832 = vmatpush1.bf16.msra.mxu0 0
      %1833 = vmatprep.subr.bf16.mxu0 0
      %1834 = vmatpush1.bf16.msra.mxu0 0
      %1835 = vmatprep.subr.bf16.mxu0 0
      %1836 = vmatpush1.bf16.msra.mxu0 0
      %1837 = vmatprep.subr.bf16.mxu0 0
      %1838 = vmatpush1.bf16.msra.mxu0 0
      %1839 = vmatprep.subr.bf16.mxu0 0
      %1840 = vmatpush1.bf16.msra.mxu0 0
      %1841 = vmatprep.subr.bf16.mxu0 0
      %1842 = vmatpush1.bf16.msra.mxu0 0
      %1843 = vmatprep.mubr.bf16.mxu0 0
      %1844 = vmatmul.mubr.bf16.gmra.mrb[0].mxu0 %v1662
      %v1845 = vpop.f32.mrb[0].mxu0
      %v1846 = vadd.f32 %v913, %v1845
      %v1847 = vpop.f32.mrb[0].mxu0
      %v1848 = vpop.f32.mrb[0].mxu0
      %v1849 = vadd.f32 %v918, %v1848
      %v1850 = vpop.f32.mrb[0].mxu0
      %1851 = vmatprep.mubr.bf16.mxu0 0
      %1852 = vmatmul.mubr.bf16.gmra.mrb[0].mxu0 %v1665
      %v1853 = vpop.f32.mrb[0].mxu0
      %v1854 = vadd.f32 %v923, %v1853
      %v1855 = vpop.f32.mrb[0].mxu0
      %v1856 = vpop.f32.mrb[0].mxu0
      %v1857 = vadd.f32 %v928, %v1856
      %v1858 = vpop.f32.mrb[0].mxu0
      %1859 = vmatprep.mubr.bf16.mxu0 0
      %1860 = vmatmul.mubr.bf16.gmra.mrb[0].mxu0 %v1668
      %v1861 = vpop.f32.mrb[0].mxu0
      %v1862 = vadd.f32 %v933, %v1861
      %v1863 = vpop.f32.mrb[0].mxu0
      %v1864 = vpop.f32.mrb[0].mxu0
      %v1865 = vadd.f32 %v938, %v1864
      %v1866 = vpop.f32.mrb[0].mxu0
      %1867 = vmatprep.mubr.bf16.mxu0 0
      %1868 = vmatmul.mubr.bf16.gmra.mrb[0].mxu0 %v1671
      %v1869 = vpop.f32.mrb[0].mxu0
      %v1870 = vadd.f32 %v943, %v1869
      %v1871 = vpop.f32.mrb[0].mxu0
      %v1872 = vpop.f32.mrb[0].mxu0
      %v1873 = vadd.f32 %v948, %v1872
      %v1874 = vpop.f32.mrb[0].mxu0
      %1875 = vmatprep.mubr.bf16.mxu0 0
      %1876 = vmatmul.mubr.bf16.gmra.mrb[0].mxu0 %v1674
      %v1877 = vpop.f32.mrb[0].mxu0
      %v1878 = vadd.f32 %v953, %v1877
      %v1879 = vpop.f32.mrb[0].mxu0
      %v1880 = vpop.f32.mrb[0].mxu0
      %v1881 = vadd.f32 %v958, %v1880
      %v1882 = vpop.f32.mrb[0].mxu0
      %1883 = vmatprep.mubr.bf16.mxu0 0
      %1884 = vmatmul.mubr.bf16.gmra.mrb[0].mxu0 %v1677
      %v1885 = vpop.f32.mrb[0].mxu0
      %v1886 = vadd.f32 %v963, %v1885
      %v1887 = vpop.f32.mrb[0].mxu0
      %v1888 = vpop.f32.mrb[0].mxu0
      %v1889 = vadd.f32 %v968, %v1888
      %v1890 = vpop.f32.mrb[0].mxu0
      %1891 = vmatprep.mubr.bf16.mxu0 0
      %1892 = vmatmul.mubr.bf16.gmra.mrb[0].mxu0 %v1680
      %v1893 = vpop.f32.mrb[0].mxu0
      %v1894 = vadd.f32 %v973, %v1893
      %v1895 = vpop.f32.mrb[0].mxu0
      %v1896 = vpop.f32.mrb[0].mxu0
      %v1897 = vadd.f32 %v978, %v1896
      %v1898 = vpop.f32.mrb[0].mxu0
      %1899 = vmatprep.mubr.bf16.mxu0 0
      %1900 = vmatmul.mubr.bf16.gmra.mrb[0].mxu0 %v1683
      %v1901 = vpop.f32.mrb[0].mxu0
      %v1902 = vadd.f32 %v983, %v1901
      %v1903 = vpop.f32.mrb[0].mxu0
      %v1904 = vpop.f32.mrb[0].mxu0
      %v1905 = vadd.f32 %v988, %v1904
      %v1906 = vpop.f32.mrb[0].mxu0
      %1907 = vmatprep.mubr.bf16.mxu0 0
      %1908 = vmatmul.mubr.bf16.gmra.mrb[0].mxu0 %v1686
      %v1909 = vpop.f32.mrb[0].mxu0
      %v1910 = vadd.f32 %v993, %v1909
      %v1911 = vpop.f32.mrb[0].mxu0
      %v1912 = vpop.f32.mrb[0].mxu0
      %v1913 = vadd.f32 %v998, %v1912
      %v1914 = vpop.f32.mrb[0].mxu0
      %1915 = vmatprep.mubr.bf16.mxu0 0
      %1916 = vmatmul.mubr.bf16.gmra.mrb[0].mxu0 %v1689
      %v1917 = vpop.f32.mrb[0].mxu0
      %v1918 = vadd.f32 %v1003, %v1917
      %v1919 = vpop.f32.mrb[0].mxu0
      %v1920 = vpop.f32.mrb[0].mxu0
      %v1921 = vadd.f32 %v1008, %v1920
      %v1922 = vpop.f32.mrb[0].mxu0
      %1923 = vmatprep.mubr.bf16.mxu0 0
      %1924 = vmatmul.mubr.bf16.gmra.mrb[0].mxu0 %v1692
      %v1925 = vpop.f32.mrb[0].mxu0
      %v1926 = vadd.f32 %v1013, %v1925
      %v1927 = vpop.f32.mrb[0].mxu0
      %v1928 = vpop.f32.mrb[0].mxu0
      %v1929 = vadd.f32 %v1018, %v1928
      %v1930 = vpop.f32.mrb[0].mxu0
      %1931 = vmatprep.mubr.bf16.mxu0 0
      %1932 = vmatmul.mubr.bf16.gmra.mrb[0].mxu0 %v1695
      %v1933 = vpop.f32.mrb[0].mxu0
      %v1934 = vadd.f32 %v1023, %v1933
      %v1935 = vpop.f32.mrb[0].mxu0
      %v1936 = vpop.f32.mrb[0].mxu0
      %v1937 = vadd.f32 %v1028, %v1936
      %v1938 = vpop.f32.mrb[0].mxu0
      %1939 = vmatprep.mubr.bf16.mxu0 0
      %1940 = vmatmul.mubr.bf16.gmra.mrb[0].mxu0 %v1698
      %v1941 = vpop.f32.mrb[0].mxu0
      %v1942 = vadd.f32 %v1033, %v1941
      %v1943 = vpop.f32.mrb[0].mxu0
      %v1944 = vpop.f32.mrb[0].mxu0
      %v1945 = vadd.f32 %v1038, %v1944
      %v1946 = vpop.f32.mrb[0].mxu0
      %1947 = vmatprep.mubr.bf16.mxu0 0
      %1948 = vmatmul.mubr.bf16.gmra.mrb[0].mxu0 %v1701
      %v1949 = vpop.f32.mrb[0].mxu0
      %v1950 = vadd.f32 %v1043, %v1949
      %v1951 = vpop.f32.mrb[0].mxu0
      %v1952 = vpop.f32.mrb[0].mxu0
      %v1953 = vadd.f32 %v1048, %v1952
      %v1954 = vpop.f32.mrb[0].mxu0
      %1955 = vmatprep.mubr.bf16.mxu0 0
      %1956 = vmatmul.mubr.bf16.gmra.mrb[0].mxu0 %v1704
      %v1957 = vpop.f32.mrb[0].mxu0
      %v1958 = vadd.f32 %v1053, %v1957
      %v1959 = vpop.f32.mrb[0].mxu0
      %v1960 = vpop.f32.mrb[0].mxu0
      %v1961 = vadd.f32 %v1058, %v1960
      %v1962 = vpop.f32.mrb[0].mxu0
      %1963 = vmatprep.mubr.bf16.mxu0 0
      %1964 = vmatmul.mubr.bf16.gmra.mrb[0].mxu0 %v1707
      %v1965 = vpop.f32.mrb[0].mxu0
      %v1966 = vadd.f32 %v1063, %v1965
      %v1967 = vpop.f32.mrb[0].mxu0
      %v1968 = vpop.f32.mrb[0].mxu0
      %v1969 = vadd.f32 %v1068, %v1968
      %v1970 = vpop.f32.mrb[0].mxu0
      %1971 = vmatprep.mubr.bf16.mxu0 0
      %1972 = vmatmul.mubr.bf16.gmra.mrb[0].mxu0 %v1710
      %v1973 = vpop.f32.mrb[0].mxu0
      %v1974 = vadd.f32 %v1073, %v1973
      %v1975 = vpop.f32.mrb[0].mxu0
      %v1976 = vpop.f32.mrb[0].mxu0
      %v1977 = vadd.f32 %v1078, %v1976
      %v1978 = vpop.f32.mrb[0].mxu0
      %1979 = vmatprep.mubr.bf16.mxu0 0
      %1980 = vmatmul.mubr.bf16.gmra.mrb[0].mxu0 %v1713
      %v1981 = vpop.f32.mrb[0].mxu0
      %v1982 = vadd.f32 %v1083, %v1981
      %v1983 = vpop.f32.mrb[0].mxu0
      %v1984 = vpop.f32.mrb[0].mxu0
      %v1985 = vadd.f32 %v1088, %v1984
      %v1986 = vpop.f32.mrb[0].mxu0
      %1987 = vmatprep.mubr.bf16.mxu0 0
      %1988 = vmatmul.mubr.bf16.gmra.mrb[0].mxu0 %v1716
      %v1989 = vpop.f32.mrb[0].mxu0
      %v1990 = vadd.f32 %v1093, %v1989
      %v1991 = vpop.f32.mrb[0].mxu0
      %v1992 = vpop.f32.mrb[0].mxu0
      %v1993 = vadd.f32 %v1098, %v1992
      %v1994 = vpop.f32.mrb[0].mxu0
      %1995 = vmatprep.mubr.bf16.mxu0 0
      %1996 = vmatmul.mubr.bf16.gmra.mrb[0].mxu0 %v1719
      %v1997 = vpop.f32.mrb[0].mxu0
      %v1998 = vadd.f32 %v1103, %v1997
      %v1999 = vpop.f32.mrb[0].mxu0
      %v2000 = vpop.f32.mrb[0].mxu0
      %v2001 = vadd.f32 %v1108, %v2000
      %v2002 = vpop.f32.mrb[0].mxu0
      %2003 = vmatprep.mubr.bf16.mxu0 0
      %2004 = vmatmul.mubr.bf16.gmra.mrb[0].mxu0 %v1722
      %v2005 = vpop.f32.mrb[0].mxu0
      %v2006 = vadd.f32 %v1113, %v2005
      %v2007 = vpop.f32.mrb[0].mxu0
      %v2008 = vpop.f32.mrb[0].mxu0
      %v2009 = vadd.f32 %v1118, %v2008
      %v2010 = vpop.f32.mrb[0].mxu0
      %2011 = vmatprep.mubr.bf16.mxu0 0
      %2012 = vmatmul.mubr.bf16.gmra.mrb[0].mxu0 %v1725
      %v2013 = vpop.f32.mrb[0].mxu0
      %v2014 = vadd.f32 %v1123, %v2013
      %v2015 = vpop.f32.mrb[0].mxu0
      %v2016 = vpop.f32.mrb[0].mxu0
      %v2017 = vadd.f32 %v1128, %v2016
      %v2018 = vpop.f32.mrb[0].mxu0
      %2019 = vmatprep.mubr.bf16.mxu0 0
      %2020 = vmatmul.mubr.bf16.gmra.mrb[0].mxu0 %v1728
      %v2021 = vpop.f32.mrb[0].mxu0
      %v2022 = vadd.f32 %v1133, %v2021
      %v2023 = vpop.f32.mrb[0].mxu0
      %v2024 = vpop.f32.mrb[0].mxu0
      %v2025 = vadd.f32 %v1138, %v2024
      %v2026 = vpop.f32.mrb[0].mxu0
      %2027 = vmatprep.mubr.bf16.mxu0 0
      %2028 = vmatmul.mubr.bf16.gmra.mrb[0].mxu0 %v1731
      %v2029 = vpop.f32.mrb[0].mxu0
      %v2030 = vadd.f32 %v1143, %v2029
      %v2031 = vpop.f32.mrb[0].mxu0
      %v2032 = vpop.f32.mrb[0].mxu0
      %v2033 = vadd.f32 %v1148, %v2032
      %v2034 = vpop.f32.mrb[0].mxu0
      %2035 = vmatprep.mubr.bf16.mxu0 0
      %2036 = vmatmul.mubr.bf16.gmra.mrb[0].mxu0 %v1734
      %v2037 = vpop.f32.mrb[0].mxu0
      %v2038 = vadd.f32 %v1153, %v2037
      %v2039 = vpop.f32.mrb[0].mxu0
      %v2040 = vpop.f32.mrb[0].mxu0
      %v2041 = vadd.f32 %v1158, %v2040
      %v2042 = vpop.f32.mrb[0].mxu0
      %2043 = vmatprep.mubr.bf16.mxu0 0
      %2044 = vmatmul.mubr.bf16.gmra.mrb[0].mxu0 %v1737
      %v2045 = vpop.f32.mrb[0].mxu0
      %v2046 = vadd.f32 %v1163, %v2045
      %v2047 = vpop.f32.mrb[0].mxu0
      %v2048 = vpop.f32.mrb[0].mxu0
      %v2049 = vadd.f32 %v1168, %v2048
      %v2050 = vpop.f32.mrb[0].mxu0
      %2051 = vmatprep.mubr.bf16.mxu0 0
      %2052 = vmatmul.mubr.bf16.gmra.mrb[0].mxu0 %v1740
      %v2053 = vpop.f32.mrb[0].mxu0
      %v2054 = vadd.f32 %v1173, %v2053
      %v2055 = vpop.f32.mrb[0].mxu0
      %v2056 = vpop.f32.mrb[0].mxu0
      %v2057 = vadd.f32 %v1178, %v2056
      %v2058 = vpop.f32.mrb[0].mxu0
      %2059 = vmatprep.mubr.bf16.mxu0 0
      %2060 = vmatmul.mubr.bf16.gmra.mrb[0].mxu0 %v1743
      %v2061 = vpop.f32.mrb[0].mxu0
      %v2062 = vadd.f32 %v1183, %v2061
      %v2063 = vpop.f32.mrb[0].mxu0
      %v2064 = vpop.f32.mrb[0].mxu0
      %v2065 = vadd.f32 %v1188, %v2064
      %v2066 = vpop.f32.mrb[0].mxu0
      %2067 = vmatprep.mubr.bf16.mxu0 0
      %2068 = vmatmul.mubr.bf16.gmra.mrb[0].mxu0 %v1746
      %v2069 = vpop.f32.mrb[0].mxu0
      %v2070 = vadd.f32 %v1193, %v2069
      %v2071 = vpop.f32.mrb[0].mxu0
      %v2072 = vpop.f32.mrb[0].mxu0
      %v2073 = vadd.f32 %v1198, %v2072
      %v2074 = vpop.f32.mrb[0].mxu0
      %2075 = vmatprep.mubr.bf16.mxu0 0
      %2076 = vmatmul.mubr.bf16.gmra.mrb[0].mxu0 %v1749
      %v2077 = vpop.f32.mrb[0].mxu0
      %v2078 = vadd.f32 %v1203, %v2077
      %v2079 = vpop.f32.mrb[0].mxu0
      %v2080 = vpop.f32.mrb[0].mxu0
      %v2081 = vadd.f32 %v1208, %v2080
      %v2082 = vpop.f32.mrb[0].mxu0
      %2083 = vmatprep.mubr.bf16.mxu0 0
      %2084 = vmatmul.mubr.bf16.gmra.mrb[0].mxu0 %v1752
      %v2085 = vpop.f32.mrb[0].mxu0
      %v2086 = vadd.f32 %v1213, %v2085
      %v2087 = vpop.f32.mrb[0].mxu0
      %v2088 = vpop.f32.mrb[0].mxu0
      %v2089 = vadd.f32 %v1218, %v2088
      %v2090 = vpop.f32.mrb[0].mxu0
      %2091 = vmatprep.mubr.bf16.mxu0 0
      %2092 = vmatmul.mubr.bf16.gmra.mrb[0].mxu0 %v1755
      %v2093 = vpop.f32.mrb[0].mxu0
      %v2094 = vadd.f32 %v1223, %v2093
      %v2095 = vpop.f32.mrb[0].mxu0
      %v2096 = vpop.f32.mrb[0].mxu0
      %v2097 = vadd.f32 %v1228, %v2096
      %v2098 = vpop.f32.mrb[0].mxu0
      %2099 = vmatprep.mubr.bf16.mxu0 0
      %2100 = vmatmul.mubr.bf16.gmra.mrb[0].mxu0 %v1758
      %v2101 = vpop.f32.mrb[0].mxu0
      %v2102 = vadd.f32 %v1233, %v2101
      %v2103 = vpop.f32.mrb[0].mxu0
      %v2104 = vpop.f32.mrb[0].mxu0
      %v2105 = vadd.f32 %v1238, %v2104
      %v2106 = vpop.f32.mrb[0].mxu0
      %2107 = vmatprep.mubr.bf16.mxu0 0
      %2108 = vmatmul.mubr.bf16.gmra.mrb[0].mxu0 %v1761
      %v2109 = vpop.f32.mrb[0].mxu0
      %v2110 = vadd.f32 %v1243, %v2109
      %v2111 = vpop.f32.mrb[0].mxu0
      %v2112 = vpop.f32.mrb[0].mxu0
      %v2113 = vadd.f32 %v1248, %v2112
      %v2114 = vpop.f32.mrb[0].mxu0
      %2115 = vmatprep.mubr.bf16.mxu0 0
      %2116 = vmatmul.mubr.bf16.gmra.mrb[0].mxu0 %v1764
      %v2117 = vpop.f32.mrb[0].mxu0
      %v2118 = vadd.f32 %v1253, %v2117
      %v2119 = vpop.f32.mrb[0].mxu0
      %v2120 = vpop.f32.mrb[0].mxu0
      %v2121 = vadd.f32 %v1258, %v2120
      %v2122 = vpop.f32.mrb[0].mxu0
      %2123 = vmatprep.mubr.bf16.mxu0 0
      %2124 = vmatmul.mubr.bf16.gmra.mrb[0].mxu0 %v1767
      %v2125 = vpop.f32.mrb[0].mxu0
      %v2126 = vadd.f32 %v1263, %v2125
      %v2127 = vpop.f32.mrb[0].mxu0
      %v2128 = vpop.f32.mrb[0].mxu0
      %v2129 = vadd.f32 %v1268, %v2128
      %v2130 = vpop.f32.mrb[0].mxu0
      %2131 = vmatprep.mubr.bf16.mxu0 0
      %2132 = vmatmul.mubr.bf16.gmra.mrb[0].mxu0 %v1770
      %v2133 = vpop.f32.mrb[0].mxu0
      %v2134 = vadd.f32 %v1273, %v2133
      %v2135 = vpop.f32.mrb[0].mxu0
      %v2136 = vpop.f32.mrb[0].mxu0
      %v2137 = vadd.f32 %v1278, %v2136
      %v2138 = vpop.f32.mrb[0].mxu0
      %2139 = vmatprep.mubr.bf16.mxu0 0
      %2140 = vmatmul.mubr.bf16.gmra.mrb[0].mxu0 %v1773
      %v2141 = vpop.f32.mrb[0].mxu0
      %v2142 = vadd.f32 %v1283, %v2141
      %v2143 = vpop.f32.mrb[0].mxu0
      %v2144 = vpop.f32.mrb[0].mxu0
      %v2145 = vadd.f32 %v1288, %v2144
      %v2146 = vpop.f32.mrb[0].mxu0
      %2147 = vmatprep.mubr.bf16.mxu0 0
      %2148 = vmatmul.mubr.bf16.gmra.mrb[0].mxu0 %v1776
      %v2149 = vpop.f32.mrb[0].mxu0
      %v2150 = vadd.f32 %v1293, %v2149
      %v2151 = vpop.f32.mrb[0].mxu0
      %v2152 = vpop.f32.mrb[0].mxu0
      %v2153 = vadd.f32 %v1298, %v2152
      %v2154 = vpop.f32.mrb[0].mxu0
      %2155 = vmatprep.mubr.bf16.mxu0 0
      %2156 = vmatmul.mubr.bf16.gmra.mrb[0].mxu0 %v1779
      %v2157 = vpop.f32.mrb[0].mxu0
      %v2158 = vadd.f32 %v1303, %v2157
      %v2159 = vpop.f32.mrb[0].mxu0
      %v2160 = vpop.f32.mrb[0].mxu0
      %v2161 = vadd.f32 %v1308, %v2160
      %v2162 = vpop.f32.mrb[0].mxu0
      %2163 = vmatprep.mubr.bf16.mxu0 0
      %2164 = vmatmul.mubr.bf16.gmra.mrb[0].mxu0 %v1782
      %v2165 = vpop.f32.mrb[0].mxu0
      %v2166 = vadd.f32 %v1313, %v2165
      %v2167 = vpop.f32.mrb[0].mxu0
      %v2168 = vpop.f32.mrb[0].mxu0
      %v2169 = vadd.f32 %v1318, %v2168
      %v2170 = vpop.f32.mrb[0].mxu0
      %2171 = vmatprep.mubr.bf16.mxu0 0
      %2172 = vmatmul.mubr.bf16.gmra.mrb[0].mxu0 %v1785
      %v2173 = vpop.f32.mrb[0].mxu0
      %v2174 = vadd.f32 %v1323, %v2173
      %v2175 = vpop.f32.mrb[0].mxu0
      %v2176 = vpop.f32.mrb[0].mxu0
      %v2177 = vadd.f32 %v1328, %v2176
      %v2178 = vpop.f32.mrb[0].mxu0
      %2179 = vmatprep.mubr.bf16.mxu0 0
      %2180 = vmatmul.mubr.bf16.gmra.mrb[0].mxu0 %v1788
      %v2181 = vpop.f32.mrb[0].mxu0
      %v2182 = vadd.f32 %v1333, %v2181
      %v2183 = vpop.f32.mrb[0].mxu0
      %v2184 = vpop.f32.mrb[0].mxu0
      %v2185 = vadd.f32 %v1338, %v2184
      %v2186 = vpop.f32.mrb[0].mxu0
      %2187 = vmatprep.mubr.bf16.mxu0 0
      %2188 = vmatmul.mubr.bf16.gmra.mrb[0].mxu0 %v1791
      %v2189 = vpop.f32.mrb[0].mxu0
      %v2190 = vadd.f32 %v1343, %v2189
      %v2191 = vpop.f32.mrb[0].mxu0
      %v2192 = vpop.f32.mrb[0].mxu0
      %v2193 = vadd.f32 %v1348, %v2192
      %v2194 = vpop.f32.mrb[0].mxu0
      %2195 = vmatprep.mubr.bf16.mxu0 0
      %2196 = vmatmul.mubr.bf16.gmra.mrb[0].mxu0 %v1794
      %v2197 = vpop.f32.mrb[0].mxu0
      %v2198 = vadd.f32 %v1353, %v2197
      %v2199 = vpop.f32.mrb[0].mxu0
      %v2200 = vpop.f32.mrb[0].mxu0
      %v2201 = vadd.f32 %v1358, %v2200
      %v2202 = vpop.f32.mrb[0].mxu0
      %2203 = vmatprep.mubr.bf16.mxu0 0
      %2204 = vmatmul.mubr.bf16.gmra.mrb[0].mxu0 %v1797
      %v2205 = vpop.f32.mrb[0].mxu0
      %v2206 = vadd.f32 %v1363, %v2205
      %v2207 = vpop.f32.mrb[0].mxu0
      %v2208 = vpop.f32.mrb[0].mxu0
      %v2209 = vadd.f32 %v1368, %v2208
      %v2210 = vpop.f32.mrb[0].mxu0
      %2211 = vmatprep.mubr.bf16.mxu0 0
      %2212 = vmatmul.mubr.bf16.gmra.mrb[0].mxu0 %v1800
      %v2213 = vpop.f32.mrb[0].mxu0
      %v2214 = vadd.f32 %v1373, %v2213
      %v2215 = vpop.f32.mrb[0].mxu0
      %v2216 = vpop.f32.mrb[0].mxu0
      %v2217 = vadd.f32 %v1378, %v2216
      %v2218 = vpop.f32.mrb[0].mxu0
      %2219 = vmatprep.mubr.bf16.mxu0 0
      %2220 = vmatmul.mubr.bf16.gmra.mrb[0].mxu0 %v1803
      %v2221 = vpop.f32.mrb[0].mxu0
      %v2222 = vadd.f32 %v1383, %v2221
      %v2223 = vpop.f32.mrb[0].mxu0
      %v2224 = vpop.f32.mrb[0].mxu0
      %v2225 = vadd.f32 %v1388, %v2224
      %v2226 = vpop.f32.mrb[0].mxu0
      %2227 = vmatprep.mubr.bf16.mxu0 0
      %2228 = vmatmul.mubr.bf16.gmra.mrb[0].mxu0 %v1806
      %v2229 = vpop.f32.mrb[0].mxu0
      %v2230 = vadd.f32 %v1393, %v2229
      %v2231 = vpop.f32.mrb[0].mxu0
      %v2232 = vpop.f32.mrb[0].mxu0
      %v2233 = vadd.f32 %v1398, %v2232
      %v2234 = vpop.f32.mrb[0].mxu0
      %2235 = vmatprep.mubr.bf16.mxu0 0
      %2236 = vmatmul.mubr.bf16.gmra.mrb[0].mxu0 %v1809
      %v2237 = vpop.f32.mrb[0].mxu0
      %v2238 = vadd.f32 %v1403, %v2237
      %v2239 = vpop.f32.mrb[0].mxu0
      %v2240 = vpop.f32.mrb[0].mxu0
      %v2241 = vadd.f32 %v1408, %v2240
      %v2242 = vpop.f32.mrb[0].mxu0
      %2243 = vdwg.mxu0
      %v2244 = vmax.f32 %v1846, 0.0
      %v2245 = vmax.f32 %v1849, 0.0
      %v2246 = vmax.f32 %v1854, 0.0
      %v2247 = vmax.f32 %v1857, 0.0
      %v2248 = vmax.f32 %v1862, 0.0
      %v2249 = vmax.f32 %v1865, 0.0
      %v2250 = vmax.f32 %v1870, 0.0
      %v2251 = vmax.f32 %v1873, 0.0
      %v2252 = vmax.f32 %v1878, 0.0
      %v2253 = vmax.f32 %v1881, 0.0
      %v2254 = vmax.f32 %v1886, 0.0
      %v2255 = vmax.f32 %v1889, 0.0
      %v2256 = vmax.f32 %v1894, 0.0
      %v2257 = vmax.f32 %v1897, 0.0
      %v2258 = vmax.f32 %v1902, 0.0
      %v2259 = vmax.f32 %v1905, 0.0
      %v2260 = vmax.f32 %v1910, 0.0
      %v2261 = vmax.f32 %v1913, 0.0
      %v2262 = vmax.f32 %v1918, 0.0
      %v2263 = vmax.f32 %v1921, 0.0
      %v2264 = vmax.f32 %v1926, 0.0
      %v2265 = vmax.f32 %v1929, 0.0
      %v2266 = vmax.f32 %v1934, 0.0
      %v2267 = vmax.f32 %v1937, 0.0
      %v2268 = vmax.f32 %v1942, 0.0
      %v2269 = vmax.f32 %v1945, 0.0
      %v2270 = vmax.f32 %v1950, 0.0
      %v2271 = vmax.f32 %v1953, 0.0
      %v2272 = vmax.f32 %v1958, 0.0
      %v2273 = vmax.f32 %v1961, 0.0
      %v2274 = vmax.f32 %v1966, 0.0
      %v2275 = vmax.f32 %v1969, 0.0
      %v2276 = vmax.f32 %v1974, 0.0
      %v2277 = vmax.f32 %v1977, 0.0
      %v2278 = vmax.f32 %v1982, 0.0
      %v2279 = vmax.f32 %v1985, 0.0
      %v2280 = vmax.f32 %v1990, 0.0
      %v2281 = vmax.f32 %v1993, 0.0
      %v2282 = vmax.f32 %v1998, 0.0
      %v2283 = vmax.f32 %v2001, 0.0
      %v2284 = vmax.f32 %v2006, 0.0
      %v2285 = vmax.f32 %v2009, 0.0
      %v2286 = vmax.f32 %v2014, 0.0
      %v2287 = vmax.f32 %v2017, 0.0
      %v2288 = vmax.f32 %v2022, 0.0
      %v2289 = vmax.f32 %v2025, 0.0
      %v2290 = vmax.f32 %v2030, 0.0
      %v2291 = vmax.f32 %v2033, 0.0
      %v2292 = vmax.f32 %v2038, 0.0
      %v2293 = vmax.f32 %v2041, 0.0
      %v2294 = vmax.f32 %v2046, 0.0
      %v2295 = vmax.f32 %v2049, 0.0
      %v2296 = vmax.f32 %v2054, 0.0
      %v2297 = vmax.f32 %v2057, 0.0
      %v2298 = vmax.f32 %v2062, 0.0
      %v2299 = vmax.f32 %v2065, 0.0
      %v2300 = vmax.f32 %v2070, 0.0
      %v2301 = vmax.f32 %v2073, 0.0
      %v2302 = vmax.f32 %v2078, 0.0
      %v2303 = vmax.f32 %v2081, 0.0
      %v2304 = vmax.f32 %v2086, 0.0
      %v2305 = vmax.f32 %v2089, 0.0
      %v2306 = vmax.f32 %v2094, 0.0
      %v2307 = vmax.f32 %v2097, 0.0
      %v2308 = vmax.f32 %v2102, 0.0
      %v2309 = vmax.f32 %v2105, 0.0
      %v2310 = vmax.f32 %v2110, 0.0
      %v2311 = vmax.f32 %v2113, 0.0
      %v2312 = vmax.f32 %v2118, 0.0
      %v2313 = vmax.f32 %v2121, 0.0
      %v2314 = vmax.f32 %v2126, 0.0
      %v2315 = vmax.f32 %v2129, 0.0
      %v2316 = vmax.f32 %v2134, 0.0
      %v2317 = vmax.f32 %v2137, 0.0
      %v2318 = vmax.f32 %v2142, 0.0
      %v2319 = vmax.f32 %v2145, 0.0
      %v2320 = vmax.f32 %v2150, 0.0
      %v2321 = vmax.f32 %v2153, 0.0
      %v2322 = vmax.f32 %v2158, 0.0
      %v2323 = vmax.f32 %v2161, 0.0
      %v2324 = vmax.f32 %v2166, 0.0
      %v2325 = vmax.f32 %v2169, 0.0
      %v2326 = vmax.f32 %v2174, 0.0
      %v2327 = vmax.f32 %v2177, 0.0
      %v2328 = vmax.f32 %v2182, 0.0
      %v2329 = vmax.f32 %v2185, 0.0
      %v2330 = vmax.f32 %v2190, 0.0
      %v2331 = vmax.f32 %v2193, 0.0
      %v2332 = vmax.f32 %v2198, 0.0
      %v2333 = vmax.f32 %v2201, 0.0
      %v2334 = vmax.f32 %v2206, 0.0
      %v2335 = vmax.f32 %v2209, 0.0
      %v2336 = vmax.f32 %v2214, 0.0
      %v2337 = vmax.f32 %v2217, 0.0
      %v2338 = vmax.f32 %v2222, 0.0
      %v2339 = vmax.f32 %v2225, 0.0
      %v2340 = vmax.f32 %v2230, 0.0
      %v2341 = vmax.f32 %v2233, 0.0
      %v2342 = vmax.f32 %v2238, 0.0
      %v2343 = vmax.f32 %v2241, 0.0
      %vm2344 = vcmask 130048
      %2345 = vst.msk [vmem:[#allocation3] sm:$0xff] %vm2344, %v2244
      %2346 = vst.msk [vmem:[#allocation3 + $0x20] sm:$0xff] %vm2344, %v2245
      %2347 = vst.msk [vmem:[#allocation3 + $0x40] sm:$0xff] %vm2344, %v2246
      %2348 = vst.msk [vmem:[#allocation3 + $0x60] sm:$0xff] %vm2344, %v2247
      %2353 = vrot.lane.b32.xlu0 %v2248, 16
      %v2354 = vpop.permute.xlu0 %2353
      %2355 = vrot.lane.b32.xlu0 %v2249, 16
      %v2356 = vpop.permute.xlu0 %2355
      %2357 = vrot.lane.b32.xlu0 %v2250, 16
      %v2358 = vpop.permute.xlu0 %2357
      %2359 = vrot.lane.b32.xlu0 %v2251, 16
      %v2360 = vpop.permute.xlu0 %2359
      %vm2365 = vcmask 261248
      %2366 = vst.msk [vmem:[#allocation3] sm:$0xff] %vm2365, %v2354
      %2367 = vst.msk [vmem:[#allocation3 + $0x20] sm:$0xff] %vm2365, %v2356
      %2368 = vst.msk [vmem:[#allocation3 + $0x40] sm:$0xff] %vm2365, %v2358
      %2369 = vst.msk [vmem:[#allocation3 + $0x60] sm:$0xff] %vm2365, %v2360
      %2374 = vrot.lane.b32.xlu0 %v2252, 32
      %v2375 = vpop.permute.xlu0 %2374
      %2376 = vrot.lane.b32.xlu0 %v2253, 32
      %v2377 = vpop.permute.xlu0 %2376
      %2378 = vrot.lane.b32.xlu0 %v2254, 32
      %v2379 = vpop.permute.xlu0 %2378
      %2380 = vrot.lane.b32.xlu0 %v2255, 32
      %v2381 = vpop.permute.xlu0 %2380
      %vm2386 = vcmask 392448
      %2387 = vst.msk [vmem:[#allocation3] sm:$0xff] %vm2386, %v2375
      %2388 = vst.msk [vmem:[#allocation3 + $0x20] sm:$0xff] %vm2386, %v2377
      %2389 = vst.msk [vmem:[#allocation3 + $0x40] sm:$0xff] %vm2386, %v2379
      %2390 = vst.msk [vmem:[#allocation3 + $0x60] sm:$0xff] %vm2386, %v2381
      %2395 = vrot.lane.b32.xlu0 %v2256, 48
      %v2396 = vpop.permute.xlu0 %2395
      %2397 = vrot.lane.b32.xlu0 %v2257, 48
      %v2398 = vpop.permute.xlu0 %2397
      %2399 = vrot.lane.b32.xlu0 %v2258, 48
      %v2400 = vpop.permute.xlu0 %2399
      %2401 = vrot.lane.b32.xlu0 %v2259, 48
      %v2402 = vpop.permute.xlu0 %2401
      %vm2407 = vcmask 523648
      %2408 = vst.msk [vmem:[#allocation3] sm:$0xff] %vm2407, %v2396
      %2409 = vst.msk [vmem:[#allocation3 + $0x20] sm:$0xff] %vm2407, %v2398
      %2410 = vst.msk [vmem:[#allocation3 + $0x40] sm:$0xff] %vm2407, %v2400
      %2411 = vst.msk [vmem:[#allocation3 + $0x60] sm:$0xff] %vm2407, %v2402
      %2416 = vrot.lane.b32.xlu0 %v2260, 64
      %v2417 = vpop.permute.xlu0 %2416
      %2418 = vrot.lane.b32.xlu0 %v2261, 64
      %v2419 = vpop.permute.xlu0 %2418
      %2420 = vrot.lane.b32.xlu0 %v2262, 64
      %v2421 = vpop.permute.xlu0 %2420
      %2422 = vrot.lane.b32.xlu0 %v2263, 64
      %v2423 = vpop.permute.xlu0 %2422
      %vm2428 = vcmask 654848
      %2429 = vst.msk [vmem:[#allocation3] sm:$0xff] %vm2428, %v2417
      %2430 = vst.msk [vmem:[#allocation3 + $0x20] sm:$0xff] %vm2428, %v2419
      %2431 = vst.msk [vmem:[#allocation3 + $0x40] sm:$0xff] %vm2428, %v2421
      %2432 = vst.msk [vmem:[#allocation3 + $0x60] sm:$0xff] %vm2428, %v2423
      %2437 = vrot.lane.b32.xlu0 %v2264, 80
      %v2438 = vpop.permute.xlu0 %2437
      %2439 = vrot.lane.b32.xlu0 %v2265, 80
      %v2440 = vpop.permute.xlu0 %2439
      %2441 = vrot.lane.b32.xlu0 %v2266, 80
      %v2442 = vpop.permute.xlu0 %2441
      %2443 = vrot.lane.b32.xlu0 %v2267, 80
      %v2444 = vpop.permute.xlu0 %2443
      %vm2449 = vcmask 786048
      %2450 = vst.msk [vmem:[#allocation3] sm:$0xff] %vm2449, %v2438
      %2451 = vst.msk [vmem:[#allocation3 + $0x20] sm:$0xff] %vm2449, %v2440
      %2452 = vst.msk [vmem:[#allocation3 + $0x40] sm:$0xff] %vm2449, %v2442
      %2453 = vst.msk [vmem:[#allocation3 + $0x60] sm:$0xff] %vm2449, %v2444
      %2458 = vrot.lane.b32.xlu0 %v2268, 96
      %v2459 = vpop.permute.xlu0 %2458
      %2460 = vrot.lane.b32.xlu0 %v2269, 96
      %v2461 = vpop.permute.xlu0 %2460
      %2462 = vrot.lane.b32.xlu0 %v2270, 96
      %v2463 = vpop.permute.xlu0 %2462
      %2464 = vrot.lane.b32.xlu0 %v2271, 96
      %v2465 = vpop.permute.xlu0 %2464
      %vm2470 = vcmask 917248
      %2471 = vst.msk [vmem:[#allocation3] sm:$0xff] %vm2470, %v2459
      %2472 = vst.msk [vmem:[#allocation3 + $0x20] sm:$0xff] %vm2470, %v2461
      %2473 = vst.msk [vmem:[#allocation3 + $0x40] sm:$0xff] %vm2470, %v2463
      %2474 = vst.msk [vmem:[#allocation3 + $0x60] sm:$0xff] %vm2470, %v2465
      %2479 = vrot.lane.b32.xlu0 %v2272, 112
      %v2480 = vpop.permute.xlu0 %2479
      %2481 = vrot.lane.b32.xlu0 %v2273, 112
      %v2482 = vpop.permute.xlu0 %2481
      %2483 = vrot.lane.b32.xlu0 %v2274, 112
      %v2484 = vpop.permute.xlu0 %2483
      %2485 = vrot.lane.b32.xlu0 %v2275, 112
      %v2486 = vpop.permute.xlu0 %2485
      %vm2491 = vcmask 1048448
      %2492 = vst.msk [vmem:[#allocation3] sm:$0xff] %vm2491, %v2480
      %2493 = vst.msk [vmem:[#allocation3 + $0x20] sm:$0xff] %vm2491, %v2482
      %2494 = vst.msk [vmem:[#allocation3 + $0x40] sm:$0xff] %vm2491, %v2484
      %2495 = vst.msk [vmem:[#allocation3 + $0x60] sm:$0xff] %vm2491, %v2486
      %2496 = vst.msk [vmem:[#allocation3 + $0x8] sm:$0xff] %vm2344, %v2276
      %2497 = vst.msk [vmem:[#allocation3 + $0x28] sm:$0xff] %vm2344, %v2277
      %2498 = vst.msk [vmem:[#allocation3 + $0x48] sm:$0xff] %vm2344, %v2278
      %2499 = vst.msk [vmem:[#allocation3 + $0x68] sm:$0xff] %vm2344, %v2279
      %2504 = vrot.lane.b32.xlu0 %v2280, 16
      %v2505 = vpop.permute.xlu0 %2504
      %2506 = vrot.lane.b32.xlu0 %v2281, 16
      %v2507 = vpop.permute.xlu0 %2506
      %2508 = vrot.lane.b32.xlu0 %v2282, 16
      %v2509 = vpop.permute.xlu0 %2508
      %2510 = vrot.lane.b32.xlu0 %v2283, 16
      %v2511 = vpop.permute.xlu0 %2510
      %2516 = vst.msk [vmem:[#allocation3 + $0x8] sm:$0xff] %vm2365, %v2505
      %2517 = vst.msk [vmem:[#allocation3 + $0x28] sm:$0xff] %vm2365, %v2507
      %2518 = vst.msk [vmem:[#allocation3 + $0x48] sm:$0xff] %vm2365, %v2509
      %2519 = vst.msk [vmem:[#allocation3 + $0x68] sm:$0xff] %vm2365, %v2511
      %2524 = vrot.lane.b32.xlu0 %v2284, 32
      %v2525 = vpop.permute.xlu0 %2524
      %2526 = vrot.lane.b32.xlu0 %v2285, 32
      %v2527 = vpop.permute.xlu0 %2526
      %2528 = vrot.lane.b32.xlu0 %v2286, 32
      %v2529 = vpop.permute.xlu0 %2528
      %2530 = vrot.lane.b32.xlu0 %v2287, 32
      %v2531 = vpop.permute.xlu0 %2530
      %2536 = vst.msk [vmem:[#allocation3 + $0x8] sm:$0xff] %vm2386, %v2525
      %2537 = vst.msk [vmem:[#allocation3 + $0x28] sm:$0xff] %vm2386, %v2527
      %2538 = vst.msk [vmem:[#allocation3 + $0x48] sm:$0xff] %vm2386, %v2529
      %2539 = vst.msk [vmem:[#allocation3 + $0x68] sm:$0xff] %vm2386, %v2531
      %2544 = vrot.lane.b32.xlu0 %v2288, 48
      %v2545 = vpop.permute.xlu0 %2544
      %2546 = vrot.lane.b32.xlu0 %v2289, 48
      %v2547 = vpop.permute.xlu0 %2546
      %2548 = vrot.lane.b32.xlu0 %v2290, 48
      %v2549 = vpop.permute.xlu0 %2548
      %2550 = vrot.lane.b32.xlu0 %v2291, 48
      %v2551 = vpop.permute.xlu0 %2550
      %2556 = vst.msk [vmem:[#allocation3 + $0x8] sm:$0xff] %vm2407, %v2545
      %2557 = vst.msk [vmem:[#allocation3 + $0x28] sm:$0xff] %vm2407, %v2547
      %2558 = vst.msk [vmem:[#allocation3 + $0x48] sm:$0xff] %vm2407, %v2549
      %2559 = vst.msk [vmem:[#allocation3 + $0x68] sm:$0xff] %vm2407, %v2551
      %2564 = vrot.lane.b32.xlu0 %v2292, 64
      %v2565 = vpop.permute.xlu0 %2564
      %2566 = vrot.lane.b32.xlu0 %v2293, 64
      %v2567 = vpop.permute.xlu0 %2566
      %2568 = vrot.lane.b32.xlu0 %v2294, 64
      %v2569 = vpop.permute.xlu0 %2568
      %2570 = vrot.lane.b32.xlu0 %v2295, 64
      %v2571 = vpop.permute.xlu0 %2570
      %2576 = vst.msk [vmem:[#allocation3 + $0x8] sm:$0xff] %vm2428, %v2565
      %2577 = vst.msk [vmem:[#allocation3 + $0x28] sm:$0xff] %vm2428, %v2567
      %2578 = vst.msk [vmem:[#allocation3 + $0x48] sm:$0xff] %vm2428, %v2569
      %2579 = vst.msk [vmem:[#allocation3 + $0x68] sm:$0xff] %vm2428, %v2571
      %2584 = vrot.lane.b32.xlu0 %v2296, 80
      %v2585 = vpop.permute.xlu0 %2584
      %2586 = vrot.lane.b32.xlu0 %v2297, 80
      %v2587 = vpop.permute.xlu0 %2586
      %2588 = vrot.lane.b32.xlu0 %v2298, 80
      %v2589 = vpop.permute.xlu0 %2588
      %2590 = vrot.lane.b32.xlu0 %v2299, 80
      %v2591 = vpop.permute.xlu0 %2590
      %2596 = vst.msk [vmem:[#allocation3 + $0x8] sm:$0xff] %vm2449, %v2585
      %2597 = vst.msk [vmem:[#allocation3 + $0x28] sm:$0xff] %vm2449, %v2587
      %2598 = vst.msk [vmem:[#allocation3 + $0x48] sm:$0xff] %vm2449, %v2589
      %2599 = vst.msk [vmem:[#allocation3 + $0x68] sm:$0xff] %vm2449, %v2591
      %2604 = vrot.lane.b32.xlu0 %v2300, 96
      %v2605 = vpop.permute.xlu0 %2604
      %2606 = vrot.lane.b32.xlu0 %v2301, 96
      %v2607 = vpop.permute.xlu0 %2606
      %2608 = vrot.lane.b32.xlu0 %v2302, 96
      %v2609 = vpop.permute.xlu0 %2608
      %2610 = vrot.lane.b32.xlu0 %v2303, 96
      %v2611 = vpop.permute.xlu0 %2610
      %2616 = vst.msk [vmem:[#allocation3 + $0x8] sm:$0xff] %vm2470, %v2605
      %2617 = vst.msk [vmem:[#allocation3 + $0x28] sm:$0xff] %vm2470, %v2607
      %2618 = vst.msk [vmem:[#allocation3 + $0x48] sm:$0xff] %vm2470, %v2609
      %2619 = vst.msk [vmem:[#allocation3 + $0x68] sm:$0xff] %vm2470, %v2611
      %2624 = vrot.lane.b32.xlu0 %v2304, 112
      %v2625 = vpop.permute.xlu0 %2624
      %2626 = vrot.lane.b32.xlu0 %v2305, 112
      %v2627 = vpop.permute.xlu0 %2626
      %2628 = vrot.lane.b32.xlu0 %v2306, 112
      %v2629 = vpop.permute.xlu0 %2628
      %2630 = vrot.lane.b32.xlu0 %v2307, 112
      %v2631 = vpop.permute.xlu0 %2630
      %2636 = vst.msk [vmem:[#allocation3 + $0x8] sm:$0xff] %vm2491, %v2625
      %2637 = vst.msk [vmem:[#allocation3 + $0x28] sm:$0xff] %vm2491, %v2627
      %2638 = vst.msk [vmem:[#allocation3 + $0x48] sm:$0xff] %vm2491, %v2629
      %2639 = vst.msk [vmem:[#allocation3 + $0x68] sm:$0xff] %vm2491, %v2631
      %2640 = vst.msk [vmem:[#allocation3 + $0x10] sm:$0xff] %vm2344, %v2308
      %2641 = vst.msk [vmem:[#allocation3 + $0x30] sm:$0xff] %vm2344, %v2309
      %2642 = vst.msk [vmem:[#allocation3 + $0x50] sm:$0xff] %vm2344, %v2310
      %2643 = vst.msk [vmem:[#allocation3 + $0x70] sm:$0xff] %vm2344, %v2311
      %2648 = vrot.lane.b32.xlu0 %v2312, 16
      %v2649 = vpop.permute.xlu0 %2648
      %2650 = vrot.lane.b32.xlu0 %v2313, 16
      %v2651 = vpop.permute.xlu0 %2650
      %2652 = vrot.lane.b32.xlu0 %v2314, 16
      %v2653 = vpop.permute.xlu0 %2652
      %2654 = vrot.lane.b32.xlu0 %v2315, 16
      %v2655 = vpop.permute.xlu0 %2654
      %2660 = vst.msk [vmem:[#allocation3 + $0x10] sm:$0xff] %vm2365, %v2649
      %2661 = vst.msk [vmem:[#allocation3 + $0x30] sm:$0xff] %vm2365, %v2651
      %2662 = vst.msk [vmem:[#allocation3 + $0x50] sm:$0xff] %vm2365, %v2653
      %2663 = vst.msk [vmem:[#allocation3 + $0x70] sm:$0xff] %vm2365, %v2655
      %2668 = vrot.lane.b32.xlu0 %v2316, 32
      %v2669 = vpop.permute.xlu0 %2668
      %2670 = vrot.lane.b32.xlu0 %v2317, 32
      %v2671 = vpop.permute.xlu0 %2670
      %2672 = vrot.lane.b32.xlu0 %v2318, 32
      %v2673 = vpop.permute.xlu0 %2672
      %2674 = vrot.lane.b32.xlu0 %v2319, 32
      %v2675 = vpop.permute.xlu0 %2674
      %2680 = vst.msk [vmem:[#allocation3 + $0x10] sm:$0xff] %vm2386, %v2669
      %2681 = vst.msk [vmem:[#allocation3 + $0x30] sm:$0xff] %vm2386, %v2671
      %2682 = vst.msk [vmem:[#allocation3 + $0x50] sm:$0xff] %vm2386, %v2673
      %2683 = vst.msk [vmem:[#allocation3 + $0x70] sm:$0xff] %vm2386, %v2675
      %2688 = vrot.lane.b32.xlu0 %v2320, 48
      %v2689 = vpop.permute.xlu0 %2688
      %2690 = vrot.lane.b32.xlu0 %v2321, 48
      %v2691 = vpop.permute.xlu0 %2690
      %2692 = vrot.lane.b32.xlu0 %v2322, 48
      %v2693 = vpop.permute.xlu0 %2692
      %2694 = vrot.lane.b32.xlu0 %v2323, 48
      %v2695 = vpop.permute.xlu0 %2694
      %2700 = vst.msk [vmem:[#allocation3 + $0x10] sm:$0xff] %vm2407, %v2689
      %2701 = vst.msk [vmem:[#allocation3 + $0x30] sm:$0xff] %vm2407, %v2691
      %2702 = vst.msk [vmem:[#allocation3 + $0x50] sm:$0xff] %vm2407, %v2693
      %2703 = vst.msk [vmem:[#allocation3 + $0x70] sm:$0xff] %vm2407, %v2695
      %2708 = vrot.lane.b32.xlu0 %v2324, 64
      %v2709 = vpop.permute.xlu0 %2708
      %2710 = vrot.lane.b32.xlu0 %v2325, 64
      %v2711 = vpop.permute.xlu0 %2710
      %2712 = vrot.lane.b32.xlu0 %v2326, 64
      %v2713 = vpop.permute.xlu0 %2712
      %2714 = vrot.lane.b32.xlu0 %v2327, 64
      %v2715 = vpop.permute.xlu0 %2714
      %2720 = vst.msk [vmem:[#allocation3 + $0x10] sm:$0xff] %vm2428, %v2709
      %2721 = vst.msk [vmem:[#allocation3 + $0x30] sm:$0xff] %vm2428, %v2711
      %2722 = vst.msk [vmem:[#allocation3 + $0x50] sm:$0xff] %vm2428, %v2713
      %2723 = vst.msk [vmem:[#allocation3 + $0x70] sm:$0xff] %vm2428, %v2715
      %2728 = vrot.lane.b32.xlu0 %v2328, 80
      %v2729 = vpop.permute.xlu0 %2728
      %2730 = vrot.lane.b32.xlu0 %v2329, 80
      %v2731 = vpop.permute.xlu0 %2730
      %2732 = vrot.lane.b32.xlu0 %v2330, 80
      %v2733 = vpop.permute.xlu0 %2732
      %2734 = vrot.lane.b32.xlu0 %v2331, 80
      %v2735 = vpop.permute.xlu0 %2734
      %2740 = vst.msk [vmem:[#allocation3 + $0x10] sm:$0xff] %vm2449, %v2729
      %2741 = vst.msk [vmem:[#allocation3 + $0x30] sm:$0xff] %vm2449, %v2731
      %2742 = vst.msk [vmem:[#allocation3 + $0x50] sm:$0xff] %vm2449, %v2733
      %2743 = vst.msk [vmem:[#allocation3 + $0x70] sm:$0xff] %vm2449, %v2735
      %2748 = vrot.lane.b32.xlu0 %v2332, 96
      %v2749 = vpop.permute.xlu0 %2748
      %2750 = vrot.lane.b32.xlu0 %v2333, 96
      %v2751 = vpop.permute.xlu0 %2750
      %2752 = vrot.lane.b32.xlu0 %v2334, 96
      %v2753 = vpop.permute.xlu0 %2752
      %2754 = vrot.lane.b32.xlu0 %v2335, 96
      %v2755 = vpop.permute.xlu0 %2754
      %2760 = vst.msk [vmem:[#allocation3 + $0x10] sm:$0xff] %vm2470, %v2749
      %2761 = vst.msk [vmem:[#allocation3 + $0x30] sm:$0xff] %vm2470, %v2751
      %2762 = vst.msk [vmem:[#allocation3 + $0x50] sm:$0xff] %vm2470, %v2753
      %2763 = vst.msk [vmem:[#allocation3 + $0x70] sm:$0xff] %vm2470, %v2755
      %2768 = vrot.lane.b32.xlu0 %v2336, 112
      %v2769 = vpop.permute.xlu0 %2768
      %2770 = vrot.lane.b32.xlu0 %v2337, 112
      %v2771 = vpop.permute.xlu0 %2770
      %2772 = vrot.lane.b32.xlu0 %v2338, 112
      %v2773 = vpop.permute.xlu0 %2772
      %2774 = vrot.lane.b32.xlu0 %v2339, 112
      %v2775 = vpop.permute.xlu0 %2774
      %2780 = vst.msk [vmem:[#allocation3 + $0x10] sm:$0xff] %vm2491, %v2769
      %2781 = vst.msk [vmem:[#allocation3 + $0x30] sm:$0xff] %vm2491, %v2771
      %2782 = vst.msk [vmem:[#allocation3 + $0x50] sm:$0xff] %vm2491, %v2773
      %2783 = vst.msk [vmem:[#allocation3 + $0x70] sm:$0xff] %vm2491, %v2775
      %2784 = vst.msk [vmem:[#allocation3 + $0x18] sm:$0xff] %vm2344, %v2340
      %2785 = vst.msk [vmem:[#allocation3 + $0x38] sm:$0xff] %vm2344, %v2341
      %2786 = vst.msk [vmem:[#allocation3 + $0x58] sm:$0xff] %vm2344, %v2342
      %2787 = vst.msk [vmem:[#allocation3 + $0x78] sm:$0xff] %vm2344, %v2343
      %v2788 = vld [vmem:[#allocation3] sm:$0xff]
      %v2789 = vld [vmem:[#allocation3 + $0x8] sm:$0xff]
      %v2790 = vld [vmem:[#allocation3 + $0x10] sm:$0xff]
      %v2791 = vld [vmem:[#allocation3 + $0x18] sm:$0xff]
      %v2792 = vld [vmem:[#allocation3 + $0x20] sm:$0xff]
      %v2793 = vld [vmem:[#allocation3 + $0x28] sm:$0xff]
      %v2794 = vld [vmem:[#allocation3 + $0x30] sm:$0xff]
      %v2795 = vld [vmem:[#allocation3 + $0x38] sm:$0xff]
      %v2796 = vld [vmem:[#allocation3 + $0x40] sm:$0xff]
      %v2797 = vld [vmem:[#allocation3 + $0x48] sm:$0xff]
      %v2798 = vld [vmem:[#allocation3 + $0x50] sm:$0xff]
      %v2799 = vld [vmem:[#allocation3 + $0x58] sm:$0xff]
      %v2800 = vld [vmem:[#allocation3 + $0x60] sm:$0xff]
      %v2801 = vld [vmem:[#allocation3 + $0x68] sm:$0xff]
      %v2802 = vld [vmem:[#allocation3 + $0x70] sm:$0xff]
      %v2803 = vld [vmem:[#allocation3 + $0x78] sm:$0xff]
      %v2804 = vpack.c.bf16 %v2792, %v2788
      %v2805 = vpack.c.bf16 %v2793, %v2789
      %v2806 = vpack.c.bf16 %v2794, %v2790
      %v2807 = vpack.c.bf16 %v2795, %v2791
      %v2808 = vpack.c.bf16 %v2800, %v2796
      %v2809 = vpack.c.bf16 %v2801, %v2797
      %v2810 = vpack.c.bf16 %v2802, %v2798
      %v2811 = vpack.c.bf16 %v2803, %v2799
      %v2812 = vld [vmem:[%s5] sm:$0xf]
      %v2813 = vld [vmem:[%s5 + $0x4] sm:$0xf]
      %v2814 = vld [vmem:[%s5 + $0x8] sm:$0xf]
      %v2815 = vld [vmem:[%s5 + $0xc] sm:$0xf]
      %v2816 = vld [vmem:[%s5 + $0x10] sm:$0xf]
      %v2817 = vld [vmem:[%s5 + $0x14] sm:$0xf]
      %v2818 = vld [vmem:[%s5 + $0x18] sm:$0xf]
      %v2819 = vld [vmem:[%s5 + $0x1c] sm:$0xf]
      %v2820 = vld [vmem:[%s5 + $0x20] sm:$0xf]
      %v2821 = vld [vmem:[%s5 + $0x24] sm:$0xf]
      %v2822 = vld [vmem:[%s5 + $0x28] sm:$0xf]
      %v2823 = vld [vmem:[%s5 + $0x2c] sm:$0xf]
      %v2824 = vld [vmem:[%s5 + $0x30] sm:$0xf]
      %v2825 = vld [vmem:[%s5 + $0x34] sm:$0xf]
      %v2826 = vld [vmem:[%s5 + $0x38] sm:$0xf]
      %v2827 = vld [vmem:[%s5 + $0x3c] sm:$0xf]
      %v2828 = vld [vmem:[%s6] sm:$0xff]
      %v2829 = vld [vmem:[%s6 + $0x8] sm:$0xff]
      %v2830 = vld [vmem:[%s6 + $0x10] sm:$0xff]
      %v2831 = vld [vmem:[%s6 + $0x18] sm:$0xff]
      %v2832 = vld [vmem:[%s6 + $0x20] sm:$0xff]
      %v2833 = vld [vmem:[%s6 + $0x28] sm:$0xff]
      %v2834 = vld [vmem:[%s6 + $0x30] sm:$0xff]
      %v2835 = vld [vmem:[%s6 + $0x38] sm:$0xff]
      %v2836 = vld [vmem:[%s6 + $0x40] sm:$0xff]
      %v2837 = vld [vmem:[%s6 + $0x48] sm:$0xff]
      %v2838 = vld [vmem:[%s6 + $0x50] sm:$0xff]
      %v2839 = vld [vmem:[%s6 + $0x58] sm:$0xff]
      %v2840 = vld [vmem:[%s6 + $0x60] sm:$0xff]
      %v2841 = vld [vmem:[%s6 + $0x68] sm:$0xff]
      %v2842 = vld [vmem:[%s6 + $0x70] sm:$0xff]
      %v2843 = vld [vmem:[%s6 + $0x78] sm:$0xff]
      %2845 = vset.pattern.permute.xlu0 0
      %2846 = vperm.xlu0 %2845, %v2828
      %v2847 = vpop.permute.xlu0 %2846
      %2850 = vset.pattern.permute.xlu0 0
      %2851 = vperm.xlu0 %2850, %v2829
      %v2852 = vpop.permute.xlu0 %2851
      %2855 = vset.pattern.permute.xlu0 0
      %2856 = vperm.xlu0 %2855, %v2830
      %v2857 = vpop.permute.xlu0 %2856
      %2860 = vset.pattern.permute.xlu0 0
      %2861 = vperm.xlu0 %2860, %v2831
      %v2862 = vpop.permute.xlu0 %2861
      %2865 = vset.pattern.permute.xlu0 0
      %2866 = vperm.xlu0 %2865, %v2832
      %v2867 = vpop.permute.xlu0 %2866
      %2870 = vset.pattern.permute.xlu0 0
      %2871 = vperm.xlu0 %2870, %v2833
      %v2872 = vpop.permute.xlu0 %2871
      %2875 = vset.pattern.permute.xlu0 0
      %2876 = vperm.xlu0 %2875, %v2834
      %v2877 = vpop.permute.xlu0 %2876
      %2880 = vset.pattern.permute.xlu0 0
      %2881 = vperm.xlu0 %2880, %v2835
      %v2882 = vpop.permute.xlu0 %2881
      %2885 = vset.pattern.permute.xlu0 0
      %2886 = vperm.xlu0 %2885, %v2836
      %v2887 = vpop.permute.xlu0 %2886
      %2890 = vset.pattern.permute.xlu0 0
      %2891 = vperm.xlu0 %2890, %v2837
      %v2892 = vpop.permute.xlu0 %2891
      %2895 = vset.pattern.permute.xlu0 0
      %2896 = vperm.xlu0 %2895, %v2838
      %v2897 = vpop.permute.xlu0 %2896
      %2900 = vset.pattern.permute.xlu0 0
      %2901 = vperm.xlu0 %2900, %v2839
      %v2902 = vpop.permute.xlu0 %2901
      %2905 = vset.pattern.permute.xlu0 0
      %2906 = vperm.xlu0 %2905, %v2840
      %v2907 = vpop.permute.xlu0 %2906
      %2910 = vset.pattern.permute.xlu0 0
      %2911 = vperm.xlu0 %2910, %v2841
      %v2912 = vpop.permute.xlu0 %2911
      %2915 = vset.pattern.permute.xlu0 0
      %2916 = vperm.xlu0 %2915, %v2842
      %v2917 = vpop.permute.xlu0 %2916
      %2920 = vset.pattern.permute.xlu0 0
      %2921 = vperm.xlu0 %2920, %v2843
      %v2922 = vpop.permute.xlu0 %2921
      %v2940 = vunpack.c.l.b16 %v2812
      %v2941 = vunpack.c.l.b16 %v2813
      %v2942 = vunpack.c.l.b16 %v2814
      %v2943 = vunpack.c.l.b16 %v2815
      %v2944 = vunpack.c.l.b16 %v2816
      %v2945 = vunpack.c.l.b16 %v2817
      %v2946 = vunpack.c.l.b16 %v2818
      %v2947 = vunpack.c.l.b16 %v2819
      %v2948 = vunpack.c.l.b16 %v2820
      %v2949 = vunpack.c.l.b16 %v2821
      %v2950 = vunpack.c.l.b16 %v2822
      %v2951 = vunpack.c.l.b16 %v2823
      %v2952 = vunpack.c.l.b16 %v2824
      %v2953 = vunpack.c.l.b16 %v2825
      %v2954 = vunpack.c.l.b16 %v2826
      %v2955 = vunpack.c.l.b16 %v2827
      %v2956 = vpack.c.b16 %v2941, %v2940
      %v2957 = vpack.c.b16 %v2943, %v2942
      %v2958 = vpack.c.b16 %v2945, %v2944
      %v2959 = vpack.c.b16 %v2947, %v2946
      %v2960 = vpack.c.b16 %v2949, %v2948
      %v2961 = vpack.c.b16 %v2951, %v2950
      %v2962 = vpack.c.b16 %v2953, %v2952
      %v2963 = vpack.c.b16 %v2955, %v2954
      %v2965 = vsel %vm1660, %v2956, 0
      %v2968 = vsel %vm1660, %v2957, 0
      %v2971 = vsel %vm1660, %v2958, 0
      %v2974 = vsel %vm1660, %v2959, 0
      %v2977 = vsel %vm1660, %v2960, 0
      %v2980 = vsel %vm1660, %v2961, 0
      %v2983 = vsel %vm1660, %v2962, 0
      %v2986 = vsel %vm1660, %v2963, 0
      %2988 = vmatprep.subr.bf16.mxu0 %v2805
      %2989 = vmatpush1.bf16.msra.mxu0 %v2804
      %2990 = vmatprep.subr.bf16.mxu0 %v2809
      %2991 = vmatpush1.bf16.msra.mxu0 %v2808
      %2992 = vmatprep.subr.bf16.mxu0 0
      %2993 = vmatpush1.bf16.msra.mxu0 0
      %2994 = vmatprep.subr.bf16.mxu0 0
      %2995 = vmatpush1.bf16.msra.mxu0 0
      %2996 = vmatprep.subr.bf16.mxu0 0
      %2997 = vmatpush1.bf16.msra.mxu0 0
      %2998 = vmatprep.subr.bf16.mxu0 0
      %2999 = vmatpush1.bf16.msra.mxu0 0
      %3000 = vmatprep.subr.bf16.mxu0 0
      %3001 = vmatpush1.bf16.msra.mxu0 0
      %3002 = vmatprep.subr.bf16.mxu0 0
      %3003 = vmatpush1.bf16.msra.mxu0 0
      %3004 = vmatprep.subr.bf16.mxu0 0
      %3005 = vmatpush1.bf16.msra.mxu0 0
      %3006 = vmatprep.subr.bf16.mxu0 0
      %3007 = vmatpush1.bf16.msra.mxu0 0
      %3008 = vmatprep.subr.bf16.mxu0 0
      %3009 = vmatpush1.bf16.msra.mxu0 0
      %3010 = vmatprep.subr.bf16.mxu0 0
      %3011 = vmatpush1.bf16.msra.mxu0 0
      %3012 = vmatprep.subr.bf16.mxu0 0
      %3013 = vmatpush1.bf16.msra.mxu0 0
      %3014 = vmatprep.subr.bf16.mxu0 0
      %3015 = vmatpush1.bf16.msra.mxu0 0
      %3016 = vmatprep.subr.bf16.mxu0 0
      %3017 = vmatpush1.bf16.msra.mxu0 0
      %3018 = vmatprep.subr.bf16.mxu0 0
      %3019 = vmatpush1.bf16.msra.mxu0 0
      %3020 = vmatprep.mubr.bf16.mxu0 0
      %3021 = vmatmul.mubr.bf16.gmra.mrb[0].mxu0 %v2965
      %v3022 = vpop.f32.mrb[0].mxu0
      %v3023 = vadd.f32 %v2847, %v3022
      %v3024 = vpop.f32.mrb[0].mxu0
      %v3025 = vadd.f32 %v2847, %v3024
      %v3026 = vpop.f32.mrb[0].mxu0
      %v3027 = vadd.f32 %v2852, %v3026
      %v3028 = vpop.f32.mrb[0].mxu0
      %v3029 = vadd.f32 %v2852, %v3028
      %3030 = vmatprep.mubr.bf16.mxu0 0
      %3031 = vmatmul.mubr.bf16.gmra.mrb[0].mxu0 %v2968
      %v3032 = vpop.f32.mrb[0].mxu0
      %v3033 = vadd.f32 %v2857, %v3032
      %v3034 = vpop.f32.mrb[0].mxu0
      %v3035 = vadd.f32 %v2857, %v3034
      %v3036 = vpop.f32.mrb[0].mxu0
      %v3037 = vadd.f32 %v2862, %v3036
      %v3038 = vpop.f32.mrb[0].mxu0
      %v3039 = vadd.f32 %v2862, %v3038
      %3040 = vmatprep.mubr.bf16.mxu0 0
      %3041 = vmatmul.mubr.bf16.gmra.mrb[0].mxu0 %v2971
      %v3042 = vpop.f32.mrb[0].mxu0
      %v3043 = vadd.f32 %v2867, %v3042
      %v3044 = vpop.f32.mrb[0].mxu0
      %v3045 = vadd.f32 %v2867, %v3044
      %v3046 = vpop.f32.mrb[0].mxu0
      %v3047 = vadd.f32 %v2872, %v3046
      %v3048 = vpop.f32.mrb[0].mxu0
      %v3049 = vadd.f32 %v2872, %v3048
      %3050 = vmatprep.mubr.bf16.mxu0 0
      %3051 = vmatmul.mubr.bf16.gmra.mrb[0].mxu0 %v2974
      %v3052 = vpop.f32.mrb[0].mxu0
      %v3053 = vadd.f32 %v2877, %v3052
      %v3054 = vpop.f32.mrb[0].mxu0
      %v3055 = vadd.f32 %v2877, %v3054
      %v3056 = vpop.f32.mrb[0].mxu0
      %v3057 = vadd.f32 %v2882, %v3056
      %v3058 = vpop.f32.mrb[0].mxu0
      %v3059 = vadd.f32 %v2882, %v3058
      %3060 = vmatprep.mubr.bf16.mxu0 0
      %3061 = vmatmul.mubr.bf16.gmra.mrb[0].mxu0 %v2977
      %v3062 = vpop.f32.mrb[0].mxu0
      %v3063 = vadd.f32 %v2887, %v3062
      %v3064 = vpop.f32.mrb[0].mxu0
      %v3065 = vadd.f32 %v2887, %v3064
      %v3066 = vpop.f32.mrb[0].mxu0
      %v3067 = vadd.f32 %v2892, %v3066
      %v3068 = vpop.f32.mrb[0].mxu0
      %v3069 = vadd.f32 %v2892, %v3068
      %3070 = vmatprep.mubr.bf16.mxu0 0
      %3071 = vmatmul.mubr.bf16.gmra.mrb[0].mxu0 %v2980
      %v3072 = vpop.f32.mrb[0].mxu0
      %v3073 = vadd.f32 %v2897, %v3072
      %v3074 = vpop.f32.mrb[0].mxu0
      %v3075 = vadd.f32 %v2897, %v3074
      %v3076 = vpop.f32.mrb[0].mxu0
      %v3077 = vadd.f32 %v2902, %v3076
      %v3078 = vpop.f32.mrb[0].mxu0
      %v3079 = vadd.f32 %v2902, %v3078
      %3080 = vmatprep.mubr.bf16.mxu0 0
      %3081 = vmatmul.mubr.bf16.gmra.mrb[0].mxu0 %v2983
      %v3082 = vpop.f32.mrb[0].mxu0
      %v3083 = vadd.f32 %v2907, %v3082
      %v3084 = vpop.f32.mrb[0].mxu0
      %v3085 = vadd.f32 %v2907, %v3084
      %v3086 = vpop.f32.mrb[0].mxu0
      %v3087 = vadd.f32 %v2912, %v3086
      %v3088 = vpop.f32.mrb[0].mxu0
      %v3089 = vadd.f32 %v2912, %v3088
      %3090 = vmatprep.mubr.bf16.mxu0 0
      %3091 = vmatmul.mubr.bf16.gmra.mrb[0].mxu0 %v2986
      %v3092 = vpop.f32.mrb[0].mxu0
      %v3093 = vadd.f32 %v2917, %v3092
      %v3094 = vpop.f32.mrb[0].mxu0
      %v3095 = vadd.f32 %v2917, %v3094
      %v3096 = vpop.f32.mrb[0].mxu0
      %v3097 = vadd.f32 %v2922, %v3096
      %v3098 = vpop.f32.mrb[0].mxu0
      %v3099 = vadd.f32 %v2922, %v3098
      %3100 = vdwg.mxu0
      %3101 = vmatprep.subr.bf16.mxu0 %v2807
      %3102 = vmatpush1.bf16.msra.mxu0 %v2806
      %3103 = vmatprep.subr.bf16.mxu0 %v2811
      %3104 = vmatpush1.bf16.msra.mxu0 %v2810
      %3105 = vmatprep.subr.bf16.mxu0 0
      %3106 = vmatpush1.bf16.msra.mxu0 0
      %3107 = vmatprep.subr.bf16.mxu0 0
      %3108 = vmatpush1.bf16.msra.mxu0 0
      %3109 = vmatprep.subr.bf16.mxu0 0
      %3110 = vmatpush1.bf16.msra.mxu0 0
      %3111 = vmatprep.subr.bf16.mxu0 0
      %3112 = vmatpush1.bf16.msra.mxu0 0
      %3113 = vmatprep.subr.bf16.mxu0 0
      %3114 = vmatpush1.bf16.msra.mxu0 0
      %3115 = vmatprep.subr.bf16.mxu0 0
      %3116 = vmatpush1.bf16.msra.mxu0 0
      %3117 = vmatprep.subr.bf16.mxu0 0
      %3118 = vmatpush1.bf16.msra.mxu0 0
      %3119 = vmatprep.subr.bf16.mxu0 0
      %3120 = vmatpush1.bf16.msra.mxu0 0
      %3121 = vmatprep.subr.bf16.mxu0 0
      %3122 = vmatpush1.bf16.msra.mxu0 0
      %3123 = vmatprep.subr.bf16.mxu0 0
      %3124 = vmatpush1.bf16.msra.mxu0 0
      %3125 = vmatprep.subr.bf16.mxu0 0
      %3126 = vmatpush1.bf16.msra.mxu0 0
      %3127 = vmatprep.subr.bf16.mxu0 0
      %3128 = vmatpush1.bf16.msra.mxu0 0
      %3129 = vmatprep.subr.bf16.mxu0 0
      %3130 = vmatpush1.bf16.msra.mxu0 0
      %3131 = vmatprep.subr.bf16.mxu0 0
      %3132 = vmatpush1.bf16.msra.mxu0 0
      %3133 = vmatprep.mubr.bf16.mxu0 0
      %3134 = vmatmul.mubr.bf16.gmra.mrb[0].mxu0 %v2965
      %v3135 = vpop.f32.mrb[0].mxu0
      %v3136 = vadd.f32 %v2847, %v3135
      %v3137 = vpop.f32.mrb[0].mxu0
      %v3138 = vadd.f32 %v2847, %v3137
      %v3139 = vpop.f32.mrb[0].mxu0
      %v3140 = vadd.f32 %v2852, %v3139
      %v3141 = vpop.f32.mrb[0].mxu0
      %v3142 = vadd.f32 %v2852, %v3141
      %3143 = vmatprep.mubr.bf16.mxu0 0
      %3144 = vmatmul.mubr.bf16.gmra.mrb[0].mxu0 %v2968
      %v3145 = vpop.f32.mrb[0].mxu0
      %v3146 = vadd.f32 %v2857, %v3145
      %v3147 = vpop.f32.mrb[0].mxu0
      %v3148 = vadd.f32 %v2857, %v3147
      %v3149 = vpop.f32.mrb[0].mxu0
      %v3150 = vadd.f32 %v2862, %v3149
      %v3151 = vpop.f32.mrb[0].mxu0
      %v3152 = vadd.f32 %v2862, %v3151
      %3153 = vmatprep.mubr.bf16.mxu0 0
      %3154 = vmatmul.mubr.bf16.gmra.mrb[0].mxu0 %v2971
      %v3155 = vpop.f32.mrb[0].mxu0
      %v3156 = vadd.f32 %v2867, %v3155
      %v3157 = vpop.f32.mrb[0].mxu0
      %v3158 = vadd.f32 %v2867, %v3157
      %v3159 = vpop.f32.mrb[0].mxu0
      %v3160 = vadd.f32 %v2872, %v3159
      %v3161 = vpop.f32.mrb[0].mxu0
      %v3162 = vadd.f32 %v2872, %v3161
      %3163 = vmatprep.mubr.bf16.mxu0 0
      %3164 = vmatmul.mubr.bf16.gmra.mrb[0].mxu0 %v2974
      %v3165 = vpop.f32.mrb[0].mxu0
      %v3166 = vadd.f32 %v2877, %v3165
      %v3167 = vpop.f32.mrb[0].mxu0
      %v3168 = vadd.f32 %v2877, %v3167
      %v3169 = vpop.f32.mrb[0].mxu0
      %v3170 = vadd.f32 %v2882, %v3169
      %v3171 = vpop.f32.mrb[0].mxu0
      %v3172 = vadd.f32 %v2882, %v3171
      %3173 = vmatprep.mubr.bf16.mxu0 0
      %3174 = vmatmul.mubr.bf16.gmra.mrb[0].mxu0 %v2977
      %v3175 = vpop.f32.mrb[0].mxu0
      %v3176 = vadd.f32 %v2887, %v3175
      %v3177 = vpop.f32.mrb[0].mxu0
      %v3178 = vadd.f32 %v2887, %v3177
      %v3179 = vpop.f32.mrb[0].mxu0
      %v3180 = vadd.f32 %v2892, %v3179
      %v3181 = vpop.f32.mrb[0].mxu0
      %v3182 = vadd.f32 %v2892, %v3181
      %3183 = vmatprep.mubr.bf16.mxu0 0
      %3184 = vmatmul.mubr.bf16.gmra.mrb[0].mxu0 %v2980
      %v3185 = vpop.f32.mrb[0].mxu0
      %v3186 = vadd.f32 %v2897, %v3185
      %v3187 = vpop.f32.mrb[0].mxu0
      %v3188 = vadd.f32 %v2897, %v3187
      %v3189 = vpop.f32.mrb[0].mxu0
      %v3190 = vadd.f32 %v2902, %v3189
      %v3191 = vpop.f32.mrb[0].mxu0
      %v3192 = vadd.f32 %v2902, %v3191
      %3193 = vmatprep.mubr.bf16.mxu0 0
      %3194 = vmatmul.mubr.bf16.gmra.mrb[0].mxu0 %v2983
      %v3195 = vpop.f32.mrb[0].mxu0
      %v3196 = vadd.f32 %v2907, %v3195
      %v3197 = vpop.f32.mrb[0].mxu0
      %v3198 = vadd.f32 %v2907, %v3197
      %v3199 = vpop.f32.mrb[0].mxu0
      %v3200 = vadd.f32 %v2912, %v3199
      %v3201 = vpop.f32.mrb[0].mxu0
      %v3202 = vadd.f32 %v2912, %v3201
      %3203 = vmatprep.mubr.bf16.mxu0 0
      %3204 = vmatmul.mubr.bf16.gmra.mrb[0].mxu0 %v2986
      %v3205 = vpop.f32.mrb[0].mxu0
      %v3206 = vadd.f32 %v2917, %v3205
      %v3207 = vpop.f32.mrb[0].mxu0
      %v3208 = vadd.f32 %v2917, %v3207
      %v3209 = vpop.f32.mrb[0].mxu0
      %v3210 = vadd.f32 %v2922, %v3209
      %v3211 = vpop.f32.mrb[0].mxu0
      %v3212 = vadd.f32 %v2922, %v3211
      %3213 = vdwg.mxu0
      %v3214 = vmax.f32 %v3023, 0.0
      %v3215 = vmax.f32 %v3025, 0.0
      %v3216 = vmax.f32 %v3136, 0.0
      %v3217 = vmax.f32 %v3138, 0.0
      %v3218 = vmax.f32 %v3027, 0.0
      %v3219 = vmax.f32 %v3029, 0.0
      %v3220 = vmax.f32 %v3140, 0.0
      %v3221 = vmax.f32 %v3142, 0.0
      %v3222 = vmax.f32 %v3033, 0.0
      %v3223 = vmax.f32 %v3035, 0.0
      %v3224 = vmax.f32 %v3146, 0.0
      %v3225 = vmax.f32 %v3148, 0.0
      %v3226 = vmax.f32 %v3037, 0.0
      %v3227 = vmax.f32 %v3039, 0.0
      %v3228 = vmax.f32 %v3150, 0.0
      %v3229 = vmax.f32 %v3152, 0.0
      %v3230 = vmax.f32 %v3043, 0.0
      %v3231 = vmax.f32 %v3045, 0.0
      %v3232 = vmax.f32 %v3156, 0.0
      %v3233 = vmax.f32 %v3158, 0.0
      %v3234 = vmax.f32 %v3047, 0.0
      %v3235 = vmax.f32 %v3049, 0.0
      %v3236 = vmax.f32 %v3160, 0.0
      %v3237 = vmax.f32 %v3162, 0.0
      %v3238 = vmax.f32 %v3053, 0.0
      %v3239 = vmax.f32 %v3055, 0.0
      %v3240 = vmax.f32 %v3166, 0.0
      %v3241 = vmax.f32 %v3168, 0.0
      %v3242 = vmax.f32 %v3057, 0.0
      %v3243 = vmax.f32 %v3059, 0.0
      %v3244 = vmax.f32 %v3170, 0.0
      %v3245 = vmax.f32 %v3172, 0.0
      %v3246 = vmax.f32 %v3063, 0.0
      %v3247 = vmax.f32 %v3065, 0.0
      %v3248 = vmax.f32 %v3176, 0.0
      %v3249 = vmax.f32 %v3178, 0.0
      %v3250 = vmax.f32 %v3067, 0.0
      %v3251 = vmax.f32 %v3069, 0.0
      %v3252 = vmax.f32 %v3180, 0.0
      %v3253 = vmax.f32 %v3182, 0.0
      %v3254 = vmax.f32 %v3073, 0.0
      %v3255 = vmax.f32 %v3075, 0.0
      %v3256 = vmax.f32 %v3186, 0.0
      %v3257 = vmax.f32 %v3188, 0.0
      %v3258 = vmax.f32 %v3077, 0.0
      %v3259 = vmax.f32 %v3079, 0.0
      %v3260 = vmax.f32 %v3190, 0.0
      %v3261 = vmax.f32 %v3192, 0.0
      %v3262 = vmax.f32 %v3083, 0.0
      %v3263 = vmax.f32 %v3085, 0.0
      %v3264 = vmax.f32 %v3196, 0.0
      %v3265 = vmax.f32 %v3198, 0.0
      %v3266 = vmax.f32 %v3087, 0.0
      %v3267 = vmax.f32 %v3089, 0.0
      %v3268 = vmax.f32 %v3200, 0.0
      %v3269 = vmax.f32 %v3202, 0.0
      %v3270 = vmax.f32 %v3093, 0.0
      %v3271 = vmax.f32 %v3095, 0.0
      %v3272 = vmax.f32 %v3206, 0.0
      %v3273 = vmax.f32 %v3208, 0.0
      %v3274 = vmax.f32 %v3097, 0.0
      %v3275 = vmax.f32 %v3099, 0.0
      %v3276 = vmax.f32 %v3210, 0.0
      %v3277 = vmax.f32 %v3212, 0.0
      %3278 = vst [vmem:[#allocation4] sm:$0xff] %v3214
      %3279 = vst [vmem:[#allocation4 + $0x8] sm:$0xff] %v3215
      %3280 = vst [vmem:[#allocation4 + $0x10] sm:$0xff] %v3216
      %3281 = vst.msk [vmem:[#allocation4 + $0x18] sm:$0xff] %vm2344, %v3217
      %3282 = vst [vmem:[#allocation4 + $0x68] sm:$0xff] %v3218
      %3283 = vst [vmem:[#allocation4 + $0x70] sm:$0xff] %v3219
      %3284 = vst [vmem:[#allocation4 + $0x78] sm:$0xff] %v3220
      %3285 = vst.msk [vmem:[#allocation4 + $0x80] sm:$0xff] %vm2344, %v3221
      %3286 = vst [vmem:[#allocation4 + $0xd0] sm:$0xff] %v3222
      %3287 = vst [vmem:[#allocation4 + $0xd8] sm:$0xff] %v3223
      %3288 = vst [vmem:[#allocation4 + $0xe0] sm:$0xff] %v3224
      %3289 = vst.msk [vmem:[#allocation4 + $0xe8] sm:$0xff] %vm2344, %v3225
      %3290 = vst [vmem:[#allocation4 + $0x138] sm:$0xff] %v3226
      %3291 = vst [vmem:[#allocation4 + $0x140] sm:$0xff] %v3227
      %3292 = vst [vmem:[#allocation4 + $0x148] sm:$0xff] %v3228
      %3293 = vst.msk [vmem:[#allocation4 + $0x150] sm:$0xff] %vm2344, %v3229
      %3310 = vrot.lane.b32.xlu0 %v3230, 16
      %v3311 = vpop.permute.xlu0 %3310
      %3312 = vrot.lane.b32.xlu0 %v3231, 16
      %v3313 = vpop.permute.xlu0 %3312
      %3314 = vrot.lane.b32.xlu0 %v3232, 16
      %v3315 = vpop.permute.xlu0 %3314
      %3316 = vrot.lane.b32.xlu0 %v3233, 16
      %v3317 = vpop.permute.xlu0 %3316
      %3318 = vrot.lane.b32.xlu0 %v3234, 16
      %v3319 = vpop.permute.xlu0 %3318
      %3320 = vrot.lane.b32.xlu0 %v3235, 16
      %v3321 = vpop.permute.xlu0 %3320
      %3322 = vrot.lane.b32.xlu0 %v3236, 16
      %v3323 = vpop.permute.xlu0 %3322
      %3324 = vrot.lane.b32.xlu0 %v3237, 16
      %v3325 = vpop.permute.xlu0 %3324
      %3326 = vrot.lane.b32.xlu0 %v3238, 16
      %v3327 = vpop.permute.xlu0 %3326
      %3328 = vrot.lane.b32.xlu0 %v3239, 16
      %v3329 = vpop.permute.xlu0 %3328
      %3330 = vrot.lane.b32.xlu0 %v3240, 16
      %v3331 = vpop.permute.xlu0 %3330
      %3332 = vrot.lane.b32.xlu0 %v3241, 16
      %v3333 = vpop.permute.xlu0 %3332
      %3334 = vrot.lane.b32.xlu0 %v3242, 16
      %v3335 = vpop.permute.xlu0 %3334
      %3336 = vrot.lane.b32.xlu0 %v3243, 16
      %v3337 = vpop.permute.xlu0 %3336
      %3338 = vrot.lane.b32.xlu0 %v3244, 16
      %v3339 = vpop.permute.xlu0 %3338
      %3340 = vrot.lane.b32.xlu0 %v3245, 16
      %v3341 = vpop.permute.xlu0 %3340
      %v3342 = vsel %vm2344, %v3311, %v3313
      %v3343 = vsel %vm2344, %v3313, %v3315
      %v3344 = vsel %vm2344, %v3315, %v3317
      %v3345 = vsel %vm2344, %v3319, %v3321
      %v3346 = vsel %vm2344, %v3321, %v3323
      %v3347 = vsel %vm2344, %v3323, %v3325
      %v3348 = vsel %vm2344, %v3327, %v3329
      %v3349 = vsel %vm2344, %v3329, %v3331
      %v3350 = vsel %vm2344, %v3331, %v3333
      %v3351 = vsel %vm2344, %v3335, %v3337
      %v3352 = vsel %vm2344, %v3337, %v3339
      %v3353 = vsel %vm2344, %v3339, %v3341
      %vm3370 = vcmask 1047680
      %3371 = vst.msk [vmem:[#allocation4 + $0x18] sm:$0xff] %vm3370, %v3311
      %3372 = vst [vmem:[#allocation4 + $0x20] sm:$0xff] %v3342
      %3373 = vst [vmem:[#allocation4 + $0x28] sm:$0xff] %v3343
      %3374 = vst.msk [vmem:[#allocation4 + $0x30] sm:$0xff] %vm1660, %v3344
      %3375 = vst.msk [vmem:[#allocation4 + $0x80] sm:$0xff] %vm3370, %v3319
      %3376 = vst [vmem:[#allocation4 + $0x88] sm:$0xff] %v3345
      %3377 = vst [vmem:[#allocation4 + $0x90] sm:$0xff] %v3346
      %3378 = vst.msk [vmem:[#allocation4 + $0x98] sm:$0xff] %vm1660, %v3347
      %3379 = vst.msk [vmem:[#allocation4 + $0xe8] sm:$0xff] %vm3370, %v3327
      %3380 = vst [vmem:[#allocation4 + $0xf0] sm:$0xff] %v3348
      %3381 = vst [vmem:[#allocation4 + $0xf8] sm:$0xff] %v3349
      %3382 = vst.msk [vmem:[#allocation4 + $0x100] sm:$0xff] %vm1660, %v3350
      %3383 = vst.msk [vmem:[#allocation4 + $0x150] sm:$0xff] %vm3370, %v3335
      %3384 = vst [vmem:[#allocation4 + $0x158] sm:$0xff] %v3351
      %3385 = vst [vmem:[#allocation4 + $0x160] sm:$0xff] %v3352
      %3386 = vst.msk [vmem:[#allocation4 + $0x168] sm:$0xff] %vm1660, %v3353
      %3403 = vrot.lane.b32.xlu0 %v3246, 32
      %v3404 = vpop.permute.xlu0 %3403
      %3405 = vrot.lane.b32.xlu0 %v3247, 32
      %v3406 = vpop.permute.xlu0 %3405
      %3407 = vrot.lane.b32.xlu0 %v3248, 32
      %v3408 = vpop.permute.xlu0 %3407
      %3409 = vrot.lane.b32.xlu0 %v3249, 32
      %v3410 = vpop.permute.xlu0 %3409
      %3411 = vrot.lane.b32.xlu0 %v3250, 32
      %v3412 = vpop.permute.xlu0 %3411
      %3413 = vrot.lane.b32.xlu0 %v3251, 32
      %v3414 = vpop.permute.xlu0 %3413
      %3415 = vrot.lane.b32.xlu0 %v3252, 32
      %v3416 = vpop.permute.xlu0 %3415
      %3417 = vrot.lane.b32.xlu0 %v3253, 32
      %v3418 = vpop.permute.xlu0 %3417
      %3419 = vrot.lane.b32.xlu0 %v3254, 32
      %v3420 = vpop.permute.xlu0 %3419
      %3421 = vrot.lane.b32.xlu0 %v3255, 32
      %v3422 = vpop.permute.xlu0 %3421
      %3423 = vrot.lane.b32.xlu0 %v3256, 32
      %v3424 = vpop.permute.xlu0 %3423
      %3425 = vrot.lane.b32.xlu0 %v3257, 32
      %v3426 = vpop.permute.xlu0 %3425
      %3427 = vrot.lane.b32.xlu0 %v3258, 32
      %v3428 = vpop.permute.xlu0 %3427
      %3429 = vrot.lane.b32.xlu0 %v3259, 32
      %v3430 = vpop.permute.xlu0 %3429
      %3431 = vrot.lane.b32.xlu0 %v3260, 32
      %v3432 = vpop.permute.xlu0 %3431
      %3433 = vrot.lane.b32.xlu0 %v3261, 32
      %v3434 = vpop.permute.xlu0 %3433
      %v3435 = vsel %vm1660, %v3404, %v3406
      %v3436 = vsel %vm1660, %v3406, %v3408
      %v3437 = vsel %vm1660, %v3408, %v3410
      %v3438 = vsel %vm1660, %v3412, %v3414
      %v3439 = vsel %vm1660, %v3414, %v3416
      %v3440 = vsel %vm1660, %v3416, %v3418
      %v3441 = vsel %vm1660, %v3420, %v3422
      %v3442 = vsel %vm1660, %v3422, %v3424
      %v3443 = vsel %vm1660, %v3424, %v3426
      %v3444 = vsel %vm1660, %v3428, %v3430
      %v3445 = vsel %vm1660, %v3430, %v3432
      %v3446 = vsel %vm1660, %v3432, %v3434
      %vm3463 = vcmask 1047808
      %3464 = vst.msk [vmem:[#allocation4 + $0x30] sm:$0xff] %vm3463, %v3404
      %3465 = vst [vmem:[#allocation4 + $0x38] sm:$0xff] %v3435
      %3466 = vst [vmem:[#allocation4 + $0x40] sm:$0xff] %v3436
      %vm3467 = vcmask 392192
      %3468 = vst.msk [vmem:[#allocation4 + $0x48] sm:$0xff] %vm3467, %v3437
      %3469 = vst.msk [vmem:[#allocation4 + $0x98] sm:$0xff] %vm3463, %v3412
      %3470 = vst [vmem:[#allocation4 + $0xa0] sm:$0xff] %v3438
      %3471 = vst [vmem:[#allocation4 + $0xa8] sm:$0xff] %v3439
      %3472 = vst.msk [vmem:[#allocation4 + $0xb0] sm:$0xff] %vm3467, %v3440
      %3473 = vst.msk [vmem:[#allocation4 + $0x100] sm:$0xff] %vm3463, %v3420
      %3474 = vst [vmem:[#allocation4 + $0x108] sm:$0xff] %v3441
      %3475 = vst [vmem:[#allocation4 + $0x110] sm:$0xff] %v3442
      %3476 = vst.msk [vmem:[#allocation4 + $0x118] sm:$0xff] %vm3467, %v3443
      %3477 = vst.msk [vmem:[#allocation4 + $0x168] sm:$0xff] %vm3463, %v3428
      %3478 = vst [vmem:[#allocation4 + $0x170] sm:$0xff] %v3444
      %3479 = vst [vmem:[#allocation4 + $0x178] sm:$0xff] %v3445
      %3480 = vst.msk [vmem:[#allocation4 + $0x180] sm:$0xff] %vm3467, %v3446
      %3497 = vrot.lane.b32.xlu0 %v3262, 48
      %v3498 = vpop.permute.xlu0 %3497
      %3499 = vrot.lane.b32.xlu0 %v3263, 48
      %v3500 = vpop.permute.xlu0 %3499
      %3501 = vrot.lane.b32.xlu0 %v3264, 48
      %v3502 = vpop.permute.xlu0 %3501
      %3503 = vrot.lane.b32.xlu0 %v3265, 48
      %v3504 = vpop.permute.xlu0 %3503
      %3505 = vrot.lane.b32.xlu0 %v3266, 48
      %v3506 = vpop.permute.xlu0 %3505
      %3507 = vrot.lane.b32.xlu0 %v3267, 48
      %v3508 = vpop.permute.xlu0 %3507
      %3509 = vrot.lane.b32.xlu0 %v3268, 48
      %v3510 = vpop.permute.xlu0 %3509
      %3511 = vrot.lane.b32.xlu0 %v3269, 48
      %v3512 = vpop.permute.xlu0 %3511
      %3513 = vrot.lane.b32.xlu0 %v3270, 48
      %v3514 = vpop.permute.xlu0 %3513
      %3515 = vrot.lane.b32.xlu0 %v3271, 48
      %v3516 = vpop.permute.xlu0 %3515
      %3517 = vrot.lane.b32.xlu0 %v3272, 48
      %v3518 = vpop.permute.xlu0 %3517
      %3519 = vrot.lane.b32.xlu0 %v3273, 48
      %v3520 = vpop.permute.xlu0 %3519
      %3521 = vrot.lane.b32.xlu0 %v3274, 48
      %v3522 = vpop.permute.xlu0 %3521
      %3523 = vrot.lane.b32.xlu0 %v3275, 48
      %v3524 = vpop.permute.xlu0 %3523
      %3525 = vrot.lane.b32.xlu0 %v3276, 48
      %v3526 = vpop.permute.xlu0 %3525
      %3527 = vrot.lane.b32.xlu0 %v3277, 48
      %v3528 = vpop.permute.xlu0 %3527
      %v3529 = vsel %vm3467, %v3498, %v3500
      %v3530 = vsel %vm3467, %v3500, %v3502
      %v3531 = vsel %vm3467, %v3502, %v3504
      %v3532 = vsel %vm3467, %v3506, %v3508
      %v3533 = vsel %vm3467, %v3508, %v3510
      %v3534 = vsel %vm3467, %v3510, %v3512
      %v3535 = vsel %vm3467, %v3514, %v3516
      %v3536 = vsel %vm3467, %v3516, %v3518
      %v3537 = vsel %vm3467, %v3518, %v3520
      %v3538 = vsel %vm3467, %v3522, %v3524
      %v3539 = vsel %vm3467, %v3524, %v3526
      %v3540 = vsel %vm3467, %v3526, %v3528
      %vm3557 = vcmask 1047936
      %3558 = vst.msk [vmem:[#allocation4 + $0x48] sm:$0xff] %vm3557, %v3498
      %3559 = vst [vmem:[#allocation4 + $0x50] sm:$0xff] %v3529
      %3560 = vst [vmem:[#allocation4 + $0x58] sm:$0xff] %v3530
      %3561 = vst.msk [vmem:[#allocation4 + $0x60] sm:$0xff] %vm498, %v3531
      %3562 = vst.msk [vmem:[#allocation4 + $0xb0] sm:$0xff] %vm3557, %v3506
      %3563 = vst [vmem:[#allocation4 + $0xb8] sm:$0xff] %v3532
      %3564 = vst [vmem:[#allocation4 + $0xc0] sm:$0xff] %v3533
      %3565 = vst.msk [vmem:[#allocation4 + $0xc8] sm:$0xff] %vm498, %v3534
      %3566 = vst.msk [vmem:[#allocation4 + $0x118] sm:$0xff] %vm3557, %v3514
      %3567 = vst [vmem:[#allocation4 + $0x120] sm:$0xff] %v3535
      %3568 = vst [vmem:[#allocation4 + $0x128] sm:$0xff] %v3536
      %3569 = vst.msk [vmem:[#allocation4 + $0x130] sm:$0xff] %vm498, %v3537
      %3570 = vst.msk [vmem:[#allocation4 + $0x180] sm:$0xff] %vm3557, %v3522
      %3571 = vst [vmem:[#allocation4 + $0x188] sm:$0xff] %v3538
      %3572 = vst [vmem:[#allocation4 + $0x190] sm:$0xff] %v3539
      %3573 = vst.msk [vmem:[#allocation4 + $0x198] sm:$0xff] %vm498, %v3540
      %v3574 = vld [vmem:[#allocation4] sm:$0xff]
      %v3575 = vld [vmem:[#allocation4 + $0x8] sm:$0xff]
      %v3576 = vld [vmem:[#allocation4 + $0x10] sm:$0xff]
      %v3577 = vld [vmem:[#allocation4 + $0x18] sm:$0xff]
      %v3578 = vld [vmem:[#allocation4 + $0x20] sm:$0xff]
      %v3579 = vld [vmem:[#allocation4 + $0x28] sm:$0xff]
      %v3580 = vld [vmem:[#allocation4 + $0x30] sm:$0xff]
      %v3581 = vld [vmem:[#allocation4 + $0x38] sm:$0xff]
      %v3582 = vld [vmem:[#allocation4 + $0x40] sm:$0xff]
      %v3583 = vld [vmem:[#allocation4 + $0x48] sm:$0xff]
      %v3584 = vld [vmem:[#allocation4 + $0x50] sm:$0xff]
      %v3585 = vld [vmem:[#allocation4 + $0x58] sm:$0xff]
      %v3586 = vld [vmem:[#allocation4 + $0x60] sm:$0xff]
      %v3587 = vld [vmem:[#allocation4 + $0x68] sm:$0xff]
      %v3588 = vld [vmem:[#allocation4 + $0x70] sm:$0xff]
      %v3589 = vld [vmem:[#allocation4 + $0x78] sm:$0xff]
      %v3590 = vld [vmem:[#allocation4 + $0x80] sm:$0xff]
      %v3591 = vld [vmem:[#allocation4 + $0x88] sm:$0xff]
      %v3592 = vld [vmem:[#allocation4 + $0x90] sm:$0xff]
      %v3593 = vld [vmem:[#allocation4 + $0x98] sm:$0xff]
      %v3594 = vld [vmem:[#allocation4 + $0xa0] sm:$0xff]
      %v3595 = vld [vmem:[#allocation4 + $0xa8] sm:$0xff]
      %v3596 = vld [vmem:[#allocation4 + $0xb0] sm:$0xff]
      %v3597 = vld [vmem:[#allocation4 + $0xb8] sm:$0xff]
      %v3598 = vld [vmem:[#allocation4 + $0xc0] sm:$0xff]
      %v3599 = vld [vmem:[#allocation4 + $0xc8] sm:$0xff]
      %v3600 = vld [vmem:[#allocation4 + $0xd0] sm:$0xff]
      %v3601 = vld [vmem:[#allocation4 + $0xd8] sm:$0xff]
      %v3602 = vld [vmem:[#allocation4 + $0xe0] sm:$0xff]
      %v3603 = vld [vmem:[#allocation4 + $0xe8] sm:$0xff]
      %v3604 = vld [vmem:[#allocation4 + $0xf0] sm:$0xff]
      %v3605 = vld [vmem:[#allocation4 + $0xf8] sm:$0xff]
      %v3606 = vld [vmem:[#allocation4 + $0x100] sm:$0xff]
      %v3607 = vld [vmem:[#allocation4 + $0x108] sm:$0xff]
      %v3608 = vld [vmem:[#allocation4 + $0x110] sm:$0xff]
      %v3609 = vld [vmem:[#allocation4 + $0x118] sm:$0xff]
      %v3610 = vld [vmem:[#allocation4 + $0x120] sm:$0xff]
      %v3611 = vld [vmem:[#allocation4 + $0x128] sm:$0xff]
      %v3612 = vld [vmem:[#allocation4 + $0x130] sm:$0xff]
      %v3613 = vld [vmem:[#allocation4 + $0x138] sm:$0xff]
      %v3614 = vld [vmem:[#allocation4 + $0x140] sm:$0xff]
      %v3615 = vld [vmem:[#allocation4 + $0x148] sm:$0xff]
      %v3616 = vld [vmem:[#allocation4 + $0x150] sm:$0xff]
      %v3617 = vld [vmem:[#allocation4 + $0x158] sm:$0xff]
      %v3618 = vld [vmem:[#allocation4 + $0x160] sm:$0xff]
      %v3619 = vld [vmem:[#allocation4 + $0x168] sm:$0xff]
      %v3620 = vld [vmem:[#allocation4 + $0x170] sm:$0xff]
      %v3621 = vld [vmem:[#allocation4 + $0x178] sm:$0xff]
      %v3622 = vld [vmem:[#allocation4 + $0x180] sm:$0xff]
      %v3623 = vld [vmem:[#allocation4 + $0x188] sm:$0xff]
      %v3624 = vld [vmem:[#allocation4 + $0x190] sm:$0xff]
      %v3625 = vld [vmem:[#allocation4 + $0x198] sm:$0xff]
      %v3626 = vpack.c.bf16 %v3587, %v3574
      %v3627 = vpack.c.bf16 %v3588, %v3575
      %v3628 = vpack.c.bf16 %v3589, %v3576
      %v3629 = vpack.c.bf16 %v3590, %v3577
      %v3630 = vpack.c.bf16 %v3591, %v3578
      %v3631 = vpack.c.bf16 %v3592, %v3579
      %v3632 = vpack.c.bf16 %v3593, %v3580
      %v3633 = vpack.c.bf16 %v3594, %v3581
      %v3634 = vpack.c.bf16 %v3595, %v3582
      %v3635 = vpack.c.bf16 %v3596, %v3583
      %v3636 = vpack.c.bf16 %v3597, %v3584
      %v3637 = vpack.c.bf16 %v3598, %v3585
      %v3638 = vpack.c.bf16 %v3599, %v3586
      %v3639 = vpack.c.bf16 %v3613, %v3600
      %v3640 = vpack.c.bf16 %v3614, %v3601
      %v3641 = vpack.c.bf16 %v3615, %v3602
      %v3642 = vpack.c.bf16 %v3616, %v3603
      %v3643 = vpack.c.bf16 %v3617, %v3604
      %v3644 = vpack.c.bf16 %v3618, %v3605
      %v3645 = vpack.c.bf16 %v3619, %v3606
      %v3646 = vpack.c.bf16 %v3620, %v3607
      %v3647 = vpack.c.bf16 %v3621, %v3608
      %v3648 = vpack.c.bf16 %v3622, %v3609
      %v3649 = vpack.c.bf16 %v3623, %v3610
      %v3650 = vpack.c.bf16 %v3624, %v3611
      %v3651 = vpack.c.bf16 %v3625, %v3612
      %v3652 = vld [vmem:[%s7] sm:$0xf]
      %v3653 = vld [vmem:[%s7 + $0x4] sm:$0xf]
      %v3654 = vld [vmem:[%s7 + $0x8] sm:$0x1]
      %v3655 = vld [vmem:[%s8] sm:$0xff]
      %v3656 = vld [vmem:[%s8 + $0x8] sm:$0xff]
      %v3657 = vld [vmem:[%s8 + $0x10] sm:$0x3]
      %3659 = vset.pattern.permute.xlu0 0
      %3660 = vperm.xlu0 %3659, %v3655
      %v3661 = vpop.permute.xlu0 %3660
      %3664 = vset.pattern.permute.xlu0 0
      %3665 = vperm.xlu0 %3664, %v3656
      %v3666 = vpop.permute.xlu0 %3665
      %3669 = vset.pattern.permute.xlu0 0
      %3670 = vperm.xlu0 %3669, %v3657
      %v3671 = vpop.permute.xlu0 %3670
      %v3676 = vunpack.c.l.b16 %v3652
      %v3677 = vunpack.c.l.b16 %v3653
      %v3678 = vunpack.c.l.b16 %v3654
      %v3679 = vpack.c.b16 %v3677, %v3676
      %v3680 = vpack.c.b16 %v3678, %v3678
      %v3682 = vsel %vm1660, %v3679, 0
      %v3685 = vsel %vm1660, %v3680, 0
      %3687 = vmatprep.subr.bf16.mxu0 %v3627
      %3688 = vmatpush1.bf16.msra.mxu0 %v3626
      %3689 = vmatprep.subr.bf16.mxu0 %v3640
      %3690 = vmatpush1.bf16.msra.mxu0 %v3639
      %3691 = vmatprep.subr.bf16.mxu0 0
      %3692 = vmatpush1.bf16.msra.mxu0 0
      %3693 = vmatprep.subr.bf16.mxu0 0
      %3694 = vmatpush1.bf16.msra.mxu0 0
      %3695 = vmatprep.subr.bf16.mxu0 0
      %3696 = vmatpush1.bf16.msra.mxu0 0
      %3697 = vmatprep.subr.bf16.mxu0 0
      %3698 = vmatpush1.bf16.msra.mxu0 0
      %3699 = vmatprep.subr.bf16.mxu0 0
      %3700 = vmatpush1.bf16.msra.mxu0 0
      %3701 = vmatprep.subr.bf16.mxu0 0
      %3702 = vmatpush1.bf16.msra.mxu0 0
      %3703 = vmatprep.subr.bf16.mxu0 0
      %3704 = vmatpush1.bf16.msra.mxu0 0
      %3705 = vmatprep.subr.bf16.mxu0 0
      %3706 = vmatpush1.bf16.msra.mxu0 0
      %3707 = vmatprep.subr.bf16.mxu0 0
      %3708 = vmatpush1.bf16.msra.mxu0 0
      %3709 = vmatprep.subr.bf16.mxu0 0
      %3710 = vmatpush1.bf16.msra.mxu0 0
      %3711 = vmatprep.subr.bf16.mxu0 0
      %3712 = vmatpush1.bf16.msra.mxu0 0
      %3713 = vmatprep.subr.bf16.mxu0 0
      %3714 = vmatpush1.bf16.msra.mxu0 0
      %3715 = vmatprep.subr.bf16.mxu0 0
      %3716 = vmatpush1.bf16.msra.mxu0 0
      %3717 = vmatprep.subr.bf16.mxu0 0
      %3718 = vmatpush1.bf16.msra.mxu0 0
      %3719 = vmatprep.mubr.bf16.mxu0 0
      %3720 = vmatmul.mubr.bf16.gmra.mrb[0].mxu0 %v3682
      %v3721 = vpop.f32.mrb[0].mxu0
      %v3722 = vadd.f32 %v3661, %v3721
      %v3723 = vpop.f32.mrb[0].mxu0
      %v3724 = vadd.f32 %v3661, %v3723
      %v3725 = vpop.f32.mrb[0].mxu0
      %v3726 = vadd.f32 %v3666, %v3725
      %v3727 = vpop.f32.mrb[0].mxu0
      %v3728 = vadd.f32 %v3666, %v3727
      %3729 = vmatprep.mubr.bf16.mxu0 0
      %3730 = vmatmul.mubr.bf16.gmra.mrb[0].mxu0 %v3685
      %v3731 = vpop.f32.mrb[0].mxu0
      %v3732 = vadd.f32 %v3671, %v3731
      %v3733 = vpop.f32.mrb[0].mxu0
      %v3734 = vadd.f32 %v3671, %v3733
      %v3735 = vpop.f32.mrb[0].mxu0
      %v3736 = vpop.f32.mrb[0].mxu0
      %3737 = vdwg.mxu0
      %3738 = vmatprep.subr.bf16.mxu0 %v3629
      %3739 = vmatpush1.bf16.msra.mxu0 %v3628
      %3740 = vmatprep.subr.bf16.mxu0 %v3642
      %3741 = vmatpush1.bf16.msra.mxu0 %v3641
      %3742 = vmatprep.subr.bf16.mxu0 0
      %3743 = vmatpush1.bf16.msra.mxu0 0
      %3744 = vmatprep.subr.bf16.mxu0 0
      %3745 = vmatpush1.bf16.msra.mxu0 0
      %3746 = vmatprep.subr.bf16.mxu0 0
      %3747 = vmatpush1.bf16.msra.mxu0 0
      %3748 = vmatprep.subr.bf16.mxu0 0
      %3749 = vmatpush1.bf16.msra.mxu0 0
      %3750 = vmatprep.subr.bf16.mxu0 0
      %3751 = vmatpush1.bf16.msra.mxu0 0
      %3752 = vmatprep.subr.bf16.mxu0 0
      %3753 = vmatpush1.bf16.msra.mxu0 0
      %3754 = vmatprep.subr.bf16.mxu0 0
      %3755 = vmatpush1.bf16.msra.mxu0 0
      %3756 = vmatprep.subr.bf16.mxu0 0
      %3757 = vmatpush1.bf16.msra.mxu0 0
      %3758 = vmatprep.subr.bf16.mxu0 0
      %3759 = vmatpush1.bf16.msra.mxu0 0
      %3760 = vmatprep.subr.bf16.mxu0 0
      %3761 = vmatpush1.bf16.msra.mxu0 0
      %3762 = vmatprep.subr.bf16.mxu0 0
      %3763 = vmatpush1.bf16.msra.mxu0 0
      %3764 = vmatprep.subr.bf16.mxu0 0
      %3765 = vmatpush1.bf16.msra.mxu0 0
      %3766 = vmatprep.subr.bf16.mxu0 0
      %3767 = vmatpush1.bf16.msra.mxu0 0
      %3768 = vmatprep.subr.bf16.mxu0 0
      %3769 = vmatpush1.bf16.msra.mxu0 0
      %3770 = vmatprep.mubr.bf16.mxu0 0
      %3771 = vmatmul.mubr.bf16.gmra.mrb[0].mxu0 %v3682
      %v3772 = vpop.f32.mrb[0].mxu0
      %v3773 = vadd.f32 %v3661, %v3772
      %v3774 = vpop.f32.mrb[0].mxu0
      %v3775 = vadd.f32 %v3661, %v3774
      %v3776 = vpop.f32.mrb[0].mxu0
      %v3777 = vadd.f32 %v3666, %v3776
      %v3778 = vpop.f32.mrb[0].mxu0
      %v3779 = vadd.f32 %v3666, %v3778
      %3780 = vmatprep.mubr.bf16.mxu0 0
      %3781 = vmatmul.mubr.bf16.gmra.mrb[0].mxu0 %v3685
      %v3782 = vpop.f32.mrb[0].mxu0
      %v3783 = vadd.f32 %v3671, %v3782
      %v3784 = vpop.f32.mrb[0].mxu0
      %v3785 = vadd.f32 %v3671, %v3784
      %v3786 = vpop.f32.mrb[0].mxu0
      %v3787 = vpop.f32.mrb[0].mxu0
      %3788 = vdwg.mxu0
      %3789 = vmatprep.subr.bf16.mxu0 %v3631
      %3790 = vmatpush1.bf16.msra.mxu0 %v3630
      %3791 = vmatprep.subr.bf16.mxu0 %v3644
      %3792 = vmatpush1.bf16.msra.mxu0 %v3643
      %3793 = vmatprep.subr.bf16.mxu0 0
      %3794 = vmatpush1.bf16.msra.mxu0 0
      %3795 = vmatprep.subr.bf16.mxu0 0
      %3796 = vmatpush1.bf16.msra.mxu0 0
      %3797 = vmatprep.subr.bf16.mxu0 0
      %3798 = vmatpush1.bf16.msra.mxu0 0
      %3799 = vmatprep.subr.bf16.mxu0 0
      %3800 = vmatpush1.bf16.msra.mxu0 0
      %3801 = vmatprep.subr.bf16.mxu0 0
      %3802 = vmatpush1.bf16.msra.mxu0 0
      %3803 = vmatprep.subr.bf16.mxu0 0
      %3804 = vmatpush1.bf16.msra.mxu0 0
      %3805 = vmatprep.subr.bf16.mxu0 0
      %3806 = vmatpush1.bf16.msra.mxu0 0
      %3807 = vmatprep.subr.bf16.mxu0 0
      %3808 = vmatpush1.bf16.msra.mxu0 0
      %3809 = vmatprep.subr.bf16.mxu0 0
      %3810 = vmatpush1.bf16.msra.mxu0 0
      %3811 = vmatprep.subr.bf16.mxu0 0
      %3812 = vmatpush1.bf16.msra.mxu0 0
      %3813 = vmatprep.subr.bf16.mxu0 0
      %3814 = vmatpush1.bf16.msra.mxu0 0
      %3815 = vmatprep.subr.bf16.mxu0 0
      %3816 = vmatpush1.bf16.msra.mxu0 0
      %3817 = vmatprep.subr.bf16.mxu0 0
      %3818 = vmatpush1.bf16.msra.mxu0 0
      %3819 = vmatprep.subr.bf16.mxu0 0
      %3820 = vmatpush1.bf16.msra.mxu0 0
      %3821 = vmatprep.mubr.bf16.mxu0 0
      %3822 = vmatmul.mubr.bf16.gmra.mrb[0].mxu0 %v3682
      %v3823 = vpop.f32.mrb[0].mxu0
      %v3824 = vadd.f32 %v3661, %v3823
      %v3825 = vpop.f32.mrb[0].mxu0
      %v3826 = vadd.f32 %v3661, %v3825
      %v3827 = vpop.f32.mrb[0].mxu0
      %v3828 = vadd.f32 %v3666, %v3827
      %v3829 = vpop.f32.mrb[0].mxu0
      %v3830 = vadd.f32 %v3666, %v3829
      %3831 = vmatprep.mubr.bf16.mxu0 0
      %3832 = vmatmul.mubr.bf16.gmra.mrb[0].mxu0 %v3685
      %v3833 = vpop.f32.mrb[0].mxu0
      %v3834 = vadd.f32 %v3671, %v3833
      %v3835 = vpop.f32.mrb[0].mxu0
      %v3836 = vadd.f32 %v3671, %v3835
      %v3837 = vpop.f32.mrb[0].mxu0
      %v3838 = vpop.f32.mrb[0].mxu0
      %3839 = vdwg.mxu0
      %3840 = vmatprep.subr.bf16.mxu0 %v3633
      %3841 = vmatpush1.bf16.msra.mxu0 %v3632
      %3842 = vmatprep.subr.bf16.mxu0 %v3646
      %3843 = vmatpush1.bf16.msra.mxu0 %v3645
      %3844 = vmatprep.subr.bf16.mxu0 0
      %3845 = vmatpush1.bf16.msra.mxu0 0
      %3846 = vmatprep.subr.bf16.mxu0 0
      %3847 = vmatpush1.bf16.msra.mxu0 0
      %3848 = vmatprep.subr.bf16.mxu0 0
      %3849 = vmatpush1.bf16.msra.mxu0 0
      %3850 = vmatprep.subr.bf16.mxu0 0
      %3851 = vmatpush1.bf16.msra.mxu0 0
      %3852 = vmatprep.subr.bf16.mxu0 0
      %3853 = vmatpush1.bf16.msra.mxu0 0
      %3854 = vmatprep.subr.bf16.mxu0 0
      %3855 = vmatpush1.bf16.msra.mxu0 0
      %3856 = vmatprep.subr.bf16.mxu0 0
      %3857 = vmatpush1.bf16.msra.mxu0 0
      %3858 = vmatprep.subr.bf16.mxu0 0
      %3859 = vmatpush1.bf16.msra.mxu0 0
      %3860 = vmatprep.subr.bf16.mxu0 0
      %3861 = vmatpush1.bf16.msra.mxu0 0
      %3862 = vmatprep.subr.bf16.mxu0 0
      %3863 = vmatpush1.bf16.msra.mxu0 0
      %3864 = vmatprep.subr.bf16.mxu0 0
      %3865 = vmatpush1.bf16.msra.mxu0 0
      %3866 = vmatprep.subr.bf16.mxu0 0
      %3867 = vmatpush1.bf16.msra.mxu0 0
      %3868 = vmatprep.subr.bf16.mxu0 0
      %3869 = vmatpush1.bf16.msra.mxu0 0
      %3870 = vmatprep.subr.bf16.mxu0 0
      %3871 = vmatpush1.bf16.msra.mxu0 0
      %3872 = vmatprep.mubr.bf16.mxu0 0
      %3873 = vmatmul.mubr.bf16.gmra.mrb[0].mxu0 %v3682
      %v3874 = vpop.f32.mrb[0].mxu0
      %v3875 = vadd.f32 %v3661, %v3874
      %v3876 = vpop.f32.mrb[0].mxu0
      %v3877 = vadd.f32 %v3661, %v3876
      %v3878 = vpop.f32.mrb[0].mxu0
      %v3879 = vadd.f32 %v3666, %v3878
      %v3880 = vpop.f32.mrb[0].mxu0
      %v3881 = vadd.f32 %v3666, %v3880
      %3882 = vmatprep.mubr.bf16.mxu0 0
      %3883 = vmatmul.mubr.bf16.gmra.mrb[0].mxu0 %v3685
      %v3884 = vpop.f32.mrb[0].mxu0
      %v3885 = vadd.f32 %v3671, %v3884
      %v3886 = vpop.f32.mrb[0].mxu0
      %v3887 = vadd.f32 %v3671, %v3886
      %v3888 = vpop.f32.mrb[0].mxu0
      %v3889 = vpop.f32.mrb[0].mxu0
      %3890 = vdwg.mxu0
      %3891 = vmatprep.subr.bf16.mxu0 %v3635
      %3892 = vmatpush1.bf16.msra.mxu0 %v3634
      %3893 = vmatprep.subr.bf16.mxu0 %v3648
      %3894 = vmatpush1.bf16.msra.mxu0 %v3647
      %3895 = vmatprep.subr.bf16.mxu0 0
      %3896 = vmatpush1.bf16.msra.mxu0 0
      %3897 = vmatprep.subr.bf16.mxu0 0
      %3898 = vmatpush1.bf16.msra.mxu0 0
      %3899 = vmatprep.subr.bf16.mxu0 0
      %3900 = vmatpush1.bf16.msra.mxu0 0
      %3901 = vmatprep.subr.bf16.mxu0 0
      %3902 = vmatpush1.bf16.msra.mxu0 0
      %3903 = vmatprep.subr.bf16.mxu0 0
      %3904 = vmatpush1.bf16.msra.mxu0 0
      %3905 = vmatprep.subr.bf16.mxu0 0
      %3906 = vmatpush1.bf16.msra.mxu0 0
      %3907 = vmatprep.subr.bf16.mxu0 0
      %3908 = vmatpush1.bf16.msra.mxu0 0
      %3909 = vmatprep.subr.bf16.mxu0 0
      %3910 = vmatpush1.bf16.msra.mxu0 0
      %3911 = vmatprep.subr.bf16.mxu0 0
      %3912 = vmatpush1.bf16.msra.mxu0 0
      %3913 = vmatprep.subr.bf16.mxu0 0
      %3914 = vmatpush1.bf16.msra.mxu0 0
      %3915 = vmatprep.subr.bf16.mxu0 0
      %3916 = vmatpush1.bf16.msra.mxu0 0
      %3917 = vmatprep.subr.bf16.mxu0 0
      %3918 = vmatpush1.bf16.msra.mxu0 0
      %3919 = vmatprep.subr.bf16.mxu0 0
      %3920 = vmatpush1.bf16.msra.mxu0 0
      %3921 = vmatprep.subr.bf16.mxu0 0
      %3922 = vmatpush1.bf16.msra.mxu0 0
      %3923 = vmatprep.mubr.bf16.mxu0 0
      %3924 = vmatmul.mubr.bf16.gmra.mrb[0].mxu0 %v3682
      %v3925 = vpop.f32.mrb[0].mxu0
      %v3926 = vadd.f32 %v3661, %v3925
      %v3927 = vpop.f32.mrb[0].mxu0
      %v3928 = vadd.f32 %v3661, %v3927
      %v3929 = vpop.f32.mrb[0].mxu0
      %v3930 = vadd.f32 %v3666, %v3929
      %v3931 = vpop.f32.mrb[0].mxu0
      %v3932 = vadd.f32 %v3666, %v3931
      %3933 = vmatprep.mubr.bf16.mxu0 0
      %3934 = vmatmul.mubr.bf16.gmra.mrb[0].mxu0 %v3685
      %v3935 = vpop.f32.mrb[0].mxu0
      %v3936 = vadd.f32 %v3671, %v3935
      %v3937 = vpop.f32.mrb[0].mxu0
      %v3938 = vadd.f32 %v3671, %v3937
      %v3939 = vpop.f32.mrb[0].mxu0
      %v3940 = vpop.f32.mrb[0].mxu0
      %3941 = vdwg.mxu0
      %3942 = vmatprep.subr.bf16.mxu0 %v3637
      %3943 = vmatpush1.bf16.msra.mxu0 %v3636
      %3944 = vmatprep.subr.bf16.mxu0 %v3650
      %3945 = vmatpush1.bf16.msra.mxu0 %v3649
      %3946 = vmatprep.subr.bf16.mxu0 0
      %3947 = vmatpush1.bf16.msra.mxu0 0
      %3948 = vmatprep.subr.bf16.mxu0 0
      %3949 = vmatpush1.bf16.msra.mxu0 0
      %3950 = vmatprep.subr.bf16.mxu0 0
      %3951 = vmatpush1.bf16.msra.mxu0 0
      %3952 = vmatprep.subr.bf16.mxu0 0
      %3953 = vmatpush1.bf16.msra.mxu0 0
      %3954 = vmatprep.subr.bf16.mxu0 0
      %3955 = vmatpush1.bf16.msra.mxu0 0
      %3956 = vmatprep.subr.bf16.mxu0 0
      %3957 = vmatpush1.bf16.msra.mxu0 0
      %3958 = vmatprep.subr.bf16.mxu0 0
      %3959 = vmatpush1.bf16.msra.mxu0 0
      %3960 = vmatprep.subr.bf16.mxu0 0
      %3961 = vmatpush1.bf16.msra.mxu0 0
      %3962 = vmatprep.subr.bf16.mxu0 0
      %3963 = vmatpush1.bf16.msra.mxu0 0
      %3964 = vmatprep.subr.bf16.mxu0 0
      %3965 = vmatpush1.bf16.msra.mxu0 0
      %3966 = vmatprep.subr.bf16.mxu0 0
      %3967 = vmatpush1.bf16.msra.mxu0 0
      %3968 = vmatprep.subr.bf16.mxu0 0
      %3969 = vmatpush1.bf16.msra.mxu0 0
      %3970 = vmatprep.subr.bf16.mxu0 0
      %3971 = vmatpush1.bf16.msra.mxu0 0
      %3972 = vmatprep.subr.bf16.mxu0 0
      %3973 = vmatpush1.bf16.msra.mxu0 0
      %3974 = vmatprep.mubr.bf16.mxu0 0
      %3975 = vmatmul.mubr.bf16.gmra.mrb[0].mxu0 %v3682
      %v3976 = vpop.f32.mrb[0].mxu0
      %v3977 = vadd.f32 %v3661, %v3976
      %v3978 = vpop.f32.mrb[0].mxu0
      %v3979 = vadd.f32 %v3661, %v3978
      %v3980 = vpop.f32.mrb[0].mxu0
      %v3981 = vadd.f32 %v3666, %v3980
      %v3982 = vpop.f32.mrb[0].mxu0
      %v3983 = vadd.f32 %v3666, %v3982
      %3984 = vmatprep.mubr.bf16.mxu0 0
      %3985 = vmatmul.mubr.bf16.gmra.mrb[0].mxu0 %v3685
      %v3986 = vpop.f32.mrb[0].mxu0
      %v3987 = vadd.f32 %v3671, %v3986
      %v3988 = vpop.f32.mrb[0].mxu0
      %v3989 = vadd.f32 %v3671, %v3988
      %v3990 = vpop.f32.mrb[0].mxu0
      %v3991 = vpop.f32.mrb[0].mxu0
      %3992 = vdwg.mxu0
      %3993 = vmatprep.subr.bf16.mxu0 0
      %3994 = vmatpush1.bf16.msra.mxu0 %v3638
      %3995 = vmatprep.subr.bf16.mxu0 0
      %3996 = vmatpush1.bf16.msra.mxu0 %v3651
      %3997 = vmatprep.subr.bf16.mxu0 0
      %3998 = vmatpush1.bf16.msra.mxu0 0
      %3999 = vmatprep.subr.bf16.mxu0 0
      %4000 = vmatpush1.bf16.msra.mxu0 0
      %4001 = vmatprep.subr.bf16.mxu0 0
      %4002 = vmatpush1.bf16.msra.mxu0 0
      %4003 = vmatprep.subr.bf16.mxu0 0
      %4004 = vmatpush1.bf16.msra.mxu0 0
      %4005 = vmatprep.subr.bf16.mxu0 0
      %4006 = vmatpush1.bf16.msra.mxu0 0
      %4007 = vmatprep.subr.bf16.mxu0 0
      %4008 = vmatpush1.bf16.msra.mxu0 0
      %4009 = vmatprep.subr.bf16.mxu0 0
      %4010 = vmatpush1.bf16.msra.mxu0 0
      %4011 = vmatprep.subr.bf16.mxu0 0
      %4012 = vmatpush1.bf16.msra.mxu0 0
      %4013 = vmatprep.subr.bf16.mxu0 0
      %4014 = vmatpush1.bf16.msra.mxu0 0
      %4015 = vmatprep.subr.bf16.mxu0 0
      %4016 = vmatpush1.bf16.msra.mxu0 0
      %4017 = vmatprep.subr.bf16.mxu0 0
      %4018 = vmatpush1.bf16.msra.mxu0 0
      %4019 = vmatprep.subr.bf16.mxu0 0
      %4020 = vmatpush1.bf16.msra.mxu0 0
      %4021 = vmatprep.subr.bf16.mxu0 0
      %4022 = vmatpush1.bf16.msra.mxu0 0
      %4023 = vmatprep.subr.bf16.mxu0 0
      %4024 = vmatpush1.bf16.msra.mxu0 0
      %4025 = vmatprep.mubr.bf16.mxu0 0
      %4026 = vmatmul.mubr.bf16.gmra.mrb[0].mxu0 %v3682
      %v4027 = vpop.f32.mrb[0].mxu0
      %v4028 = vadd.f32 %v3661, %v4027
      %v4029 = vpop.f32.mrb[0].mxu0
      %v4030 = vpop.f32.mrb[0].mxu0
      %v4031 = vadd.f32 %v3666, %v4030
      %v4032 = vpop.f32.mrb[0].mxu0
      %4033 = vmatprep.mubr.bf16.mxu0 0
      %4034 = vmatmul.mubr.bf16.gmra.mrb[0].mxu0 %v3685
      %v4035 = vpop.f32.mrb[0].mxu0
      %v4036 = vadd.f32 %v3671, %v4035
      %v4037 = vpop.f32.mrb[0].mxu0
      %v4038 = vpop.f32.mrb[0].mxu0
      %v4039 = vpop.f32.mrb[0].mxu0
      %4040 = vdwg.mxu0
      %v4041 = vmax.f32 %v3722, 0.0
      %v4042 = vmax.f32 %v3724, 0.0
      %v4043 = vmax.f32 %v3773, 0.0
      %v4044 = vmax.f32 %v3775, 0.0
      %v4045 = vmax.f32 %v3824, 0.0
      %v4046 = vmax.f32 %v3826, 0.0
      %v4047 = vmax.f32 %v3875, 0.0
      %v4048 = vmax.f32 %v3877, 0.0
      %v4049 = vmax.f32 %v3926, 0.0
      %v4050 = vmax.f32 %v3928, 0.0
      %v4051 = vmax.f32 %v3977, 0.0
      %v4052 = vmax.f32 %v3979, 0.0
      %v4053 = vmax.f32 %v4028, 0.0
      %v4054 = vmax.f32 %v3726, 0.0
      %v4055 = vmax.f32 %v3728, 0.0
      %v4056 = vmax.f32 %v3777, 0.0
      %v4057 = vmax.f32 %v3779, 0.0
      %v4058 = vmax.f32 %v3828, 0.0
      %v4059 = vmax.f32 %v3830, 0.0
      %v4060 = vmax.f32 %v3879, 0.0
      %v4061 = vmax.f32 %v3881, 0.0
      %v4062 = vmax.f32 %v3930, 0.0
      %v4063 = vmax.f32 %v3932, 0.0
      %v4064 = vmax.f32 %v3981, 0.0
      %v4065 = vmax.f32 %v3983, 0.0
      %v4066 = vmax.f32 %v4031, 0.0
      %v4067 = vmax.f32 %v3732, 0.0
      %v4068 = vmax.f32 %v3734, 0.0
      %v4069 = vmax.f32 %v3783, 0.0
      %v4070 = vmax.f32 %v3785, 0.0
      %v4071 = vmax.f32 %v3834, 0.0
      %v4072 = vmax.f32 %v3836, 0.0
      %v4073 = vmax.f32 %v3885, 0.0
      %v4074 = vmax.f32 %v3887, 0.0
      %v4075 = vmax.f32 %v3936, 0.0
      %v4076 = vmax.f32 %v3938, 0.0
      %v4077 = vmax.f32 %v3987, 0.0
      %v4078 = vmax.f32 %v3989, 0.0
      %v4079 = vmax.f32 %v4036, 0.0
      %4080 = vst [vmem:[%s332] sm:$0xff] %v4041
      %4081 = vst [vmem:[%s332 + $0x8] sm:$0xff] %v4042
      %4082 = vst [vmem:[%s332 + $0x10] sm:$0xff] %v4043
      %4083 = vst [vmem:[%s332 + $0x18] sm:$0xff] %v4044
      %4084 = vst [vmem:[%s332 + $0x20] sm:$0xff] %v4045
      %4085 = vst [vmem:[%s332 + $0x28] sm:$0xff] %v4046
      %4086 = vst [vmem:[%s332 + $0x30] sm:$0xff] %v4047
      %4087 = vst [vmem:[%s332 + $0x38] sm:$0xff] %v4048
      %4088 = vst [vmem:[%s332 + $0x40] sm:$0xff] %v4049
      %4089 = vst [vmem:[%s332 + $0x48] sm:$0xff] %v4050
      %4090 = vst [vmem:[%s332 + $0x50] sm:$0xff] %v4051
      %4091 = vst [vmem:[%s332 + $0x58] sm:$0xff] %v4052
      %4092 = vst.msk [vmem:[%s332 + $0x60] sm:$0xff] %vm498, %v4053
      %4093 = vst [vmem:[%s332 + $0x68] sm:$0xff] %v4054
      %4094 = vst [vmem:[%s332 + $0x70] sm:$0xff] %v4055
      %4095 = vst [vmem:[%s332 + $0x78] sm:$0xff] %v4056
      %4096 = vst [vmem:[%s332 + $0x80] sm:$0xff] %v4057
      %4097 = vst [vmem:[%s332 + $0x88] sm:$0xff] %v4058
      %4098 = vst [vmem:[%s332 + $0x90] sm:$0xff] %v4059
      %4099 = vst [vmem:[%s332 + $0x98] sm:$0xff] %v4060
      %4100 = vst [vmem:[%s332 + $0xa0] sm:$0xff] %v4061
      %4101 = vst [vmem:[%s332 + $0xa8] sm:$0xff] %v4062
      %4102 = vst [vmem:[%s332 + $0xb0] sm:$0xff] %v4063
      %4103 = vst [vmem:[%s332 + $0xb8] sm:$0xff] %v4064
      %4104 = vst [vmem:[%s332 + $0xc0] sm:$0xff] %v4065
      %4105 = vst.msk [vmem:[%s332 + $0xc8] sm:$0xff] %vm498, %v4066
      %4106 = vst [vmem:[%s332 + $0xd0] sm:$0x3] %v4067
      %4107 = vst [vmem:[%s332 + $0xd8] sm:$0x3] %v4068
      %4108 = vst [vmem:[%s332 + $0xe0] sm:$0x3] %v4069
      %4109 = vst [vmem:[%s332 + $0xe8] sm:$0x3] %v4070
      %4110 = vst [vmem:[%s332 + $0xf0] sm:$0x3] %v4071
      %4111 = vst [vmem:[%s332 + $0xf8] sm:$0x3] %v4072
      %4112 = vst [vmem:[%s332 + $0x100] sm:$0x3] %v4073
      %4113 = vst [vmem:[%s332 + $0x108] sm:$0x3] %v4074
      %4114 = vst [vmem:[%s332 + $0x110] sm:$0x3] %v4075
      %4115 = vst [vmem:[%s332 + $0x118] sm:$0x3] %v4076
      %4116 = vst [vmem:[%s332 + $0x120] sm:$0x3] %v4077
      %4117 = vst [vmem:[%s332 + $0x128] sm:$0x3] %v4078
      %vm4118 = vcmask 517120
      %4119 = vst.msk [vmem:[%s332 + $0x130] sm:$0x3] %vm4118, %v4079
      %p4120 = scmp.lt.s32.totalorder %s20, 1
      %s4121 = scalar_select %p4120, %s20, 1
      %s4122 = smul.addr %s4121, 39
      %s4123 = smul.addr %s4122, 8
      %s4124 = scalar_lea.vmem %s9, %s4123
      // Predicated region
      $region57: #{decoder_forward.1} parent=55 // pred_check
        %p4125 = pneg %p232
      $region58: #{decoder_forward.1} parent=55 // pred_check_branch
        %4127 = sbr.rel (%p4125) target = $region60
      $region59: #{decoder_forward.1} parent=55 // pred_region
        _
      $region60: #{decoder_forward.1} parent=55 // pred_fallthru
        _
    $region56: #{decoder_forward.1} parent=5 // pred_fallthru
      _
    %p4128 = scmp.le.s32.totalorder 2, %s15
    // Predicated region
    $region61: #{decoder_forward.1} parent=5 // pred_check
      %p4129 = pneg %p4128
    $region62: #{decoder_forward.1} parent=5 // pred_check_branch
      %4131 = sbr.rel (%p4129) target = $region64
    $region63: #{decoder_forward.1} parent=5 // pred_region
      %s4132 = ssub.s32 %s15, 2
      // Predicated region
      $region65: #{decoder_forward.1} parent=63 // pred_check
        %p4133 = pneg %p238
      $region66: #{decoder_forward.1} parent=63 // pred_check_branch
        %4135 = sbr.rel (%p4133) target = $region68
      $region67: #{decoder_forward.1} parent=63 // pred_region
        %p4136 = scmp.lt.s32.totalorder %s21, 1
        %s4137 = scalar_select %p4136, %s21, 1
        %s4138 = smul.addr %s4137, 39
        %s4139 = smul.addr %s4138, 8
        %s4140 = scalar_lea.vmem %s9, %s4139
      $region68: #{decoder_forward.1} parent=63 // pred_fallthru
        _
    $region64: #{decoder_forward.1} parent=5 // pred_fallthru
      _
  $region6: #{decoder_forward.1} parent=0 // loop_footer
    %s19 = sadd.s32 1, %s15
  $region7: #{decoder_forward.1} parent=0 // loop_footer_branch
    %14 = sbr.rel target = $region3
  $region8: #{decoder_forward.1} parent=0 // loop_exit
    _

</llo_original>
